<compile_context>
chip_gen: v7x
topology: tpu7x:2x2x1
jax: 0.10.0
libtpu: 0.0.40
codegen_flags: <defaults>
</compile_context>

<pallas_src>
import functools

import jax
import jax.numpy as jnp
from jax.experimental import pallas as pl
from jax.experimental.pallas import tpu as pltpu


# Sub-pixel (output-gather) decomposition of ConvTranspose2d(k=4, s=2, p=1):
# output row oy = 2*u + py only receives contributions from input rows u + dy,
# dy in _OFFS[py], through kernel row ky = py + 1 - 2*dy (same along x).
_OFFS = ((0, -1), (1, 0))


# ------------------------------ weight packing --------------------------------

def _pack_phase_weights(w, pad_cout_to=None):
    """ConvTranspose2d weight (Cin, Cout, 4, 4) -> (4, 4*Cin, Cout[_padded]).

    Phase p = py*2 + px; rows stack W[:, :, ky, kx] over (dy, dx) in
    _OFFS[py] x _OFFS[px] (ky = py+1-2*dy, kx = px+1-2*dx) in exactly the order
    the kernel lane-concatenates the shifted input views, so a single
    (M, 4*Cin) @ (4*Cin, Cout) matmul realises the overlap-add on the MXU.
    """
    cin, cout = w.shape[0], w.shape[1]
    phases = []
    for py in (0, 1):
        for px in (0, 1):
            blocks = []
            for dy in _OFFS[py]:
                ky = py + 1 - 2 * dy
                for dx in _OFFS[px]:
                    kx = px + 1 - 2 * dx
                    blocks.append(w[:, :, ky, kx])            # (Cin, Cout)
            wp = jnp.concatenate(blocks, axis=0)              # (4*Cin, Cout)
            if pad_cout_to is not None and pad_cout_to > cout:
                wp = jnp.pad(wp, ((0, 0), (0, pad_cout_to - cout)))
            phases.append(wp)
    return jnp.stack(phases, axis=0)


# --------------------------- in-kernel helpers --------------------------------

def _bn_lrelu(y, nb, n_real, eps, slope):
    """Training-mode BatchNorm2d (gamma=1, beta=0) + LeakyReLU, all in f32.

    y: (M, C) slab, rows ordered (iy, ix, n) with n fastest; the batch is padded
    to nb rows per pixel, only n < n_real are real, so statistics use a row
    mask (count = n_real * H * W).  Two-pass (centred) statistics.
    """
    m = y.shape[0]
    row = jax.lax.broadcasted_iota(jnp.int32, (m, 1), 0)
    maskf = ((row % nb) < n_real).astype(jnp.float32)
    count = float(n_real * (m // nb))
    mean = jnp.sum(y * maskf, axis=0, keepdims=True) * (1.0 / count)
    cen = y - mean
    var = jnp.sum(cen * cen * maskf, axis=0, keepdims=True) * (1.0 / count)
    z = cen * jax.lax.rsqrt(var + eps)
    return jnp.maximum(z, slope * z)          # LeakyReLU: one VPU op, no select


def _conv_t_s2(act, h, w, nb, w_ref):
    """ConvTranspose2d(k=4, s=2, p=1, bias=False) via output-gather matmuls.

    act:   (h*w*nb, Cin) f32 slab, rows (iy, ix, n).
    w_ref: (4, 4*Cin, Cout) bf16, packed by _pack_phase_weights.
    Returns [p00, p01, p10, p11]; each (h*w*nb, Cout) f32 with rows (u, v, n),
    holding output pixel (2u+py, 2v+px).

    The only data movement per layer is one zero-halo pad (2 concats) and, per
    output phase, 4 tile-aligned slices + 1 lane concat; the MXU contraction
    (K = 4*Cin) performs the overlap-add (no VPU adds, no per-tap copies).
    """
    cin = act.shape[1]
    a3 = act.reshape(h, w * nb, cin)
    zx = jnp.zeros((h, nb, cin), jnp.float32)
    a3 = jnp.concatenate([zx, a3, zx], axis=1)                 # (h, (w+2)*nb, Cin)
    zy = jnp.zeros((1, (w + 2) * nb, cin), jnp.float32)
    padded = jnp.concatenate([zy, a3, zy], axis=0)             # (h+2, (w+2)*nb, Cin)

    outs = []
    p = 0
    for py in (0, 1):
        for px in (0, 1):
            blocks = []
            for dy in _OFFS[py]:
                for dx in _OFFS[px]:
                    sl = padded[1 + dy:1 + dy + h,
                                (1 + dx) * nb:(1 + dx + w) * nb, :]
                    blocks.append(sl.reshape(h * w * nb, cin))
            # bf16 MXU operands, f32 accumulation.
            lhs = jnp.concatenate(blocks, axis=1).astype(jnp.bfloat16)
            outs.append(jnp.dot(lhs, w_ref[p],
                                preferred_element_type=jnp.float32))
            p += 1
    return outs


def _interleave(p00, p01, p10, p11, h, w, nb):
    """Merge 4 phase slabs (rows (u, v, n)) into one (4*h*w*nb, C) slab with
    rows (oy, ox, n), oy = 2u+py, ox = 2v+px.  All reshapes/concats act on the
    sublane dim at whole-tile (8-row) granularity because nb % 8 == 0."""
    c = p00.shape[1]

    def xi(a, b):                                   # interleave along x
        a3 = a.reshape(h * w, nb, c)
        b3 = b.reshape(h * w, nb, c)
        return jnp.concatenate([a3, b3], axis=1).reshape(h * w * 2 * nb, c)

    r0 = xi(p00, p01)                               # py = 0 rows, (u, ox, n)
    r1 = xi(p10, p11)                               # py = 1
    a3 = r0.reshape(h, 2 * w * nb, c)
    b3 = r1.reshape(h, 2 * w * nb, c)
    return jnp.concatenate([a3, b3], axis=1).reshape(4 * h * w * nb, c)


# ------------------------------ fused kernel ----------------------------------

def _dcgan_kernel(*refs, nb, n_real, d0, n_mid, eps, slope):
    x_ref, w0_ref = refs[0], refs[1]
    wmid_refs = refs[2:2 + n_mid]
    wlast_ref, b_ref, out_ref = refs[2 + n_mid], refs[3 + n_mid], refs[4 + n_mid]

    # Layer 0: ConvT(E, d0, 4, 1, 0) on a 1x1 input == one matmul.  Lanes are
    # ordered (ky, kx, c); 16 static lane slices + one row concat produce the
    # canonical (iy, ix, n) x C slab (tiny: 8 rows per slice, one-time).
    t0 = jnp.dot(x_ref[...].astype(jnp.bfloat16), w0_ref[...],
                 preferred_element_type=jnp.float32)            # (nb, 16*d0)
    act = jnp.concatenate([t0[:, p * d0:(p + 1) * d0] for p in range(16)],
                          axis=0)                               # (16*nb, d0)
    act = _bn_lrelu(act, nb, n_real, eps, slope)
    h = w = 4

    # Middle up-sampling blocks: ConvT(s=2) + BN + LeakyReLU.  Constant op
    # count per layer, independent of spatial size (bounded unrolling).
    for li in range(n_mid):
        ph = _conv_t_s2(act, h, w, nb, wmid_refs[li])
        act = _interleave(ph[0], ph[1], ph[2], ph[3], h, w, nb)
        h, w = 2 * h, 2 * w
        act = _bn_lrelu(act, nb, n_real, eps, slope)

    # Last block: ConvT(s=2, bias=True) + Tanh.  Weight/bias columns were zero
    # padded to 128 lanes in the wrapper, so every store below is a full,
    # unmasked 128-lane block (lane-dense writeback); the padded lanes are
    # exactly tanh(0 + 0) = 0 and get sliced off host-side.
    ph = _conv_t_s2(act, h, w, nb, wlast_ref)
    bias = b_ref[...]                                           # (1, 128) f32
    for p in range(4):
        out_ref[p, :, :] = jnp.tanh(ph[p] + bias)


# --------------------------------- wrapper -------------------------------------

def dcgan_generator_forward(x, params, *, out_size, out_channels, step_channels):
    """x: (N, encoding_dims) -> (N, out_channels, out_size, out_size), NCHW."""
    num_repeats = out_size.bit_length() - 4
    d0 = step_channels * (2 ** num_repeats)
    n_real, enc = x.shape
    nb = ((n_real + 7) // 8) * 8              # pad batch to a sublane multiple
    lane_out = 128                            # lane-dense final store width

    x_pad = jnp.zeros((nb, enc), jnp.float32).at[:n_real, :].set(
        x.astype(jnp.float32))

    # One-time weight packing (layout glue, outside the kernel).  All matmul
    # operands are bf16 (MXU-native on every TPU generation); accumulation and
    # all element-wise math stay f32.
    w0_mat = jnp.transpose(params["w0"], (0, 2, 3, 1)).reshape(
        enc, 16 * d0).astype(jnp.bfloat16)
    wmid = [_pack_phase_weights(wm).astype(jnp.bfloat16)
            for wm in params["mid_ws"]]
    wlast = _pack_phase_weights(params["w_last"],
                                pad_cout_to=lane_out).astype(jnp.bfloat16)
    bias = jnp.zeros((1, lane_out), jnp.float32).at[0, :out_channels].set(
        params["b_last"].astype(jnp.float32))

    h_last = out_size // 2                    # spatial size feeding the last layer
    m_last = h_last * h_last * nb
    out_shape = jax.ShapeDtypeStruct((4, m_last, lane_out), jnp.float32)

    inputs = [x_pad, w0_mat, *wmid, wlast, bias]

    def full_spec(shape):
        if len(shape) == 2:
            return pl.BlockSpec(shape, lambda i: (0, 0))
        return pl.BlockSpec(shape, lambda i: (0, 0, 0))

    kernel = functools.partial(
        _dcgan_kernel, nb=nb, n_real=n_real, d0=d0, n_mid=num_repeats,
        eps=1e-5, slope=0.2)

    flat = pl.pallas_call(
        kernel,
        out_shape=out_shape,
        grid=(1,),
        in_specs=[full_spec(a.shape) for a in inputs],
        out_specs=full_spec(out_shape.shape),
        compiler_params=pltpu.CompilerParams(
            dimension_semantics=("arbitrary",),
            vmem_limit_bytes=32 * 1024 * 1024,   # explicit scoped-VMEM budget
        ),
    )(*inputs)

    # Edge layout glue only: (phase p=py*2+px, rows (u, v, n), 128 lanes) ->
    # NCHW with oy = 2u+py, ox = 2v+px; drop the lane and batch padding.
    img = flat[:, :, :out_channels].reshape(
        2, 2, h_last, h_last, nb, out_channels)
    img = jnp.transpose(img, (4, 5, 2, 0, 3, 1))   # (n, c, u, py, v, px)
    img = img.reshape(nb, out_channels, out_size, out_size)
    return img[:n_real]


# ----------------------------- pure-JAX reference ------------------------------

def _reference_forward(x, params, eps=1e-5, slope=0.2, matmul_dtype=None):
    """Plain-XLA ConvTranspose2d / BatchNorm / LeakyReLU / Tanh reference.
    matmul_dtype=jnp.bfloat16 reproduces the kernel's bf16 MXU operand rounding
    (accumulation stays f32)."""

    def rnd(a):
        if matmul_dtype is None:
            return a
        return a.astype(matmul_dtype).astype(jnp.float32)

    def conv_t(h, w, stride, pad, k=4):
        h, w = rnd(h), rnd(w)
        n, _, hh, ww = h.shape
        co = w.shape[1]
        oh = (hh - 1) * stride - 2 * pad + k
        ow = (ww - 1) * stride - 2 * pad + k
        y = jnp.zeros((n, co, oh + 2 * pad, ow + 2 * pad), jnp.float32)
        for ky in range(k):
            for kx in range(k):
                contrib = jnp.einsum("nihw,io->nohw", h, w[:, :, ky, kx],
                                     precision=jax.lax.Precision.HIGHEST)
                y = y.at[:, :, ky:ky + stride * hh:stride,
                         kx:kx + stride * ww:stride].add(contrib)
        return y[:, :, pad:pad + oh, pad:pad + ow]

    def bn_lrelu(y):
        mean = jnp.mean(y, axis=(0, 2, 3), keepdims=True)
        var = jnp.mean(jnp.square(y - mean), axis=(0, 2, 3), keepdims=True)
        yn = (y - mean) * jax.lax.rsqrt(var + eps)
        return jnp.where(yn > 0, yn, slope * yn)

    n = x.shape[0]
    h = conv_t(x.reshape(n, -1, 1, 1), params["w0"], 1, 0)
    h = bn_lrelu(h)
    for w in params["mid_ws"]:
        h = bn_lrelu(conv_t(h, w, 2, 1))
    h = conv_t(h, params["w_last"], 2, 1) + params["b_last"].reshape(1, -1, 1, 1)
    return jnp.tanh(h)


# ---------------------------- deterministic params -----------------------------

def init_params(key, encoding_dims, out_size, out_channels, step_channels):
    num_repeats = out_size.bit_length() - 4
    d = step_channels * (2 ** num_repeats)
    keys = jax.random.split(key, num_repeats + 3)

    def kaiming(k, shape):
        # nn.init.kaiming_normal_ (fan_in) on ConvTranspose2d weight
        # (Cin, Cout, kh, kw): fan_in = Cout * kh * kw.
        fan_in = shape[1] * shape[2] * shape[3]
        std = (2.0 / fan_in) ** 0.5
        return std * jax.random.normal(k, shape, jnp.float32)

    params = {"w0": kaiming(keys[0], (encoding_dims, d, 4, 4)), "mid_ws": []}
    for i in range(num_repeats):
        params["mid_ws"].append(kaiming(keys[i + 1], (d, d // 2, 4, 4)))
        d //= 2
    params["w_last"] = kaiming(keys[-2], (d, out_channels, 4, 4))
    bound = 1.0 / ((d * 16) ** 0.5)   # PyTorch default bias init range
    params["b_last"] = jax.random.uniform(
        keys[-1], (out_channels,), jnp.float32, -bound, bound)
    return params


# ------------------------------------ main --------------------------------------

if __name__ == "__main__":
    ENC, OUT_SIZE, OUT_CH, STEP = 32, 16, 3, 8   # small DCGAN: 1x1 -> 4 -> 8 -> 16
    BATCH = 2

    key = jax.random.PRNGKey(0)
    kp, kx = jax.random.split(key)
    params = init_params(kp, ENC, OUT_SIZE, OUT_CH, STEP)
    x = jax.random.normal(kx, (BATCH, ENC), jnp.float32)

    fwd = jax.jit(functools.partial(
        dcgan_generator_forward,
        out_size=OUT_SIZE, out_channels=OUT_CH, step_channels=STEP))

    y = jax.block_until_ready(fwd(x, params))

    assert y.shape == (BATCH, OUT_CH, OUT_SIZE, OUT_SIZE), y.shape
    assert bool(jnp.all(jnp.isfinite(y)))
    assert bool(jnp.all(jnp.abs(y) <= 1.0))      # tanh output range

    # Structural check: reference with the same bf16 operand rounding -> tight.
    y_bf16_ref = _reference_forward(x, params, matmul_dtype=jnp.bfloat16)
    err_s = float(jnp.max(jnp.abs(y - y_bf16_ref)))
    assert err_s < 1e-2, f"mismatch vs bf16-operand reference: {err_s}"

    # Overall fidelity vs the pure-f32 reference (bf16 MXU rounding headroom).
    y_f32_ref = _reference_forward(x, params)
    err_f = float(jnp.max(jnp.abs(y - y_f32_ref)))
    assert err_f < 3e-2, f"mismatch vs f32 reference: {err_f}"

    print("KERNEL_OK")
</pallas_src>

<mosaic_0001>
module attributes {stable_mosaic.version = 11 : i64} {
  func.func @_dcgan_kernel(%arg0: i32, %arg1: memref<8x32xf32, #tpu.memory_space<vmem>>, %arg2: memref<32x256xbf16, #tpu.memory_space<vmem>>, %arg3: memref<4x64x8xbf16, #tpu.memory_space<vmem>>, %arg4: memref<4x32x128xbf16, #tpu.memory_space<vmem>>, %arg5: memref<1x128xf32, #tpu.memory_space<vmem>>, %arg6: memref<4x512x128xf32, #tpu.memory_space<vmem>>) attributes {dimension_semantics = [#tpu.dimension_semantics<arbitrary>], iteration_bounds = array<i64: 1>, scalar_prefetch = 0 : i64, scratch_operands = 0 : i64, tpu.core_type = #tpu.core_type<tc>, window_params = [{pipeline_mode = #tpu.pipeline_mode<synchronous>, transform_indices = @transform_0, window_bounds = array<i64: 8, 32>}, {pipeline_mode = #tpu.pipeline_mode<synchronous>, transform_indices = @transform_1, window_bounds = array<i64: 32, 256>}, {pipeline_mode = #tpu.pipeline_mode<synchronous>, transform_indices = @transform_2, window_bounds = array<i64: 4, 64, 8>}, {pipeline_mode = #tpu.pipeline_mode<synchronous>, transform_indices = @transform_3, window_bounds = array<i64: 4, 32, 128>}, {pipeline_mode = #tpu.pipeline_mode<synchronous>, transform_indices = @transform_4, window_bounds = array<i64: 1, 128>}, {pipeline_mode = #tpu.pipeline_mode<synchronous>, transform_indices = @transform_5, window_bounds = array<i64: 4, 512, 128>}]} {
    %c0 = arith.constant 0 : index
    %c0_0 = arith.constant 0 : index
    %0 = vector.load %arg1[%c0, %c0_0] : memref<8x32xf32, #tpu.memory_space<vmem>>, vector<8x32xf32>
    %1 = arith.truncf %0 : vector<8x32xf32> to vector<8x32xbf16>
    %c0_1 = arith.constant 0 : index
    %c0_2 = arith.constant 0 : index
    %2 = vector.load %arg2[%c0_1, %c0_2] : memref<32x256xbf16, #tpu.memory_space<vmem>>, vector<32x256xbf16>
    %cst = arith.constant dense<0.000000e+00> : vector<8x256xf32>
    %3 = tpu.matmul %1, %2, %cst {dimension_numbers = #tpu.dot_dimension_numbers<[1], [0], [0], [1], [0, 0, 1, 1], [], []>} : vector<8x32xbf16>, vector<32x256xbf16>, vector<8x256xf32> -> vector<8x256xf32>
    %4 = vector.extract_strided_slice %3 {offsets = [0, 0], sizes = [8, 16], strides = [1, 1]} : vector<8x256xf32> to vector<8x16xf32>
    %5 = vector.extract_strided_slice %3 {offsets = [0, 16], sizes = [8, 16], strides = [1, 1]} : vector<8x256xf32> to vector<8x16xf32>
    %6 = vector.extract_strided_slice %3 {offsets = [0, 32], sizes = [8, 16], strides = [1, 1]} : vector<8x256xf32> to vector<8x16xf32>
    %7 = vector.extract_strided_slice %3 {offsets = [0, 48], sizes = [8, 16], strides = [1, 1]} : vector<8x256xf32> to vector<8x16xf32>
    %8 = vector.extract_strided_slice %3 {offsets = [0, 64], sizes = [8, 16], strides = [1, 1]} : vector<8x256xf32> to vector<8x16xf32>
    %9 = vector.extract_strided_slice %3 {offsets = [0, 80], sizes = [8, 16], strides = [1, 1]} : vector<8x256xf32> to vector<8x16xf32>
    %10 = vector.extract_strided_slice %3 {offsets = [0, 96], sizes = [8, 16], strides = [1, 1]} : vector<8x256xf32> to vector<8x16xf32>
    %11 = vector.extract_strided_slice %3 {offsets = [0, 112], sizes = [8, 16], strides = [1, 1]} : vector<8x256xf32> to vector<8x16xf32>
    %12 = vector.extract_strided_slice %3 {offsets = [0, 128], sizes = [8, 16], strides = [1, 1]} : vector<8x256xf32> to vector<8x16xf32>
    %13 = vector.extract_strided_slice %3 {offsets = [0, 144], sizes = [8, 16], strides = [1, 1]} : vector<8x256xf32> to vector<8x16xf32>
    %14 = vector.extract_strided_slice %3 {offsets = [0, 160], sizes = [8, 16], strides = [1, 1]} : vector<8x256xf32> to vector<8x16xf32>
    %15 = vector.extract_strided_slice %3 {offsets = [0, 176], sizes = [8, 16], strides = [1, 1]} : vector<8x256xf32> to vector<8x16xf32>
    %16 = vector.extract_strided_slice %3 {offsets = [0, 192], sizes = [8, 16], strides = [1, 1]} : vector<8x256xf32> to vector<8x16xf32>
    %17 = vector.extract_strided_slice %3 {offsets = [0, 208], sizes = [8, 16], strides = [1, 1]} : vector<8x256xf32> to vector<8x16xf32>
    %18 = vector.extract_strided_slice %3 {offsets = [0, 224], sizes = [8, 16], strides = [1, 1]} : vector<8x256xf32> to vector<8x16xf32>
    %19 = vector.extract_strided_slice %3 {offsets = [0, 240], sizes = [8, 16], strides = [1, 1]} : vector<8x256xf32> to vector<8x16xf32>
    %20 = tpu.concatenate %4, %5, %6, %7, %8, %9, %10, %11, %12, %13, %14, %15, %16, %17, %18, %19 in 0 : vector<8x16xf32>, vector<8x16xf32>, vector<8x16xf32>, vector<8x16xf32>, vector<8x16xf32>, vector<8x16xf32>, vector<8x16xf32>, vector<8x16xf32>, vector<8x16xf32>, vector<8x16xf32>, vector<8x16xf32>, vector<8x16xf32>, vector<8x16xf32>, vector<8x16xf32>, vector<8x16xf32>, vector<8x16xf32> -> vector<128x16xf32>
    %21 = tpu.iota {dimensions = array<i32: 0>} : vector<128x1xi32>
    %c8_i32 = arith.constant 8 : i32
    %c0_i32 = arith.constant 0 : i32
    %22 = arith.cmpi eq, %c8_i32, %c0_i32 : i32
    %c1_i32 = arith.constant 1 : i32
    %23 = arith.select %22, %c1_i32, %c8_i32 : i32
    %24 = vector.broadcast %23 : i32 to vector<128x1xi32>
    %25 = arith.remsi %21, %24 : vector<128x1xi32>
    %c0_i32_3 = arith.constant 0 : i32
    %26 = vector.broadcast %c0_i32_3 : i32 to vector<128x1xi32>
    %27 = arith.cmpi ne, %25, %26 : vector<128x1xi32>
    %c0_i32_4 = arith.constant 0 : i32
    %28 = vector.broadcast %c0_i32_4 : i32 to vector<128x1xi32>
    %29 = arith.cmpi slt, %25, %28 : vector<128x1xi32>
    %c0_i32_5 = arith.constant 0 : i32
    %30 = arith.cmpi slt, %23, %c0_i32_5 : i32
    %31 = vector.broadcast %30 : i1 to vector<128x1xi1>
    %32 = vector.broadcast %31 : vector<128x1xi1> to vector<128x1xi1>
    %33 = arith.xori %29, %32 : vector<128x1xi1>
    %34 = arith.andi %33, %27 : vector<128x1xi1>
    %35 = vector.broadcast %23 : i32 to vector<128x1xi32>
    %36 = arith.addi %25, %35 : vector<128x1xi32>
    %37 = arith.select %34, %36, %25 : vector<128x1xi1>, vector<128x1xi32>
    %c2_i32 = arith.constant 2 : i32
    %38 = vector.broadcast %c2_i32 : i32 to vector<128x1xi32>
    %39 = arith.cmpi slt, %37, %38 : vector<128x1xi32>
    %40 = arith.extui %39 : vector<128x1xi1> to vector<128x1xi32>
    %41 = arith.sitofp %40 : vector<128x1xi32> to vector<128x1xf32>
    %42 = vector.broadcast %41 : vector<128x1xf32> to vector<128x16xf32>
    %43 = arith.mulf %20, %42 : vector<128x16xf32>
    %cst_6 = arith.constant dense<0.000000e+00> : vector<16xf32>
    %44 = vector.multi_reduction <add>, %43, %cst_6 [0] : vector<128x16xf32> to vector<16xf32>
    %45 = vector.shape_cast %44 : vector<16xf32> to vector<1x16xf32>
    %cst_7 = arith.constant 3.125000e-02 : f32
    %46 = vector.broadcast %cst_7 : f32 to vector<1x16xf32>
    %47 = arith.mulf %45, %46 : vector<1x16xf32>
    %48 = vector.broadcast %47 : vector<1x16xf32> to vector<128x16xf32>
    %49 = arith.subf %20, %48 : vector<128x16xf32>
    %50 = arith.mulf %49, %49 : vector<128x16xf32>
    %51 = vector.broadcast %41 : vector<128x1xf32> to vector<128x16xf32>
    %52 = arith.mulf %50, %51 : vector<128x16xf32>
    %cst_8 = arith.constant dense<0.000000e+00> : vector<16xf32>
    %53 = vector.multi_reduction <add>, %52, %cst_8 [0] : vector<128x16xf32> to vector<16xf32>
    %54 = vector.shape_cast %53 : vector<16xf32> to vector<1x16xf32>
    %cst_9 = arith.constant 3.125000e-02 : f32
    %55 = vector.broadcast %cst_9 : f32 to vector<1x16xf32>
    %56 = arith.mulf %54, %55 : vector<1x16xf32>
    %cst_10 = arith.constant 9.99999974E-6 : f32
    %57 = vector.broadcast %cst_10 : f32 to vector<1x16xf32>
    %58 = arith.addf %56, %57 : vector<1x16xf32>
    %59 = math.rsqrt %58 : vector<1x16xf32>
    %60 = vector.broadcast %59 : vector<1x16xf32> to vector<128x16xf32>
    %61 = arith.mulf %49, %60 : vector<128x16xf32>
    %cst_11 = arith.constant 2.000000e-01 : f32
    %62 = vector.broadcast %cst_11 : f32 to vector<128x16xf32>
    %63 = arith.mulf %62, %61 : vector<128x16xf32>
    %64 = arith.maximumf %61, %63 : vector<128x16xf32>
    %65 = vector.shape_cast %64 : vector<128x16xf32> to vector<4x32x16xf32>
    %cst_12 = arith.constant 0.000000e+00 : f32
    %66 = vector.broadcast %cst_12 : f32 to vector<4x8x16xf32>
    %67 = tpu.concatenate %66, %65, %66 in 1 : vector<4x8x16xf32>, vector<4x32x16xf32>, vector<4x8x16xf32> -> vector<4x48x16xf32>
    %cst_13 = arith.constant 0.000000e+00 : f32
    %68 = vector.broadcast %cst_13 : f32 to vector<1x48x16xf32>
    %69 = tpu.concatenate %68, %67, %68 in 0 : vector<1x48x16xf32>, vector<4x48x16xf32>, vector<1x48x16xf32> -> vector<6x48x16xf32>
    %70 = vector.extract_strided_slice %69 {offsets = [1, 8, 0], sizes = [4, 32, 16], strides = [1, 1, 1]} : vector<6x48x16xf32> to vector<4x32x16xf32>
    %71 = vector.shape_cast %70 : vector<4x32x16xf32> to vector<128x16xf32>
    %72 = vector.extract_strided_slice %69 {offsets = [1, 0, 0], sizes = [4, 32, 16], strides = [1, 1, 1]} : vector<6x48x16xf32> to vector<4x32x16xf32>
    %73 = vector.shape_cast %72 : vector<4x32x16xf32> to vector<128x16xf32>
    %74 = vector.extract_strided_slice %69 {offsets = [0, 8, 0], sizes = [4, 32, 16], strides = [1, 1, 1]} : vector<6x48x16xf32> to vector<4x32x16xf32>
    %75 = vector.shape_cast %74 : vector<4x32x16xf32> to vector<128x16xf32>
    %76 = vector.extract_strided_slice %69 {offsets = [0, 0, 0], sizes = [4, 32, 16], strides = [1, 1, 1]} : vector<6x48x16xf32> to vector<4x32x16xf32>
    %77 = vector.shape_cast %76 : vector<4x32x16xf32> to vector<128x16xf32>
    %78 = tpu.concatenate %71, %73, %75, %77 in 1 : vector<128x16xf32>, vector<128x16xf32>, vector<128x16xf32>, vector<128x16xf32> -> vector<128x64xf32>
    %79 = arith.truncf %78 : vector<128x64xf32> to vector<128x64xbf16>
    %c0_14 = arith.constant 0 : index
    %c0_15 = arith.constant 0 : index
    %c0_16 = arith.constant 0 : index
    %80 = vector.load %arg3[%c0_14, %c0_15, %c0_16] : memref<4x64x8xbf16, #tpu.memory_space<vmem>>, vector<1x64x8xbf16>
    %81 = vector.shape_cast %80 : vector<1x64x8xbf16> to vector<64x8xbf16>
    %cst_17 = arith.constant dense<0.000000e+00> : vector<128x8xf32>
    %82 = tpu.matmul %79, %81, %cst_17 {dimension_numbers = #tpu.dot_dimension_numbers<[1], [0], [0], [1], [0, 0, 1, 1], [], []>} : vector<128x64xbf16>, vector<64x8xbf16>, vector<128x8xf32> -> vector<128x8xf32>
    %83 = vector.extract_strided_slice %69 {offsets = [1, 16, 0], sizes = [4, 32, 16], strides = [1, 1, 1]} : vector<6x48x16xf32> to vector<4x32x16xf32>
    %84 = vector.shape_cast %83 : vector<4x32x16xf32> to vector<128x16xf32>
    %85 = vector.extract_strided_slice %69 {offsets = [1, 8, 0], sizes = [4, 32, 16], strides = [1, 1, 1]} : vector<6x48x16xf32> to vector<4x32x16xf32>
    %86 = vector.shape_cast %85 : vector<4x32x16xf32> to vector<128x16xf32>
    %87 = vector.extract_strided_slice %69 {offsets = [0, 16, 0], sizes = [4, 32, 16], strides = [1, 1, 1]} : vector<6x48x16xf32> to vector<4x32x16xf32>
    %88 = vector.shape_cast %87 : vector<4x32x16xf32> to vector<128x16xf32>
    %89 = vector.extract_strided_slice %69 {offsets = [0, 8, 0], sizes = [4, 32, 16], strides = [1, 1, 1]} : vector<6x48x16xf32> to vector<4x32x16xf32>
    %90 = vector.shape_cast %89 : vector<4x32x16xf32> to vector<128x16xf32>
    %91 = tpu.concatenate %84, %86, %88, %90 in 1 : vector<128x16xf32>, vector<128x16xf32>, vector<128x16xf32>, vector<128x16xf32> -> vector<128x64xf32>
    %92 = arith.truncf %91 : vector<128x64xf32> to vector<128x64xbf16>
    %c1 = arith.constant 1 : index
    %c0_18 = arith.constant 0 : index
    %c0_19 = arith.constant 0 : index
    %93 = vector.load %arg3[%c1, %c0_18, %c0_19] : memref<4x64x8xbf16, #tpu.memory_space<vmem>>, vector<1x64x8xbf16>
    %94 = vector.shape_cast %93 : vector<1x64x8xbf16> to vector<64x8xbf16>
    %cst_20 = arith.constant dense<0.000000e+00> : vector<128x8xf32>
    %95 = tpu.matmul %92, %94, %cst_20 {dimension_numbers = #tpu.dot_dimension_numbers<[1], [0], [0], [1], [0, 0, 1, 1], [], []>} : vector<128x64xbf16>, vector<64x8xbf16>, vector<128x8xf32> -> vector<128x8xf32>
    %96 = vector.extract_strided_slice %69 {offsets = [2, 8, 0], sizes = [4, 32, 16], strides = [1, 1, 1]} : vector<6x48x16xf32> to vector<4x32x16xf32>
    %97 = vector.shape_cast %96 : vector<4x32x16xf32> to vector<128x16xf32>
    %98 = vector.extract_strided_slice %69 {offsets = [2, 0, 0], sizes = [4, 32, 16], strides = [1, 1, 1]} : vector<6x48x16xf32> to vector<4x32x16xf32>
    %99 = vector.shape_cast %98 : vector<4x32x16xf32> to vector<128x16xf32>
    %100 = vector.extract_strided_slice %69 {offsets = [1, 8, 0], sizes = [4, 32, 16], strides = [1, 1, 1]} : vector<6x48x16xf32> to vector<4x32x16xf32>
    %101 = vector.shape_cast %100 : vector<4x32x16xf32> to vector<128x16xf32>
    %102 = vector.extract_strided_slice %69 {offsets = [1, 0, 0], sizes = [4, 32, 16], strides = [1, 1, 1]} : vector<6x48x16xf32> to vector<4x32x16xf32>
    %103 = vector.shape_cast %102 : vector<4x32x16xf32> to vector<128x16xf32>
    %104 = tpu.concatenate %97, %99, %101, %103 in 1 : vector<128x16xf32>, vector<128x16xf32>, vector<128x16xf32>, vector<128x16xf32> -> vector<128x64xf32>
    %105 = arith.truncf %104 : vector<128x64xf32> to vector<128x64xbf16>
    %c2 = arith.constant 2 : index
    %c0_21 = arith.constant 0 : index
    %c0_22 = arith.constant 0 : index
    %106 = vector.load %arg3[%c2, %c0_21, %c0_22] : memref<4x64x8xbf16, #tpu.memory_space<vmem>>, vector<1x64x8xbf16>
    %107 = vector.shape_cast %106 : vector<1x64x8xbf16> to vector<64x8xbf16>
    %cst_23 = arith.constant dense<0.000000e+00> : vector<128x8xf32>
    %108 = tpu.matmul %105, %107, %cst_23 {dimension_numbers = #tpu.dot_dimension_numbers<[1], [0], [0], [1], [0, 0, 1, 1], [], []>} : vector<128x64xbf16>, vector<64x8xbf16>, vector<128x8xf32> -> vector<128x8xf32>
    %109 = vector.extract_strided_slice %69 {offsets = [2, 16, 0], sizes = [4, 32, 16], strides = [1, 1, 1]} : vector<6x48x16xf32> to vector<4x32x16xf32>
    %110 = vector.shape_cast %109 : vector<4x32x16xf32> to vector<128x16xf32>
    %111 = vector.extract_strided_slice %69 {offsets = [2, 8, 0], sizes = [4, 32, 16], strides = [1, 1, 1]} : vector<6x48x16xf32> to vector<4x32x16xf32>
    %112 = vector.shape_cast %111 : vector<4x32x16xf32> to vector<128x16xf32>
    %113 = vector.extract_strided_slice %69 {offsets = [1, 16, 0], sizes = [4, 32, 16], strides = [1, 1, 1]} : vector<6x48x16xf32> to vector<4x32x16xf32>
    %114 = vector.shape_cast %113 : vector<4x32x16xf32> to vector<128x16xf32>
    %115 = vector.extract_strided_slice %69 {offsets = [1, 8, 0], sizes = [4, 32, 16], strides = [1, 1, 1]} : vector<6x48x16xf32> to vector<4x32x16xf32>
    %116 = vector.shape_cast %115 : vector<4x32x16xf32> to vector<128x16xf32>
    %117 = tpu.concatenate %110, %112, %114, %116 in 1 : vector<128x16xf32>, vector<128x16xf32>, vector<128x16xf32>, vector<128x16xf32> -> vector<128x64xf32>
    %118 = arith.truncf %117 : vector<128x64xf32> to vector<128x64xbf16>
    %c3 = arith.constant 3 : index
    %c0_24 = arith.constant 0 : index
    %c0_25 = arith.constant 0 : index
    %119 = vector.load %arg3[%c3, %c0_24, %c0_25] : memref<4x64x8xbf16, #tpu.memory_space<vmem>>, vector<1x64x8xbf16>
    %120 = vector.shape_cast %119 : vector<1x64x8xbf16> to vector<64x8xbf16>
    %cst_26 = arith.constant dense<0.000000e+00> : vector<128x8xf32>
    %121 = tpu.matmul %118, %120, %cst_26 {dimension_numbers = #tpu.dot_dimension_numbers<[1], [0], [0], [1], [0, 0, 1, 1], [], []>} : vector<128x64xbf16>, vector<64x8xbf16>, vector<128x8xf32> -> vector<128x8xf32>
    %122 = vector.shape_cast %82 : vector<128x8xf32> to vector<16x8x8xf32>
    %123 = vector.shape_cast %95 : vector<128x8xf32> to vector<16x8x8xf32>
    %124 = tpu.concatenate %122, %123 in 1 : vector<16x8x8xf32>, vector<16x8x8xf32> -> vector<16x16x8xf32>
    %125 = vector.shape_cast %124 : vector<16x16x8xf32> to vector<256x8xf32>
    %126 = vector.shape_cast %108 : vector<128x8xf32> to vector<16x8x8xf32>
    %127 = vector.shape_cast %121 : vector<128x8xf32> to vector<16x8x8xf32>
    %128 = tpu.concatenate %126, %127 in 1 : vector<16x8x8xf32>, vector<16x8x8xf32> -> vector<16x16x8xf32>
    %129 = vector.shape_cast %128 : vector<16x16x8xf32> to vector<256x8xf32>
    %130 = vector.shape_cast %125 : vector<256x8xf32> to vector<4x64x8xf32>
    %131 = vector.shape_cast %129 : vector<256x8xf32> to vector<4x64x8xf32>
    %132 = tpu.concatenate %130, %131 in 1 : vector<4x64x8xf32>, vector<4x64x8xf32> -> vector<4x128x8xf32>
    %133 = vector.shape_cast %132 : vector<4x128x8xf32> to vector<512x8xf32>
    %134 = tpu.iota {dimensions = array<i32: 0>} : vector<512x1xi32>
    %c8_i32_27 = arith.constant 8 : i32
    %c0_i32_28 = arith.constant 0 : i32
    %135 = arith.cmpi eq, %c8_i32_27, %c0_i32_28 : i32
    %c1_i32_29 = arith.constant 1 : i32
    %136 = arith.select %135, %c1_i32_29, %c8_i32_27 : i32
    %137 = vector.broadcast %136 : i32 to vector<512x1xi32>
    %138 = arith.remsi %134, %137 : vector<512x1xi32>
    %c0_i32_30 = arith.constant 0 : i32
    %139 = vector.broadcast %c0_i32_30 : i32 to vector<512x1xi32>
    %140 = arith.cmpi ne, %138, %139 : vector<512x1xi32>
    %c0_i32_31 = arith.constant 0 : i32
    %141 = vector.broadcast %c0_i32_31 : i32 to vector<512x1xi32>
    %142 = arith.cmpi slt, %138, %141 : vector<512x1xi32>
    %c0_i32_32 = arith.constant 0 : i32
    %143 = arith.cmpi slt, %136, %c0_i32_32 : i32
    %144 = vector.broadcast %143 : i1 to vector<512x1xi1>
    %145 = vector.broadcast %144 : vector<512x1xi1> to vector<512x1xi1>
    %146 = arith.xori %142, %145 : vector<512x1xi1>
    %147 = arith.andi %146, %140 : vector<512x1xi1>
    %148 = vector.broadcast %136 : i32 to vector<512x1xi32>
    %149 = arith.addi %138, %148 : vector<512x1xi32>
    %150 = arith.select %147, %149, %138 : vector<512x1xi1>, vector<512x1xi32>
    %c2_i32_33 = arith.constant 2 : i32
    %151 = vector.broadcast %c2_i32_33 : i32 to vector<512x1xi32>
    %152 = arith.cmpi slt, %150, %151 : vector<512x1xi32>
    %153 = arith.extui %152 : vector<512x1xi1> to vector<512x1xi32>
    %154 = arith.sitofp %153 : vector<512x1xi32> to vector<512x1xf32>
    %155 = vector.broadcast %154 : vector<512x1xf32> to vector<512x8xf32>
    %156 = arith.mulf %133, %155 : vector<512x8xf32>
    %cst_34 = arith.constant dense<0.000000e+00> : vector<8xf32>
    %157 = vector.multi_reduction <add>, %156, %cst_34 [0] : vector<512x8xf32> to vector<8xf32>
    %158 = vector.shape_cast %157 : vector<8xf32> to vector<1x8xf32>
    %cst_35 = arith.constant 7.812500e-03 : f32
    %159 = vector.broadcast %cst_35 : f32 to vector<1x8xf32>
    %160 = arith.mulf %158, %159 : vector<1x8xf32>
    %161 = vector.broadcast %160 : vector<1x8xf32> to vector<512x8xf32>
    %162 = arith.subf %133, %161 : vector<512x8xf32>
    %163 = arith.mulf %162, %162 : vector<512x8xf32>
    %164 = vector.broadcast %154 : vector<512x1xf32> to vector<512x8xf32>
    %165 = arith.mulf %163, %164 : vector<512x8xf32>
    %cst_36 = arith.constant dense<0.000000e+00> : vector<8xf32>
    %166 = vector.multi_reduction <add>, %165, %cst_36 [0] : vector<512x8xf32> to vector<8xf32>
    %167 = vector.shape_cast %166 : vector<8xf32> to vector<1x8xf32>
    %cst_37 = arith.constant 7.812500e-03 : f32
    %168 = vector.broadcast %cst_37 : f32 to vector<1x8xf32>
    %169 = arith.mulf %167, %168 : vector<1x8xf32>
    %cst_38 = arith.constant 9.99999974E-6 : f32
    %170 = vector.broadcast %cst_38 : f32 to vector<1x8xf32>
    %171 = arith.addf %169, %170 : vector<1x8xf32>
    %172 = math.rsqrt %171 : vector<1x8xf32>
    %173 = vector.broadcast %172 : vector<1x8xf32> to vector<512x8xf32>
    %174 = arith.mulf %162, %173 : vector<512x8xf32>
    %cst_39 = arith.constant 2.000000e-01 : f32
    %175 = vector.broadcast %cst_39 : f32 to vector<512x8xf32>
    %176 = arith.mulf %175, %174 : vector<512x8xf32>
    %177 = arith.maximumf %174, %176 : vector<512x8xf32>
    %178 = vector.shape_cast %177 : vector<512x8xf32> to vector<8x64x8xf32>
    %cst_40 = arith.constant 0.000000e+00 : f32
    %179 = vector.broadcast %cst_40 : f32 to vector<8x8x8xf32>
    %180 = tpu.concatenate %179, %178, %179 in 1 : vector<8x8x8xf32>, vector<8x64x8xf32>, vector<8x8x8xf32> -> vector<8x80x8xf32>
    %cst_41 = arith.constant 0.000000e+00 : f32
    %181 = vector.broadcast %cst_41 : f32 to vector<1x80x8xf32>
    %182 = tpu.concatenate %181, %180, %181 in 0 : vector<1x80x8xf32>, vector<8x80x8xf32>, vector<1x80x8xf32> -> vector<10x80x8xf32>
    %183 = vector.extract_strided_slice %182 {offsets = [1, 8, 0], sizes = [8, 64, 8], strides = [1, 1, 1]} : vector<10x80x8xf32> to vector<8x64x8xf32>
    %184 = vector.shape_cast %183 : vector<8x64x8xf32> to vector<512x8xf32>
    %185 = vector.extract_strided_slice %182 {offsets = [1, 0, 0], sizes = [8, 64, 8], strides = [1, 1, 1]} : vector<10x80x8xf32> to vector<8x64x8xf32>
    %186 = vector.shape_cast %185 : vector<8x64x8xf32> to vector<512x8xf32>
    %187 = vector.extract_strided_slice %182 {offsets = [0, 8, 0], sizes = [8, 64, 8], strides = [1, 1, 1]} : vector<10x80x8xf32> to vector<8x64x8xf32>
    %188 = vector.shape_cast %187 : vector<8x64x8xf32> to vector<512x8xf32>
    %189 = vector.extract_strided_slice %182 {offsets = [0, 0, 0], sizes = [8, 64, 8], strides = [1, 1, 1]} : vector<10x80x8xf32> to vector<8x64x8xf32>
    %190 = vector.shape_cast %189 : vector<8x64x8xf32> to vector<512x8xf32>
    %191 = tpu.concatenate %184, %186, %188, %190 in 1 : vector<512x8xf32>, vector<512x8xf32>, vector<512x8xf32>, vector<512x8xf32> -> vector<512x32xf32>
    %192 = arith.truncf %191 : vector<512x32xf32> to vector<512x32xbf16>
    %c0_42 = arith.constant 0 : index
    %c0_43 = arith.constant 0 : index
    %c0_44 = arith.constant 0 : index
    %193 = vector.load %arg4[%c0_42, %c0_43, %c0_44] : memref<4x32x128xbf16, #tpu.memory_space<vmem>>, vector<1x32x128xbf16>
    %194 = vector.shape_cast %193 : vector<1x32x128xbf16> to vector<32x128xbf16>
    %cst_45 = arith.constant dense<0.000000e+00> : vector<512x128xf32>
    %195 = tpu.matmul %192, %194, %cst_45 {dimension_numbers = #tpu.dot_dimension_numbers<[1], [0], [0], [1], [0, 0, 1, 1], [], []>} : vector<512x32xbf16>, vector<32x128xbf16>, vector<512x128xf32> -> vector<512x128xf32>
    %196 = vector.extract_strided_slice %182 {offsets = [1, 16, 0], sizes = [8, 64, 8], strides = [1, 1, 1]} : vector<10x80x8xf32> to vector<8x64x8xf32>
    %197 = vector.shape_cast %196 : vector<8x64x8xf32> to vector<512x8xf32>
    %198 = vector.extract_strided_slice %182 {offsets = [1, 8, 0], sizes = [8, 64, 8], strides = [1, 1, 1]} : vector<10x80x8xf32> to vector<8x64x8xf32>
    %199 = vector.shape_cast %198 : vector<8x64x8xf32> to vector<512x8xf32>
    %200 = vector.extract_strided_slice %182 {offsets = [0, 16, 0], sizes = [8, 64, 8], strides = [1, 1, 1]} : vector<10x80x8xf32> to vector<8x64x8xf32>
    %201 = vector.shape_cast %200 : vector<8x64x8xf32> to vector<512x8xf32>
    %202 = vector.extract_strided_slice %182 {offsets = [0, 8, 0], sizes = [8, 64, 8], strides = [1, 1, 1]} : vector<10x80x8xf32> to vector<8x64x8xf32>
    %203 = vector.shape_cast %202 : vector<8x64x8xf32> to vector<512x8xf32>
    %204 = tpu.concatenate %197, %199, %201, %203 in 1 : vector<512x8xf32>, vector<512x8xf32>, vector<512x8xf32>, vector<512x8xf32> -> vector<512x32xf32>
    %205 = arith.truncf %204 : vector<512x32xf32> to vector<512x32xbf16>
    %c1_46 = arith.constant 1 : index
    %c0_47 = arith.constant 0 : index
    %c0_48 = arith.constant 0 : index
    %206 = vector.load %arg4[%c1_46, %c0_47, %c0_48] : memref<4x32x128xbf16, #tpu.memory_space<vmem>>, vector<1x32x128xbf16>
    %207 = vector.shape_cast %206 : vector<1x32x128xbf16> to vector<32x128xbf16>
    %cst_49 = arith.constant dense<0.000000e+00> : vector<512x128xf32>
    %208 = tpu.matmul %205, %207, %cst_49 {dimension_numbers = #tpu.dot_dimension_numbers<[1], [0], [0], [1], [0, 0, 1, 1], [], []>} : vector<512x32xbf16>, vector<32x128xbf16>, vector<512x128xf32> -> vector<512x128xf32>
    %209 = vector.extract_strided_slice %182 {offsets = [2, 8, 0], sizes = [8, 64, 8], strides = [1, 1, 1]} : vector<10x80x8xf32> to vector<8x64x8xf32>
    %210 = vector.shape_cast %209 : vector<8x64x8xf32> to vector<512x8xf32>
    %211 = vector.extract_strided_slice %182 {offsets = [2, 0, 0], sizes = [8, 64, 8], strides = [1, 1, 1]} : vector<10x80x8xf32> to vector<8x64x8xf32>
    %212 = vector.shape_cast %211 : vector<8x64x8xf32> to vector<512x8xf32>
    %213 = vector.extract_strided_slice %182 {offsets = [1, 8, 0], sizes = [8, 64, 8], strides = [1, 1, 1]} : vector<10x80x8xf32> to vector<8x64x8xf32>
    %214 = vector.shape_cast %213 : vector<8x64x8xf32> to vector<512x8xf32>
    %215 = vector.extract_strided_slice %182 {offsets = [1, 0, 0], sizes = [8, 64, 8], strides = [1, 1, 1]} : vector<10x80x8xf32> to vector<8x64x8xf32>
    %216 = vector.shape_cast %215 : vector<8x64x8xf32> to vector<512x8xf32>
    %217 = tpu.concatenate %210, %212, %214, %216 in 1 : vector<512x8xf32>, vector<512x8xf32>, vector<512x8xf32>, vector<512x8xf32> -> vector<512x32xf32>
    %218 = arith.truncf %217 : vector<512x32xf32> to vector<512x32xbf16>
    %c2_50 = arith.constant 2 : index
    %c0_51 = arith.constant 0 : index
    %c0_52 = arith.constant 0 : index
    %219 = vector.load %arg4[%c2_50, %c0_51, %c0_52] : memref<4x32x128xbf16, #tpu.memory_space<vmem>>, vector<1x32x128xbf16>
    %220 = vector.shape_cast %219 : vector<1x32x128xbf16> to vector<32x128xbf16>
    %cst_53 = arith.constant dense<0.000000e+00> : vector<512x128xf32>
    %221 = tpu.matmul %218, %220, %cst_53 {dimension_numbers = #tpu.dot_dimension_numbers<[1], [0], [0], [1], [0, 0, 1, 1], [], []>} : vector<512x32xbf16>, vector<32x128xbf16>, vector<512x128xf32> -> vector<512x128xf32>
    %222 = vector.extract_strided_slice %182 {offsets = [2, 16, 0], sizes = [8, 64, 8], strides = [1, 1, 1]} : vector<10x80x8xf32> to vector<8x64x8xf32>
    %223 = vector.shape_cast %222 : vector<8x64x8xf32> to vector<512x8xf32>
    %224 = vector.extract_strided_slice %182 {offsets = [2, 8, 0], sizes = [8, 64, 8], strides = [1, 1, 1]} : vector<10x80x8xf32> to vector<8x64x8xf32>
    %225 = vector.shape_cast %224 : vector<8x64x8xf32> to vector<512x8xf32>
    %226 = vector.extract_strided_slice %182 {offsets = [1, 16, 0], sizes = [8, 64, 8], strides = [1, 1, 1]} : vector<10x80x8xf32> to vector<8x64x8xf32>
    %227 = vector.shape_cast %226 : vector<8x64x8xf32> to vector<512x8xf32>
    %228 = vector.extract_strided_slice %182 {offsets = [1, 8, 0], sizes = [8, 64, 8], strides = [1, 1, 1]} : vector<10x80x8xf32> to vector<8x64x8xf32>
    %229 = vector.shape_cast %228 : vector<8x64x8xf32> to vector<512x8xf32>
    %230 = tpu.concatenate %223, %225, %227, %229 in 1 : vector<512x8xf32>, vector<512x8xf32>, vector<512x8xf32>, vector<512x8xf32> -> vector<512x32xf32>
    %231 = arith.truncf %230 : vector<512x32xf32> to vector<512x32xbf16>
    %c3_54 = arith.constant 3 : index
    %c0_55 = arith.constant 0 : index
    %c0_56 = arith.constant 0 : index
    %232 = vector.load %arg4[%c3_54, %c0_55, %c0_56] : memref<4x32x128xbf16, #tpu.memory_space<vmem>>, vector<1x32x128xbf16>
    %233 = vector.shape_cast %232 : vector<1x32x128xbf16> to vector<32x128xbf16>
    %cst_57 = arith.constant dense<0.000000e+00> : vector<512x128xf32>
    %234 = tpu.matmul %231, %233, %cst_57 {dimension_numbers = #tpu.dot_dimension_numbers<[1], [0], [0], [1], [0, 0, 1, 1], [], []>} : vector<512x32xbf16>, vector<32x128xbf16>, vector<512x128xf32> -> vector<512x128xf32>
    %c0_58 = arith.constant 0 : index
    %c0_59 = arith.constant 0 : index
    %235 = vector.load %arg5[%c0_58, %c0_59] : memref<1x128xf32, #tpu.memory_space<vmem>>, vector<1x128xf32>
    %236 = vector.broadcast %235 : vector<1x128xf32> to vector<512x128xf32>
    %237 = arith.addf %195, %236 : vector<512x128xf32>
    %238 = math.tanh %237 : vector<512x128xf32>
    %c0_60 = arith.constant 0 : index
    %c0_61 = arith.constant 0 : index
    %c0_62 = arith.constant 0 : index
    %239 = vector.load %arg6[%c0_60, %c0_61, %c0_62] : memref<4x512x128xf32, #tpu.memory_space<vmem>>, vector<1x512x128xf32>
    %240 = vector.shape_cast %239 : vector<1x512x128xf32> to vector<512x128xf32>
    %241 = vector.shape_cast %238 : vector<512x128xf32> to vector<1x512x128xf32>
    tpu.vector_store %arg6[%c0_60, %c0_61, %c0_62], %241 {strides = array<i32>} : memref<4x512x128xf32, #tpu.memory_space<vmem>>, vector<1x512x128xf32>,
    %242 = vector.broadcast %235 : vector<1x128xf32> to vector<512x128xf32>
    %243 = arith.addf %208, %242 : vector<512x128xf32>
    %244 = math.tanh %243 : vector<512x128xf32>
    %c1_63 = arith.constant 1 : index
    %c0_64 = arith.constant 0 : index
    %c0_65 = arith.constant 0 : index
    %245 = vector.load %arg6[%c1_63, %c0_64, %c0_65] : memref<4x512x128xf32, #tpu.memory_space<vmem>>, vector<1x512x128xf32>
    %246 = vector.shape_cast %245 : vector<1x512x128xf32> to vector<512x128xf32>
    %247 = vector.shape_cast %244 : vector<512x128xf32> to vector<1x512x128xf32>
    tpu.vector_store %arg6[%c1_63, %c0_64, %c0_65], %247 {strides = array<i32>} : memref<4x512x128xf32, #tpu.memory_space<vmem>>, vector<1x512x128xf32>,
    %248 = vector.broadcast %235 : vector<1x128xf32> to vector<512x128xf32>
    %249 = arith.addf %221, %248 : vector<512x128xf32>
    %250 = math.tanh %249 : vector<512x128xf32>
    %c2_66 = arith.constant 2 : index
    %c0_67 = arith.constant 0 : index
    %c0_68 = arith.constant 0 : index
    %251 = vector.load %arg6[%c2_66, %c0_67, %c0_68] : memref<4x512x128xf32, #tpu.memory_space<vmem>>, vector<1x512x128xf32>
    %252 = vector.shape_cast %251 : vector<1x512x128xf32> to vector<512x128xf32>
    %253 = vector.shape_cast %250 : vector<512x128xf32> to vector<1x512x128xf32>
    tpu.vector_store %arg6[%c2_66, %c0_67, %c0_68], %253 {strides = array<i32>} : memref<4x512x128xf32, #tpu.memory_space<vmem>>, vector<1x512x128xf32>,
    %254 = vector.broadcast %235 : vector<1x128xf32> to vector<512x128xf32>
    %255 = arith.addf %234, %254 : vector<512x128xf32>
    %256 = math.tanh %255 : vector<512x128xf32>
    %c3_69 = arith.constant 3 : index
    %c0_70 = arith.constant 0 : index
    %c0_71 = arith.constant 0 : index
    %257 = vector.load %arg6[%c3_69, %c0_70, %c0_71] : memref<4x512x128xf32, #tpu.memory_space<vmem>>, vector<1x512x128xf32>
    %258 = vector.shape_cast %257 : vector<1x512x128xf32> to vector<512x128xf32>
    %259 = vector.shape_cast %256 : vector<512x128xf32> to vector<1x512x128xf32>
    tpu.vector_store %arg6[%c3_69, %c0_70, %c0_71], %259 {strides = array<i32>} : memref<4x512x128xf32, #tpu.memory_space<vmem>>, vector<1x512x128xf32>,
    return
  }
  func.func @transform_0(%arg0: i32) -> (i32, i32) {
    %c0_i32 = arith.constant 0 : i32
    %c0_i32_0 = arith.constant 0 : i32
    %c0_i32_1 = arith.constant 0 : i32
    return %c0_i32, %c0_i32_0 : i32, i32
  }
  func.func @transform_1(%arg0: i32) -> (i32, i32) {
    %c0_i32 = arith.constant 0 : i32
    %c0_i32_0 = arith.constant 0 : i32
    %c0_i32_1 = arith.constant 0 : i32
    return %c0_i32, %c0_i32_0 : i32, i32
  }
  func.func @transform_2(%arg0: i32) -> (i32, i32, i32) {
    %c0_i32 = arith.constant 0 : i32
    %c0_i32_0 = arith.constant 0 : i32
    %c0_i32_1 = arith.constant 0 : i32
    %c0_i32_2 = arith.constant 0 : i32
    return %c0_i32, %c0_i32_0, %c0_i32_1 : i32, i32, i32
  }
  func.func @transform_3(%arg0: i32) -> (i32, i32, i32) {
    %c0_i32 = arith.constant 0 : i32
    %c0_i32_0 = arith.constant 0 : i32
    %c0_i32_1 = arith.constant 0 : i32
    %c0_i32_2 = arith.constant 0 : i32
    return %c0_i32, %c0_i32_0, %c0_i32_1 : i32, i32, i32
  }
  func.func @transform_4(%arg0: i32) -> (i32, i32) {
    %c0_i32 = arith.constant 0 : i32
    %c0_i32_0 = arith.constant 0 : i32
    %c0_i32_1 = arith.constant 0 : i32
    return %c0_i32, %c0_i32_0 : i32, i32
  }
  func.func @transform_5(%arg0: i32) -> (i32, i32, i32) {
    %c0_i32 = arith.constant 0 : i32
    %c0_i32_0 = arith.constant 0 : i32
    %c0_i32_1 = arith.constant 0 : i32
    %c0_i32_2 = arith.constant 0 : i32
    return %c0_i32, %c0_i32_0, %c0_i32_1 : i32, i32, i32
  }
}

</mosaic_0001>

<llo_original>
// kernel: dcgan_generator_forward.1
$region0: #{dcgan_generator_forward.1}
  #allocation0 [shape = 'u32[]', space=smem, size = 0x4, offset = 0x4, fixed_abs, tag = 'smem constant byte address 0x4 - core index']
  #allocation1 [shape = 'u32[144,128]{1,0:T(1,128)}', space=vmem, size = 0x12000, scoped, tag = 'internal scratch']
  %s0 = inlined_call_operand.vmem [shape: f32[8,32], index: 0, kind: input, shape index: {}]
  %s1 = inlined_call_operand.vmem [shape: bf16[32,256], index: 1, kind: input, shape index: {}]
  %s2 = inlined_call_operand.vmem [shape: bf16[4,64,8], index: 2, kind: input, shape index: {}]
  %s3 = inlined_call_operand.vmem [shape: bf16[4,32,128], index: 3, kind: input, shape index: {}]
  %s4 = inlined_call_operand.vmem [shape: f32[1,128], index: 4, kind: input, shape index: {}]
  %s5 = inlined_call_operand.vmem [shape: f32[4,512,128], index: 5, kind: output, shape index: {}]
  %s6 = sld [smem:[#allocation0]]
  $region30: #{dcgan_generator_forward.1} parent=0
    _
  %s8 = ssub.s32 1, %s6
  %s9 = scalar_select 0, %s8, %s6
  // Predicated region
  $region2: #{dcgan_generator_forward.1} parent=0 // pred_check
    _
  $region3: #{dcgan_generator_forward.1} parent=0 // pred_check_branch
    %11 = sbr.rel (0) target = $region5
  $region4: #{dcgan_generator_forward.1} parent=0 // pred_region
    _
  $region5: #{dcgan_generator_forward.1} parent=0 // pred_fallthru
    _
  // Predicated region
  $region6: #{dcgan_generator_forward.1} parent=0 // pred_check
    _
  $region7: #{dcgan_generator_forward.1} parent=0 // pred_check_branch
    %13 = sbr.rel (0) target = $region9
  $region8: #{dcgan_generator_forward.1} parent=0 // pred_region
    _
  $region9: #{dcgan_generator_forward.1} parent=0 // pred_fallthru
    _
  // Predicated region
  $region10: #{dcgan_generator_forward.1} parent=0 // pred_check
    _
  $region11: #{dcgan_generator_forward.1} parent=0 // pred_check_branch
    %15 = sbr.rel (0) target = $region13
  $region12: #{dcgan_generator_forward.1} parent=0 // pred_region
    _
  $region13: #{dcgan_generator_forward.1} parent=0 // pred_fallthru
    _
  // Predicated region
  $region14: #{dcgan_generator_forward.1} parent=0 // pred_check
    _
  $region15: #{dcgan_generator_forward.1} parent=0 // pred_check_branch
    %17 = sbr.rel (0) target = $region17
  $region16: #{dcgan_generator_forward.1} parent=0 // pred_region
    _
  $region17: #{dcgan_generator_forward.1} parent=0 // pred_fallthru
    _
  // Predicated region
  $region18: #{dcgan_generator_forward.1} parent=0 // pred_check
    _
  $region19: #{dcgan_generator_forward.1} parent=0 // pred_check_branch
    %19 = sbr.rel (0) target = $region21
  $region20: #{dcgan_generator_forward.1} parent=0 // pred_region
    _
  $region21: #{dcgan_generator_forward.1} parent=0 // pred_fallthru
    _
  %v21 = vld [vmem:[%s0] sm:$0xff]
  %v22 = vpack.c.bf16 %v21, %v21
  %v23 = vld [vmem:[%s1] sm:$0xff]
  %v24 = vld [vmem:[%s1 + $0x8] sm:$0xff]
  %v25 = vld [vmem:[%s1 + $0x10] sm:$0xff]
  %v26 = vld [vmem:[%s1 + $0x18] sm:$0xff]
  %v31 = vunpack.c.l.b16 %v23
  %v32 = vunpack.c.h.b16 %v23
  %v33 = vunpack.c.l.b16 %v24
  %v34 = vunpack.c.h.b16 %v24
  %v35 = vunpack.c.l.b16 %v25
  %v36 = vunpack.c.h.b16 %v25
  %v37 = vunpack.c.l.b16 %v26
  %v38 = vunpack.c.h.b16 %v26
  %v39 = vpack.c.b16 %v33, %v31
  %v40 = vpack.c.b16 %v34, %v32
  %v41 = vpack.c.b16 %v37, %v35
  %v42 = vpack.c.b16 %v38, %v36
  %vm47 = vcmask 261120
  %v49 = vsel %vm47, %v22, 0
  %51 = vmatprep.subr.bf16.mxu0 %v40
  %52 = vmatpush1.bf16.msra.mxu0 %v39
  %53 = vmatprep.subr.bf16.mxu0 %v42
  %54 = vmatpush1.bf16.msra.mxu0 %v41
  %55 = vmatprep.subr.bf16.mxu0 0
  %56 = vmatpush1.bf16.msra.mxu0 0
  %57 = vmatprep.subr.bf16.mxu0 0
  %58 = vmatpush1.bf16.msra.mxu0 0
  %59 = vmatprep.subr.bf16.mxu0 0
  %60 = vmatpush1.bf16.msra.mxu0 0
  %61 = vmatprep.subr.bf16.mxu0 0
  %62 = vmatpush1.bf16.msra.mxu0 0
  %63 = vmatprep.subr.bf16.mxu0 0
  %64 = vmatpush1.bf16.msra.mxu0 0
  %65 = vmatprep.subr.bf16.mxu0 0
  %66 = vmatpush1.bf16.msra.mxu0 0
  %67 = vmatprep.subr.bf16.mxu0 0
  %68 = vmatpush1.bf16.msra.mxu0 0
  %69 = vmatprep.subr.bf16.mxu0 0
  %70 = vmatpush1.bf16.msra.mxu0 0
  %71 = vmatprep.subr.bf16.mxu0 0
  %72 = vmatpush1.bf16.msra.mxu0 0
  %73 = vmatprep.subr.bf16.mxu0 0
  %74 = vmatpush1.bf16.msra.mxu0 0
  %75 = vmatprep.subr.bf16.mxu0 0
  %76 = vmatpush1.bf16.msra.mxu0 0
  %77 = vmatprep.subr.bf16.mxu0 0
  %78 = vmatpush1.bf16.msra.mxu0 0
  %79 = vmatprep.subr.bf16.mxu0 0
  %80 = vmatpush1.bf16.msra.mxu0 0
  %81 = vmatprep.subr.bf16.mxu0 0
  %82 = vmatpush1.bf16.msra.mxu0 0
  %83 = vmatprep.mubr.bf16.mxu0 0
  %84 = vmatmul.mubr.bf16.gmra.mrb[0].mxu0 %v49
  %v85 = vpop.f32.mrb[0].mxu0
  %v86 = vadd.f32 0.0, %v85
  %v87 = vpop.f32.mrb[0].mxu0
  %v88 = vadd.f32 0.0, %v87
  %v89 = vpop.f32.mrb[0].mxu0
  %v90 = vpop.f32.mrb[0].mxu0
  %91 = vdwg.mxu0
  %93 = vrot.lane.b32.xlu0 %v86, 112
  %v94 = vpop.permute.xlu0 %93
  %96 = vrot.lane.b32.xlu0 %v86, 96
  %v97 = vpop.permute.xlu0 %96
  %99 = vrot.lane.b32.xlu0 %v86, 80
  %v100 = vpop.permute.xlu0 %99
  %102 = vrot.lane.b32.xlu0 %v86, 64
  %v103 = vpop.permute.xlu0 %102
  %105 = vrot.lane.b32.xlu0 %v86, 48
  %v106 = vpop.permute.xlu0 %105
  %108 = vrot.lane.b32.xlu0 %v86, 32
  %v109 = vpop.permute.xlu0 %108
  %111 = vrot.lane.b32.xlu0 %v86, 16
  %v112 = vpop.permute.xlu0 %111
  %115 = vrot.lane.b32.xlu0 %v88, 112
  %v116 = vpop.permute.xlu0 %115
  %118 = vrot.lane.b32.xlu0 %v88, 96
  %v119 = vpop.permute.xlu0 %118
  %121 = vrot.lane.b32.xlu0 %v88, 80
  %v122 = vpop.permute.xlu0 %121
  %124 = vrot.lane.b32.xlu0 %v88, 64
  %v125 = vpop.permute.xlu0 %124
  %127 = vrot.lane.b32.xlu0 %v88, 48
  %v128 = vpop.permute.xlu0 %127
  %130 = vrot.lane.b32.xlu0 %v88, 32
  %v131 = vpop.permute.xlu0 %130
  %133 = vrot.lane.b32.xlu0 %v88, 16
  %v134 = vpop.permute.xlu0 %133
  %v136 = vlaneseq
  %v137 = vshrl.u32 %v136, 7
  %v138 = vadd.s32 %v137, 8
  %v139 = vadd.s32 %v137, 16
  %v140 = vadd.s32 %v137, 24
  %v141 = vadd.s32 %v137, 32
  %v142 = vadd.s32 %v137, 40
  %v143 = vadd.s32 %v137, 48
  %v144 = vadd.s32 %v137, 56
  %v145 = vadd.s32 %v137, 64
  %v146 = vadd.s32 %v137, 72
  %v147 = vadd.s32 %v137, 80
  %v148 = vadd.s32 %v137, 88
  %v149 = vadd.s32 %v137, 96
  %v150 = vadd.s32 %v137, 104
  %v151 = vadd.s32 %v137, 112
  %v152 = vadd.s32 %v137, 120
  %vm153 = vcmp.lt.s32.totalorder %v137, 0
  %v154 = vsub.s32 0, %v137
  %v155 = vsel %vm153, %v154, %v137
  %v156 = vshrl.u32 %v155, 3
  %v157 = vand.u32 %v155, 7
  %v158 = vsub.s32 0, %v157
  %v159 = vsel %vm153, %v158, %v157
  %vm160 = vcmp.lt.s32.totalorder %v138, 0
  %v161 = vsub.s32 0, %v138
  %v162 = vsel %vm160, %v161, %v138
  %v163 = vshrl.u32 %v162, 3
  %v164 = vand.u32 %v162, 7
  %v165 = vsub.s32 0, %v164
  %v166 = vsel %vm160, %v165, %v164
  %vm167 = vcmp.lt.s32.totalorder %v139, 0
  %v168 = vsub.s32 0, %v139
  %v169 = vsel %vm167, %v168, %v139
  %v170 = vshrl.u32 %v169, 3
  %v171 = vand.u32 %v169, 7
  %v172 = vsub.s32 0, %v171
  %v173 = vsel %vm167, %v172, %v171
  %vm174 = vcmp.lt.s32.totalorder %v140, 0
  %v175 = vsub.s32 0, %v140
  %v176 = vsel %vm174, %v175, %v140
  %v177 = vshrl.u32 %v176, 3
  %v178 = vand.u32 %v176, 7
  %v179 = vsub.s32 0, %v178
  %v180 = vsel %vm174, %v179, %v178
  %vm181 = vcmp.lt.s32.totalorder %v141, 0
  %v182 = vsub.s32 0, %v141
  %v183 = vsel %vm181, %v182, %v141
  %v184 = vshrl.u32 %v183, 3
  %v185 = vand.u32 %v183, 7
  %v186 = vsub.s32 0, %v185
  %v187 = vsel %vm181, %v186, %v185
  %vm188 = vcmp.lt.s32.totalorder %v142, 0
  %v189 = vsub.s32 0, %v142
  %v190 = vsel %vm188, %v189, %v142
  %v191 = vshrl.u32 %v190, 3
  %v192 = vand.u32 %v190, 7
  %v193 = vsub.s32 0, %v192
  %v194 = vsel %vm188, %v193, %v192
  %vm195 = vcmp.lt.s32.totalorder %v143, 0
  %v196 = vsub.s32 0, %v143
  %v197 = vsel %vm195, %v196, %v143
  %v198 = vshrl.u32 %v197, 3
  %v199 = vand.u32 %v197, 7
  %v200 = vsub.s32 0, %v199
  %v201 = vsel %vm195, %v200, %v199
  %vm202 = vcmp.lt.s32.totalorder %v144, 0
  %v203 = vsub.s32 0, %v144
  %v204 = vsel %vm202, %v203, %v144
  %v205 = vshrl.u32 %v204, 3
  %v206 = vand.u32 %v204, 7
  %v207 = vsub.s32 0, %v206
  %v208 = vsel %vm202, %v207, %v206
  %vm209 = vcmp.lt.s32.totalorder %v145, 0
  %v210 = vsub.s32 0, %v145
  %v211 = vsel %vm209, %v210, %v145
  %v212 = vshrl.u32 %v211, 3
  %v213 = vand.u32 %v211, 7
  %v214 = vsub.s32 0, %v213
  %v215 = vsel %vm209, %v214, %v213
  %vm216 = vcmp.lt.s32.totalorder %v146, 0
  %v217 = vsub.s32 0, %v146
  %v218 = vsel %vm216, %v217, %v146
  %v219 = vshrl.u32 %v218, 3
  %v220 = vand.u32 %v218, 7
  %v221 = vsub.s32 0, %v220
  %v222 = vsel %vm216, %v221, %v220
  %vm223 = vcmp.lt.s32.totalorder %v147, 0
  %v224 = vsub.s32 0, %v147
  %v225 = vsel %vm223, %v224, %v147
  %v226 = vshrl.u32 %v225, 3
  %v227 = vand.u32 %v225, 7
  %v228 = vsub.s32 0, %v227
  %v229 = vsel %vm223, %v228, %v227
  %vm230 = vcmp.lt.s32.totalorder %v148, 0
  %v231 = vsub.s32 0, %v148
  %v232 = vsel %vm230, %v231, %v148
  %v233 = vshrl.u32 %v232, 3
  %v234 = vand.u32 %v232, 7
  %v235 = vsub.s32 0, %v234
  %v236 = vsel %vm230, %v235, %v234
  %vm237 = vcmp.lt.s32.totalorder %v149, 0
  %v238 = vsub.s32 0, %v149
  %v239 = vsel %vm237, %v238, %v149
  %v240 = vshrl.u32 %v239, 3
  %v241 = vand.u32 %v239, 7
  %v242 = vsub.s32 0, %v241
  %v243 = vsel %vm237, %v242, %v241
  %vm244 = vcmp.lt.s32.totalorder %v150, 0
  %v245 = vsub.s32 0, %v150
  %v246 = vsel %vm244, %v245, %v150
  %v247 = vshrl.u32 %v246, 3
  %v248 = vand.u32 %v246, 7
  %v249 = vsub.s32 0, %v248
  %v250 = vsel %vm244, %v249, %v248
  %vm251 = vcmp.lt.s32.totalorder %v151, 0
  %v252 = vsub.s32 0, %v151
  %v253 = vsel %vm251, %v252, %v151
  %v254 = vshrl.u32 %v253, 3
  %v255 = vand.u32 %v253, 7
  %v256 = vsub.s32 0, %v255
  %v257 = vsel %vm251, %v256, %v255
  %vm258 = vcmp.lt.s32.totalorder %v152, 0
  %v259 = vsub.s32 0, %v152
  %v260 = vsel %vm258, %v259, %v152
  %v261 = vshrl.u32 %v260, 3
  %v262 = vand.u32 %v260, 7
  %v263 = vsub.s32 0, %v262
  %v264 = vsel %vm258, %v263, %v262
  %vm265 = vcmp.ne.s32.totalorder %v159, 0
  %vm266 = vcmp.ne.s32.totalorder %v166, 0
  %vm267 = vcmp.ne.s32.totalorder %v173, 0
  %vm268 = vcmp.ne.s32.totalorder %v180, 0
  %vm269 = vcmp.ne.s32.totalorder %v187, 0
  %vm270 = vcmp.ne.s32.totalorder %v194, 0
  %vm271 = vcmp.ne.s32.totalorder %v201, 0
  %vm272 = vcmp.ne.s32.totalorder %v208, 0
  %vm273 = vcmp.ne.s32.totalorder %v215, 0
  %vm274 = vcmp.ne.s32.totalorder %v222, 0
  %vm275 = vcmp.ne.s32.totalorder %v229, 0
  %vm276 = vcmp.ne.s32.totalorder %v236, 0
  %vm277 = vcmp.ne.s32.totalorder %v243, 0
  %vm278 = vcmp.ne.s32.totalorder %v250, 0
  %vm279 = vcmp.ne.s32.totalorder %v257, 0
  %vm280 = vcmp.ne.s32.totalorder %v264, 0
  %vm281 = vcmp.lt.s32.totalorder %v159, 0
  %vm282 = vcmp.lt.s32.totalorder %v166, 0
  %vm283 = vcmp.lt.s32.totalorder %v173, 0
  %vm284 = vcmp.lt.s32.totalorder %v180, 0
  %vm285 = vcmp.lt.s32.totalorder %v187, 0
  %vm286 = vcmp.lt.s32.totalorder %v194, 0
  %vm287 = vcmp.lt.s32.totalorder %v201, 0
  %vm288 = vcmp.lt.s32.totalorder %v208, 0
  %vm289 = vcmp.lt.s32.totalorder %v215, 0
  %vm290 = vcmp.lt.s32.totalorder %v222, 0
  %vm291 = vcmp.lt.s32.totalorder %v229, 0
  %vm292 = vcmp.lt.s32.totalorder %v236, 0
  %vm293 = vcmp.lt.s32.totalorder %v243, 0
  %vm294 = vcmp.lt.s32.totalorder %v250, 0
  %vm295 = vcmp.lt.s32.totalorder %v257, 0
  %vm296 = vcmp.lt.s32.totalorder %v264, 0
  %vm297 = vmand %vm281, %vm265
  %vm298 = vmand %vm282, %vm266
  %vm299 = vmand %vm283, %vm267
  %vm300 = vmand %vm284, %vm268
  %vm301 = vmand %vm285, %vm269
  %vm302 = vmand %vm286, %vm270
  %vm303 = vmand %vm287, %vm271
  %vm304 = vmand %vm288, %vm272
  %vm305 = vmand %vm289, %vm273
  %vm306 = vmand %vm290, %vm274
  %vm307 = vmand %vm291, %vm275
  %vm308 = vmand %vm292, %vm276
  %vm309 = vmand %vm293, %vm277
  %vm310 = vmand %vm294, %vm278
  %vm311 = vmand %vm295, %vm279
  %vm312 = vmand %vm296, %vm280
  %v313 = vadd.s32 %v159, 8
  %v314 = vadd.s32 %v166, 8
  %v315 = vadd.s32 %v173, 8
  %v316 = vadd.s32 %v180, 8
  %v317 = vadd.s32 %v187, 8
  %v318 = vadd.s32 %v194, 8
  %v319 = vadd.s32 %v201, 8
  %v320 = vadd.s32 %v208, 8
  %v321 = vadd.s32 %v215, 8
  %v322 = vadd.s32 %v222, 8
  %v323 = vadd.s32 %v229, 8
  %v324 = vadd.s32 %v236, 8
  %v325 = vadd.s32 %v243, 8
  %v326 = vadd.s32 %v250, 8
  %v327 = vadd.s32 %v257, 8
  %v328 = vadd.s32 %v264, 8
  %v329 = vsel %vm297, %v313, %v159
  %v330 = vsel %vm298, %v314, %v166
  %v331 = vsel %vm299, %v315, %v173
  %v332 = vsel %vm300, %v316, %v180
  %v333 = vsel %vm301, %v317, %v187
  %v334 = vsel %vm302, %v318, %v194
  %v335 = vsel %vm303, %v319, %v201
  %v336 = vsel %vm304, %v320, %v208
  %v337 = vsel %vm305, %v321, %v215
  %v338 = vsel %vm306, %v322, %v222
  %v339 = vsel %vm307, %v323, %v229
  %v340 = vsel %vm308, %v324, %v236
  %v341 = vsel %vm309, %v325, %v243
  %v342 = vsel %vm310, %v326, %v250
  %v343 = vsel %vm311, %v327, %v257
  %v344 = vsel %vm312, %v328, %v264
  %vm345 = vcmp.lt.s32.totalorder %v329, 2
  %vm346 = vcmp.lt.s32.totalorder %v330, 2
  %vm347 = vcmp.lt.s32.totalorder %v331, 2
  %vm348 = vcmp.lt.s32.totalorder %v332, 2
  %vm349 = vcmp.lt.s32.totalorder %v333, 2
  %vm350 = vcmp.lt.s32.totalorder %v334, 2
  %vm351 = vcmp.lt.s32.totalorder %v335, 2
  %vm352 = vcmp.lt.s32.totalorder %v336, 2
  %vm353 = vcmp.lt.s32.totalorder %v337, 2
  %vm354 = vcmp.lt.s32.totalorder %v338, 2
  %vm355 = vcmp.lt.s32.totalorder %v339, 2
  %vm356 = vcmp.lt.s32.totalorder %v340, 2
  %vm357 = vcmp.lt.s32.totalorder %v341, 2
  %vm358 = vcmp.lt.s32.totalorder %v342, 2
  %vm359 = vcmp.lt.s32.totalorder %v343, 2
  %vm360 = vcmp.lt.s32.totalorder %v344, 2
  %v361 = vsel %vm345, 1, 0
  %v362 = vsel %vm346, 1, 0
  %v363 = vsel %vm347, 1, 0
  %v364 = vsel %vm348, 1, 0
  %v365 = vsel %vm349, 1, 0
  %v366 = vsel %vm350, 1, 0
  %v367 = vsel %vm351, 1, 0
  %v368 = vsel %vm352, 1, 0
  %v369 = vsel %vm353, 1, 0
  %v370 = vsel %vm354, 1, 0
  %v371 = vsel %vm355, 1, 0
  %v372 = vsel %vm356, 1, 0
  %v373 = vsel %vm357, 1, 0
  %v374 = vsel %vm358, 1, 0
  %v375 = vsel %vm359, 1, 0
  %v376 = vsel %vm360, 1, 0
  %v377 = vcvt.s32.f32 %v361
  %v378 = vcvt.s32.f32 %v362
  %v379 = vcvt.s32.f32 %v363
  %v380 = vcvt.s32.f32 %v364
  %v381 = vcvt.s32.f32 %v365
  %v382 = vcvt.s32.f32 %v366
  %v383 = vcvt.s32.f32 %v367
  %v384 = vcvt.s32.f32 %v368
  %v385 = vcvt.s32.f32 %v369
  %v386 = vcvt.s32.f32 %v370
  %v387 = vcvt.s32.f32 %v371
  %v388 = vcvt.s32.f32 %v372
  %v389 = vcvt.s32.f32 %v373
  %v390 = vcvt.s32.f32 %v374
  %v391 = vcvt.s32.f32 %v375
  %v392 = vcvt.s32.f32 %v376
  %v393 = vmul.f32 %v86, %v377
  %v394 = vmul.f32 %v94, %v378
  %v395 = vmul.f32 %v97, %v379
  %v396 = vmul.f32 %v100, %v380
  %v397 = vmul.f32 %v103, %v381
  %v398 = vmul.f32 %v106, %v382
  %v399 = vmul.f32 %v109, %v383
  %v400 = vmul.f32 %v112, %v384
  %v401 = vmul.f32 %v88, %v385
  %v402 = vmul.f32 %v116, %v386
  %v403 = vmul.f32 %v119, %v387
  %v404 = vmul.f32 %v122, %v388
  %v405 = vmul.f32 %v125, %v389
  %v406 = vmul.f32 %v128, %v390
  %v407 = vmul.f32 %v131, %v391
  %v408 = vmul.f32 %v134, %v392
  %vm409 = vcmask 130048
  %v410 = vsel %vm409, %v393, 0.0
  %v411 = vsel %vm409, %v394, 0.0
  %v412 = vadd.f32 %v410, %v411
  %v413 = vsel %vm409, %v395, 0.0
  %v414 = vadd.f32 %v412, %v413
  %v415 = vsel %vm409, %v396, 0.0
  %v416 = vadd.f32 %v414, %v415
  %v417 = vsel %vm409, %v397, 0.0
  %v418 = vadd.f32 %v416, %v417
  %v419 = vsel %vm409, %v398, 0.0
  %v420 = vadd.f32 %v418, %v419
  %v421 = vsel %vm409, %v399, 0.0
  %v422 = vadd.f32 %v420, %v421
  %v423 = vsel %vm409, %v400, 0.0
  %v424 = vadd.f32 %v422, %v423
  %v425 = vsel %vm409, %v401, 0.0
  %v426 = vadd.f32 %v424, %v425
  %v427 = vsel %vm409, %v402, 0.0
  %v428 = vadd.f32 %v426, %v427
  %v429 = vsel %vm409, %v403, 0.0
  %v430 = vadd.f32 %v428, %v429
  %v431 = vsel %vm409, %v404, 0.0
  %v432 = vadd.f32 %v430, %v431
  %v433 = vsel %vm409, %v405, 0.0
  %v434 = vadd.f32 %v432, %v433
  %v435 = vsel %vm409, %v406, 0.0
  %v436 = vadd.f32 %v434, %v435
  %v437 = vsel %vm409, %v407, 0.0
  %v438 = vadd.f32 %v436, %v437
  %v439 = vsel %vm409, %v408, 0.0
  %v440 = vadd.f32 %v438, %v439
  %v441 = vrot.slane %v440, 4
  %v442 = vadd.f32 %v440, %v441
  %v443 = vrot.slane %v442, 2
  %v444 = vadd.f32 %v442, %v443
  %v445 = vrot.slane %v444, 1
  %v446 = vadd.f32 %v444, %v445
  %v447 = vmul.f32 %v446, 0.03125
  %v448 = vsub.f32 %v86, %v447
  %v449 = vsub.f32 %v94, %v447
  %v450 = vsub.f32 %v97, %v447
  %v451 = vsub.f32 %v100, %v447
  %v452 = vsub.f32 %v103, %v447
  %v453 = vsub.f32 %v106, %v447
  %v454 = vsub.f32 %v109, %v447
  %v455 = vsub.f32 %v112, %v447
  %v456 = vsub.f32 %v88, %v447
  %v457 = vsub.f32 %v116, %v447
  %v458 = vsub.f32 %v119, %v447
  %v459 = vsub.f32 %v122, %v447
  %v460 = vsub.f32 %v125, %v447
  %v461 = vsub.f32 %v128, %v447
  %v462 = vsub.f32 %v131, %v447
  %v463 = vsub.f32 %v134, %v447
  %v464 = vmul.f32 %v448, %v448
  %v465 = vmul.f32 %v449, %v449
  %v466 = vmul.f32 %v450, %v450
  %v467 = vmul.f32 %v451, %v451
  %v468 = vmul.f32 %v452, %v452
  %v469 = vmul.f32 %v453, %v453
  %v470 = vmul.f32 %v454, %v454
  %v471 = vmul.f32 %v455, %v455
  %v472 = vmul.f32 %v456, %v456
  %v473 = vmul.f32 %v457, %v457
  %v474 = vmul.f32 %v458, %v458
  %v475 = vmul.f32 %v459, %v459
  %v476 = vmul.f32 %v460, %v460
  %v477 = vmul.f32 %v461, %v461
  %v478 = vmul.f32 %v462, %v462
  %v479 = vmul.f32 %v463, %v463
  %v480 = vmul.f32 %v464, %v377
  %v481 = vmul.f32 %v465, %v378
  %v482 = vmul.f32 %v466, %v379
  %v483 = vmul.f32 %v467, %v380
  %v484 = vmul.f32 %v468, %v381
  %v485 = vmul.f32 %v469, %v382
  %v486 = vmul.f32 %v470, %v383
  %v487 = vmul.f32 %v471, %v384
  %v488 = vmul.f32 %v472, %v385
  %v489 = vmul.f32 %v473, %v386
  %v490 = vmul.f32 %v474, %v387
  %v491 = vmul.f32 %v475, %v388
  %v492 = vmul.f32 %v476, %v389
  %v493 = vmul.f32 %v477, %v390
  %v494 = vmul.f32 %v478, %v391
  %v495 = vmul.f32 %v479, %v392
  %v496 = vsel %vm409, %v480, 0.0
  %v497 = vsel %vm409, %v481, 0.0
  %v498 = vadd.f32 %v496, %v497
  %v499 = vsel %vm409, %v482, 0.0
  %v500 = vadd.f32 %v498, %v499
  %v501 = vsel %vm409, %v483, 0.0
  %v502 = vadd.f32 %v500, %v501
  %v503 = vsel %vm409, %v484, 0.0
  %v504 = vadd.f32 %v502, %v503
  %v505 = vsel %vm409, %v485, 0.0
  %v506 = vadd.f32 %v504, %v505
  %v507 = vsel %vm409, %v486, 0.0
  %v508 = vadd.f32 %v506, %v507
  %v509 = vsel %vm409, %v487, 0.0
  %v510 = vadd.f32 %v508, %v509
  %v511 = vsel %vm409, %v488, 0.0
  %v512 = vadd.f32 %v510, %v511
  %v513 = vsel %vm409, %v489, 0.0
  %v514 = vadd.f32 %v512, %v513
  %v515 = vsel %vm409, %v490, 0.0
  %v516 = vadd.f32 %v514, %v515
  %v517 = vsel %vm409, %v491, 0.0
  %v518 = vadd.f32 %v516, %v517
  %v519 = vsel %vm409, %v492, 0.0
  %v520 = vadd.f32 %v518, %v519
  %v521 = vsel %vm409, %v493, 0.0
  %v522 = vadd.f32 %v520, %v521
  %v523 = vsel %vm409, %v494, 0.0
  %v524 = vadd.f32 %v522, %v523
  %v525 = vsel %vm409, %v495, 0.0
  %v526 = vadd.f32 %v524, %v525
  %v527 = vrot.slane %v526, 4
  %v528 = vadd.f32 %v526, %v527
  %v529 = vrot.slane %v528, 2
  %v530 = vadd.f32 %v528, %v529
  %v531 = vrot.slane %v530, 1
  %v532 = vadd.f32 %v530, %v531
  %v533 = vmul.f32 %v532, 0.03125
  %v534 = vadd.f32 %v533, 1e-05
  %v535 = vrsqrt.pop %v534
  %v536 = vmul.f32 %v448, %v535
  %v537 = vmul.f32 %v449, %v535
  %v538 = vmul.f32 %v450, %v535
  %v539 = vmul.f32 %v451, %v535
  %v540 = vmul.f32 %v452, %v535
  %v541 = vmul.f32 %v453, %v535
  %v542 = vmul.f32 %v454, %v535
  %v543 = vmul.f32 %v455, %v535
  %v544 = vmul.f32 %v456, %v535
  %v545 = vmul.f32 %v457, %v535
  %v546 = vmul.f32 %v458, %v535
  %v547 = vmul.f32 %v459, %v535
  %v548 = vmul.f32 %v460, %v535
  %v549 = vmul.f32 %v461, %v535
  %v550 = vmul.f32 %v462, %v535
  %v551 = vmul.f32 %v463, %v535
  %v552 = vmul.f32 %v536, 0.2
  %v553 = vmul.f32 %v537, 0.2
  %v554 = vmul.f32 %v538, 0.2
  %v555 = vmul.f32 %v539, 0.2
  %v556 = vmul.f32 %v540, 0.2
  %v557 = vmul.f32 %v541, 0.2
  %v558 = vmul.f32 %v542, 0.2
  %v559 = vmul.f32 %v543, 0.2
  %v560 = vmul.f32 %v544, 0.2
  %v561 = vmul.f32 %v545, 0.2
  %v562 = vmul.f32 %v546, 0.2
  %v563 = vmul.f32 %v547, 0.2
  %v564 = vmul.f32 %v548, 0.2
  %v565 = vmul.f32 %v549, 0.2
  %v566 = vmul.f32 %v550, 0.2
  %v567 = vmul.f32 %v551, 0.2
  %v568 = vmax.f32 %v536, %v552
  %v569 = vmax.f32 %v537, %v553
  %v570 = vmax.f32 %v538, %v554
  %v571 = vmax.f32 %v539, %v555
  %v572 = vmax.f32 %v540, %v556
  %v573 = vmax.f32 %v541, %v557
  %v574 = vmax.f32 %v542, %v558
  %v575 = vmax.f32 %v543, %v559
  %v576 = vmax.f32 %v544, %v560
  %v577 = vmax.f32 %v545, %v561
  %v578 = vmax.f32 %v546, %v562
  %v579 = vmax.f32 %v547, %v563
  %v580 = vmax.f32 %v548, %v564
  %v581 = vmax.f32 %v549, %v565
  %v582 = vmax.f32 %v550, %v566
  %v583 = vmax.f32 %v551, %v567
  %597 = vrot.lane.b32.xlu0 0.0, 16
  %v598 = vpop.permute.xlu0 %597
  %599 = vrot.lane.b32.xlu0 %v568, 16
  %v600 = vpop.permute.xlu0 %599
  %601 = vrot.lane.b32.xlu0 %v569, 16
  %v602 = vpop.permute.xlu0 %601
  %603 = vrot.lane.b32.xlu0 %v570, 16
  %v604 = vpop.permute.xlu0 %603
  %605 = vrot.lane.b32.xlu0 %v572, 16
  %v606 = vpop.permute.xlu0 %605
  %607 = vrot.lane.b32.xlu0 %v573, 16
  %v608 = vpop.permute.xlu0 %607
  %609 = vrot.lane.b32.xlu0 %v574, 16
  %v610 = vpop.permute.xlu0 %609
  %611 = vrot.lane.b32.xlu0 %v576, 16
  %v612 = vpop.permute.xlu0 %611
  %613 = vrot.lane.b32.xlu0 %v577, 16
  %v614 = vpop.permute.xlu0 %613
  %615 = vrot.lane.b32.xlu0 %v578, 16
  %v616 = vpop.permute.xlu0 %615
  %617 = vrot.lane.b32.xlu0 %v580, 16
  %v618 = vpop.permute.xlu0 %617
  %619 = vrot.lane.b32.xlu0 %v581, 16
  %v620 = vpop.permute.xlu0 %619
  %621 = vrot.lane.b32.xlu0 %v582, 16
  %v622 = vpop.permute.xlu0 %621
  %639 = vrot.lane.b32.xlu0 0.0, 32
  %v640 = vpop.permute.xlu0 %639
  %641 = vrot.lane.b32.xlu0 %v568, 32
  %v642 = vpop.permute.xlu0 %641
  %643 = vrot.lane.b32.xlu0 %v569, 32
  %v644 = vpop.permute.xlu0 %643
  %645 = vrot.lane.b32.xlu0 %v570, 32
  %v646 = vpop.permute.xlu0 %645
  %647 = vrot.lane.b32.xlu0 %v571, 32
  %v648 = vpop.permute.xlu0 %647
  %649 = vrot.lane.b32.xlu0 %v572, 32
  %v650 = vpop.permute.xlu0 %649
  %651 = vrot.lane.b32.xlu0 %v573, 32
  %v652 = vpop.permute.xlu0 %651
  %653 = vrot.lane.b32.xlu0 %v574, 32
  %v654 = vpop.permute.xlu0 %653
  %655 = vrot.lane.b32.xlu0 %v575, 32
  %v656 = vpop.permute.xlu0 %655
  %657 = vrot.lane.b32.xlu0 %v576, 32
  %v658 = vpop.permute.xlu0 %657
  %659 = vrot.lane.b32.xlu0 %v577, 32
  %v660 = vpop.permute.xlu0 %659
  %661 = vrot.lane.b32.xlu0 %v578, 32
  %v662 = vpop.permute.xlu0 %661
  %663 = vrot.lane.b32.xlu0 %v579, 32
  %v664 = vpop.permute.xlu0 %663
  %678 = vrot.lane.b32.xlu0 0.0, 48
  %v679 = vpop.permute.xlu0 %678
  %680 = vrot.lane.b32.xlu0 %v568, 48
  %v681 = vpop.permute.xlu0 %680
  %682 = vrot.lane.b32.xlu0 %v569, 48
  %v683 = vpop.permute.xlu0 %682
  %684 = vrot.lane.b32.xlu0 %v570, 48
  %v685 = vpop.permute.xlu0 %684
  %686 = vrot.lane.b32.xlu0 %v572, 48
  %v687 = vpop.permute.xlu0 %686
  %688 = vrot.lane.b32.xlu0 %v573, 48
  %v689 = vpop.permute.xlu0 %688
  %690 = vrot.lane.b32.xlu0 %v574, 48
  %v691 = vpop.permute.xlu0 %690
  %692 = vrot.lane.b32.xlu0 %v576, 48
  %v693 = vpop.permute.xlu0 %692
  %694 = vrot.lane.b32.xlu0 %v577, 48
  %v695 = vpop.permute.xlu0 %694
  %696 = vrot.lane.b32.xlu0 %v578, 48
  %v697 = vpop.permute.xlu0 %696
  %v708 = vsel %vm409, %v568, %v598
  %v709 = vsel %vm409, %v569, %v600
  %v710 = vsel %vm409, %v570, %v602
  %v711 = vsel %vm409, %v571, %v604
  %v712 = vsel %vm409, %v572, %v598
  %v713 = vsel %vm409, %v573, %v606
  %v714 = vsel %vm409, %v574, %v608
  %v715 = vsel %vm409, %v575, %v610
  %v716 = vsel %vm409, %v576, %v598
  %v717 = vsel %vm409, %v577, %v612
  %v718 = vsel %vm409, %v578, %v614
  %v719 = vsel %vm409, %v579, %v616
  %v720 = vsel %vm409, %v580, %v598
  %v721 = vsel %vm409, %v581, %v618
  %v722 = vsel %vm409, %v582, %v620
  %v723 = vsel %vm409, %v583, %v622
  %v724 = vsel %vm47, %v708, %v640
  %v725 = vsel %vm47, %v709, %v640
  %v726 = vsel %vm47, %v710, %v640
  %v727 = vsel %vm47, %v711, %v640
  %v728 = vsel %vm47, %v712, %v642
  %v729 = vsel %vm47, %v713, %v644
  %v730 = vsel %vm47, %v714, %v646
  %v731 = vsel %vm47, %v715, %v648
  %v732 = vsel %vm47, %v716, %v650
  %v733 = vsel %vm47, %v717, %v652
  %v734 = vsel %vm47, %v718, %v654
  %v735 = vsel %vm47, %v719, %v656
  %v736 = vsel %vm47, %v720, %v658
  %v737 = vsel %vm47, %v721, %v660
  %v738 = vsel %vm47, %v722, %v662
  %v739 = vsel %vm47, %v723, %v664
  %vm740 = vcmask 392192
  %v741 = vsel %vm740, %v724, %v679
  %v742 = vsel %vm740, %v725, %v679
  %v743 = vsel %vm740, %v726, %v679
  %v744 = vsel %vm740, %v727, %v679
  %v745 = vsel %vm740, %v728, %v679
  %v746 = vsel %vm740, %v729, %v681
  %v747 = vsel %vm740, %v730, %v683
  %v748 = vsel %vm740, %v731, %v685
  %v749 = vsel %vm740, %v732, %v679
  %v750 = vsel %vm740, %v733, %v687
  %v751 = vsel %vm740, %v734, %v689
  %v752 = vsel %vm740, %v735, %v691
  %v753 = vsel %vm740, %v736, %v679
  %v754 = vsel %vm740, %v737, %v693
  %v755 = vsel %vm740, %v738, %v695
  %v756 = vsel %vm740, %v739, %v697
  %v757 = vpack.c.bf16 %v742, %v741
  %v758 = vpack.c.bf16 %v744, %v743
  %v759 = vpack.c.bf16 %v746, %v745
  %v760 = vpack.c.bf16 %v748, %v747
  %v761 = vpack.c.bf16 %v750, %v749
  %v762 = vpack.c.bf16 %v752, %v751
  %v763 = vpack.c.bf16 %v754, %v753
  %v764 = vpack.c.bf16 %v756, %v755
  %v765 = vld [vmem:[%s2] sm:$0xf]
  %v766 = vld [vmem:[%s2 + $0x4] sm:$0xf]
  %v767 = vld [vmem:[%s2 + $0x8] sm:$0xf]
  %v768 = vld [vmem:[%s2 + $0xc] sm:$0xf]
  %v769 = vld [vmem:[%s2 + $0x10] sm:$0xf]
  %v770 = vld [vmem:[%s2 + $0x14] sm:$0xf]
  %v771 = vld [vmem:[%s2 + $0x18] sm:$0xf]
  %v772 = vld [vmem:[%s2 + $0x1c] sm:$0xf]
  %v781 = vunpack.c.l.b16 %v765
  %v782 = vunpack.c.l.b16 %v766
  %v783 = vunpack.c.l.b16 %v767
  %v784 = vunpack.c.l.b16 %v768
  %v785 = vunpack.c.l.b16 %v769
  %v786 = vunpack.c.l.b16 %v770
  %v787 = vunpack.c.l.b16 %v771
  %v788 = vunpack.c.l.b16 %v772
  %v789 = vpack.c.b16 %v782, %v781
  %v790 = vpack.c.b16 %v784, %v783
  %v791 = vpack.c.b16 %v786, %v785
  %v792 = vpack.c.b16 %v788, %v787
  %vm797 = vcmask 523264
  %v799 = vsel %vm797, %v757, 0
  %v802 = vsel %vm797, %v758, 0
  %v805 = vsel %vm797, %v759, 0
  %v808 = vsel %vm797, %v760, 0
  %v811 = vsel %vm797, %v761, 0
  %v814 = vsel %vm797, %v762, 0
  %v817 = vsel %vm797, %v763, 0
  %v820 = vsel %vm797, %v764, 0
  %822 = vmatprep.subr.bf16.mxu0 0
  %823 = vmatpush1.bf16.msra.mxu0 %v789
  %824 = vmatprep.subr.bf16.mxu0 0
  %825 = vmatpush1.bf16.msra.mxu0 %v790
  %826 = vmatprep.subr.bf16.mxu0 0
  %827 = vmatpush1.bf16.msra.mxu0 %v791
  %828 = vmatprep.subr.bf16.mxu0 0
  %829 = vmatpush1.bf16.msra.mxu0 %v792
  %830 = vmatprep.subr.bf16.mxu0 0
  %831 = vmatpush1.bf16.msra.mxu0 0
  %832 = vmatprep.subr.bf16.mxu0 0
  %833 = vmatpush1.bf16.msra.mxu0 0
  %834 = vmatprep.subr.bf16.mxu0 0
  %835 = vmatpush1.bf16.msra.mxu0 0
  %836 = vmatprep.subr.bf16.mxu0 0
  %837 = vmatpush1.bf16.msra.mxu0 0
  %838 = vmatprep.subr.bf16.mxu0 0
  %839 = vmatpush1.bf16.msra.mxu0 0
  %840 = vmatprep.subr.bf16.mxu0 0
  %841 = vmatpush1.bf16.msra.mxu0 0
  %842 = vmatprep.subr.bf16.mxu0 0
  %843 = vmatpush1.bf16.msra.mxu0 0
  %844 = vmatprep.subr.bf16.mxu0 0
  %845 = vmatpush1.bf16.msra.mxu0 0
  %846 = vmatprep.subr.bf16.mxu0 0
  %847 = vmatpush1.bf16.msra.mxu0 0
  %848 = vmatprep.subr.bf16.mxu0 0
  %849 = vmatpush1.bf16.msra.mxu0 0
  %850 = vmatprep.subr.bf16.mxu0 0
  %851 = vmatpush1.bf16.msra.mxu0 0
  %852 = vmatprep.subr.bf16.mxu0 0
  %853 = vmatpush1.bf16.msra.mxu0 0
  %854 = vmatprep.mubr.bf16.mxu0 0
  %855 = vmatmul.mubr.bf16.gmra.mrb[0].mxu0 %v799
  %v856 = vpop.f32.mrb[0].mxu0
  %v857 = vadd.f32 0.0, %v856
  %v858 = vpop.f32.mrb[0].mxu0
  %v859 = vpop.f32.mrb[0].mxu0
  %v860 = vadd.f32 0.0, %v859
  %v861 = vpop.f32.mrb[0].mxu0
  %862 = vmatprep.mubr.bf16.mxu0 0
  %863 = vmatmul.mubr.bf16.gmra.mrb[0].mxu0 %v802
  %v864 = vpop.f32.mrb[0].mxu0
  %v865 = vadd.f32 0.0, %v864
  %v866 = vpop.f32.mrb[0].mxu0
  %v867 = vpop.f32.mrb[0].mxu0
  %v868 = vadd.f32 0.0, %v867
  %v869 = vpop.f32.mrb[0].mxu0
  %870 = vmatprep.mubr.bf16.mxu0 0
  %871 = vmatmul.mubr.bf16.gmra.mrb[0].mxu0 %v805
  %v872 = vpop.f32.mrb[0].mxu0
  %v873 = vadd.f32 0.0, %v872
  %v874 = vpop.f32.mrb[0].mxu0
  %v875 = vpop.f32.mrb[0].mxu0
  %v876 = vadd.f32 0.0, %v875
  %v877 = vpop.f32.mrb[0].mxu0
  %878 = vmatprep.mubr.bf16.mxu0 0
  %879 = vmatmul.mubr.bf16.gmra.mrb[0].mxu0 %v808
  %v880 = vpop.f32.mrb[0].mxu0
  %v881 = vadd.f32 0.0, %v880
  %v882 = vpop.f32.mrb[0].mxu0
  %v883 = vpop.f32.mrb[0].mxu0
  %v884 = vadd.f32 0.0, %v883
  %v885 = vpop.f32.mrb[0].mxu0
  %886 = vmatprep.mubr.bf16.mxu0 0
  %887 = vmatmul.mubr.bf16.gmra.mrb[0].mxu0 %v811
  %v888 = vpop.f32.mrb[0].mxu0
  %v889 = vadd.f32 0.0, %v888
  %v890 = vpop.f32.mrb[0].mxu0
  %v891 = vpop.f32.mrb[0].mxu0
  %v892 = vadd.f32 0.0, %v891
  %v893 = vpop.f32.mrb[0].mxu0
  %894 = vmatprep.mubr.bf16.mxu0 0
  %895 = vmatmul.mubr.bf16.gmra.mrb[0].mxu0 %v814
  %v896 = vpop.f32.mrb[0].mxu0
  %v897 = vadd.f32 0.0, %v896
  %v898 = vpop.f32.mrb[0].mxu0
  %v899 = vpop.f32.mrb[0].mxu0
  %v900 = vadd.f32 0.0, %v899
  %v901 = vpop.f32.mrb[0].mxu0
  %902 = vmatprep.mubr.bf16.mxu0 0
  %903 = vmatmul.mubr.bf16.gmra.mrb[0].mxu0 %v817
  %v904 = vpop.f32.mrb[0].mxu0
  %v905 = vadd.f32 0.0, %v904
  %v906 = vpop.f32.mrb[0].mxu0
  %v907 = vpop.f32.mrb[0].mxu0
  %v908 = vadd.f32 0.0, %v907
  %v909 = vpop.f32.mrb[0].mxu0
  %910 = vmatprep.mubr.bf16.mxu0 0
  %911 = vmatmul.mubr.bf16.gmra.mrb[0].mxu0 %v820
  %v912 = vpop.f32.mrb[0].mxu0
  %v913 = vadd.f32 0.0, %v912
  %v914 = vpop.f32.mrb[0].mxu0
  %v915 = vpop.f32.mrb[0].mxu0
  %v916 = vadd.f32 0.0, %v915
  %v917 = vpop.f32.mrb[0].mxu0
  %918 = vdwg.mxu0
  %920 = vrot.lane.b32.xlu0 %v571, 16
  %v921 = vpop.permute.xlu0 %920
  %922 = vrot.lane.b32.xlu0 %v575, 16
  %v923 = vpop.permute.xlu0 %922
  %924 = vrot.lane.b32.xlu0 %v579, 16
  %v925 = vpop.permute.xlu0 %924
  %926 = vrot.lane.b32.xlu0 %v583, 16
  %v927 = vpop.permute.xlu0 %926
  %932 = vrot.lane.b32.xlu0 %v571, 48
  %v933 = vpop.permute.xlu0 %932
  %934 = vrot.lane.b32.xlu0 %v575, 48
  %v935 = vpop.permute.xlu0 %934
  %936 = vrot.lane.b32.xlu0 %v579, 48
  %v937 = vpop.permute.xlu0 %936
  %v941 = vsel %vm409, 0.0, %v921
  %v942 = vsel %vm409, 0.0, %v923
  %v943 = vsel %vm409, 0.0, %v925
  %v944 = vsel %vm409, 0.0, %v927
  %v945 = vsel %vm47, %v941, %v640
  %v946 = vsel %vm47, %v942, %v640
  %v947 = vsel %vm47, %v943, %v640
  %v948 = vsel %vm47, %v944, %v640
  %v949 = vsel %vm740, %v945, %v679
  %v950 = vsel %vm740, %v946, %v933
  %v951 = vsel %vm740, %v947, %v935
  %v952 = vsel %vm740, %v948, %v937
  %v953 = vpack.c.bf16 %v743, %v742
  %v954 = vpack.c.bf16 %v949, %v744
  %v955 = vpack.c.bf16 %v747, %v746
  %v956 = vpack.c.bf16 %v950, %v748
  %v957 = vpack.c.bf16 %v751, %v750
  %v958 = vpack.c.bf16 %v951, %v752
  %v959 = vpack.c.bf16 %v755, %v754
  %v960 = vpack.c.bf16 %v952, %v756
  %s961 = scalar_lea.vmem %s2, 32
  %v962 = vld [vmem:[%s961] sm:$0xf]
  %v963 = vld [vmem:[%s961 + $0x4] sm:$0xf]
  %v964 = vld [vmem:[%s961 + $0x8] sm:$0xf]
  %v965 = vld [vmem:[%s961 + $0xc] sm:$0xf]
  %v966 = vld [vmem:[%s961 + $0x10] sm:$0xf]
  %v967 = vld [vmem:[%s961 + $0x14] sm:$0xf]
  %v968 = vld [vmem:[%s961 + $0x18] sm:$0xf]
  %v969 = vld [vmem:[%s961 + $0x1c] sm:$0xf]
  %v978 = vunpack.c.l.b16 %v962
  %v979 = vunpack.c.l.b16 %v963
  %v980 = vunpack.c.l.b16 %v964
  %v981 = vunpack.c.l.b16 %v965
  %v982 = vunpack.c.l.b16 %v966
  %v983 = vunpack.c.l.b16 %v967
  %v984 = vunpack.c.l.b16 %v968
  %v985 = vunpack.c.l.b16 %v969
  %v986 = vpack.c.b16 %v979, %v978
  %v987 = vpack.c.b16 %v981, %v980
  %v988 = vpack.c.b16 %v983, %v982
  %v989 = vpack.c.b16 %v985, %v984
  %v995 = vsel %vm797, %v953, 0
  %v998 = vsel %vm797, %v954, 0
  %v1001 = vsel %vm797, %v955, 0
  %v1004 = vsel %vm797, %v956, 0
  %v1007 = vsel %vm797, %v957, 0
  %v1010 = vsel %vm797, %v958, 0
  %v1013 = vsel %vm797, %v959, 0
  %v1016 = vsel %vm797, %v960, 0
  %1018 = vmatprep.subr.bf16.mxu0 0
  %1019 = vmatpush1.bf16.msra.mxu0 %v986
  %1020 = vmatprep.subr.bf16.mxu0 0
  %1021 = vmatpush1.bf16.msra.mxu0 %v987
  %1022 = vmatprep.subr.bf16.mxu0 0
  %1023 = vmatpush1.bf16.msra.mxu0 %v988
  %1024 = vmatprep.subr.bf16.mxu0 0
  %1025 = vmatpush1.bf16.msra.mxu0 %v989
  %1026 = vmatprep.subr.bf16.mxu0 0
  %1027 = vmatpush1.bf16.msra.mxu0 0
  %1028 = vmatprep.subr.bf16.mxu0 0
  %1029 = vmatpush1.bf16.msra.mxu0 0
  %1030 = vmatprep.subr.bf16.mxu0 0
  %1031 = vmatpush1.bf16.msra.mxu0 0
  %1032 = vmatprep.subr.bf16.mxu0 0
  %1033 = vmatpush1.bf16.msra.mxu0 0
  %1034 = vmatprep.subr.bf16.mxu0 0
  %1035 = vmatpush1.bf16.msra.mxu0 0
  %1036 = vmatprep.subr.bf16.mxu0 0
  %1037 = vmatpush1.bf16.msra.mxu0 0
  %1038 = vmatprep.subr.bf16.mxu0 0
  %1039 = vmatpush1.bf16.msra.mxu0 0
  %1040 = vmatprep.subr.bf16.mxu0 0
  %1041 = vmatpush1.bf16.msra.mxu0 0
  %1042 = vmatprep.subr.bf16.mxu0 0
  %1043 = vmatpush1.bf16.msra.mxu0 0
  %1044 = vmatprep.subr.bf16.mxu0 0
  %1045 = vmatpush1.bf16.msra.mxu0 0
  %1046 = vmatprep.subr.bf16.mxu0 0
  %1047 = vmatpush1.bf16.msra.mxu0 0
  %1048 = vmatprep.subr.bf16.mxu0 0
  %1049 = vmatpush1.bf16.msra.mxu0 0
  %1050 = vmatprep.mubr.bf16.mxu0 0
  %1051 = vmatmul.mubr.bf16.gmra.mrb[0].mxu0 %v995
  %v1052 = vpop.f32.mrb[0].mxu0
  %v1053 = vadd.f32 0.0, %v1052
  %v1054 = vpop.f32.mrb[0].mxu0
  %v1055 = vpop.f32.mrb[0].mxu0
  %v1056 = vadd.f32 0.0, %v1055
  %v1057 = vpop.f32.mrb[0].mxu0
  %1058 = vmatprep.mubr.bf16.mxu0 0
  %1059 = vmatmul.mubr.bf16.gmra.mrb[0].mxu0 %v998
  %v1060 = vpop.f32.mrb[0].mxu0
  %v1061 = vadd.f32 0.0, %v1060
  %v1062 = vpop.f32.mrb[0].mxu0
  %v1063 = vpop.f32.mrb[0].mxu0
  %v1064 = vadd.f32 0.0, %v1063
  %v1065 = vpop.f32.mrb[0].mxu0
  %1066 = vmatprep.mubr.bf16.mxu0 0
  %1067 = vmatmul.mubr.bf16.gmra.mrb[0].mxu0 %v1001
  %v1068 = vpop.f32.mrb[0].mxu0
  %v1069 = vadd.f32 0.0, %v1068
  %v1070 = vpop.f32.mrb[0].mxu0
  %v1071 = vpop.f32.mrb[0].mxu0
  %v1072 = vadd.f32 0.0, %v1071
  %v1073 = vpop.f32.mrb[0].mxu0
  %1074 = vmatprep.mubr.bf16.mxu0 0
  %1075 = vmatmul.mubr.bf16.gmra.mrb[0].mxu0 %v1004
  %v1076 = vpop.f32.mrb[0].mxu0
  %v1077 = vadd.f32 0.0, %v1076
  %v1078 = vpop.f32.mrb[0].mxu0
  %v1079 = vpop.f32.mrb[0].mxu0
  %v1080 = vadd.f32 0.0, %v1079
  %v1081 = vpop.f32.mrb[0].mxu0
  %1082 = vmatprep.mubr.bf16.mxu0 0
  %1083 = vmatmul.mubr.bf16.gmra.mrb[0].mxu0 %v1007
  %v1084 = vpop.f32.mrb[0].mxu0
  %v1085 = vadd.f32 0.0, %v1084
  %v1086 = vpop.f32.mrb[0].mxu0
  %v1087 = vpop.f32.mrb[0].mxu0
  %v1088 = vadd.f32 0.0, %v1087
  %v1089 = vpop.f32.mrb[0].mxu0
  %1090 = vmatprep.mubr.bf16.mxu0 0
  %1091 = vmatmul.mubr.bf16.gmra.mrb[0].mxu0 %v1010
  %v1092 = vpop.f32.mrb[0].mxu0
  %v1093 = vadd.f32 0.0, %v1092
  %v1094 = vpop.f32.mrb[0].mxu0
  %v1095 = vpop.f32.mrb[0].mxu0
  %v1096 = vadd.f32 0.0, %v1095
  %v1097 = vpop.f32.mrb[0].mxu0
  %1098 = vmatprep.mubr.bf16.mxu0 0
  %1099 = vmatmul.mubr.bf16.gmra.mrb[0].mxu0 %v1013
  %v1100 = vpop.f32.mrb[0].mxu0
  %v1101 = vadd.f32 0.0, %v1100
  %v1102 = vpop.f32.mrb[0].mxu0
  %v1103 = vpop.f32.mrb[0].mxu0
  %v1104 = vadd.f32 0.0, %v1103
  %v1105 = vpop.f32.mrb[0].mxu0
  %1106 = vmatprep.mubr.bf16.mxu0 0
  %1107 = vmatmul.mubr.bf16.gmra.mrb[0].mxu0 %v1016
  %v1108 = vpop.f32.mrb[0].mxu0
  %v1109 = vadd.f32 0.0, %v1108
  %v1110 = vpop.f32.mrb[0].mxu0
  %v1111 = vpop.f32.mrb[0].mxu0
  %v1112 = vadd.f32 0.0, %v1111
  %v1113 = vpop.f32.mrb[0].mxu0
  %1114 = vdwg.mxu0
  %1115 = vrot.lane.b32.xlu0 %v580, 32
  %v1116 = vpop.permute.xlu0 %1115
  %1117 = vrot.lane.b32.xlu0 %v581, 32
  %v1118 = vpop.permute.xlu0 %1117
  %1119 = vrot.lane.b32.xlu0 %v582, 32
  %v1120 = vpop.permute.xlu0 %1119
  %1121 = vrot.lane.b32.xlu0 %v583, 32
  %v1122 = vpop.permute.xlu0 %1121
  %1127 = vrot.lane.b32.xlu0 %v580, 48
  %v1128 = vpop.permute.xlu0 %1127
  %1129 = vrot.lane.b32.xlu0 %v581, 48
  %v1130 = vpop.permute.xlu0 %1129
  %1131 = vrot.lane.b32.xlu0 %v582, 48
  %v1132 = vpop.permute.xlu0 %1131
  %v1136 = vsel %vm409, 0.0, %v598
  %v1137 = vsel %vm47, %v1136, %v1116
  %v1138 = vsel %vm47, %v1136, %v1118
  %v1139 = vsel %vm47, %v1136, %v1120
  %v1140 = vsel %vm47, %v1136, %v1122
  %v1141 = vsel %vm740, %v1137, %v679
  %v1142 = vsel %vm740, %v1138, %v1128
  %v1143 = vsel %vm740, %v1139, %v1130
  %v1144 = vsel %vm740, %v1140, %v1132
  %v1145 = vpack.c.bf16 %v1142, %v1141
  %v1146 = vpack.c.bf16 %v1144, %v1143
  %s1147 = scalar_lea.vmem %s2, 64
  %v1148 = vld [vmem:[%s1147] sm:$0xf]
  %v1149 = vld [vmem:[%s1147 + $0x4] sm:$0xf]
  %v1150 = vld [vmem:[%s1147 + $0x8] sm:$0xf]
  %v1151 = vld [vmem:[%s1147 + $0xc] sm:$0xf]
  %v1152 = vld [vmem:[%s1147 + $0x10] sm:$0xf]
  %v1153 = vld [vmem:[%s1147 + $0x14] sm:$0xf]
  %v1154 = vld [vmem:[%s1147 + $0x18] sm:$0xf]
  %v1155 = vld [vmem:[%s1147 + $0x1c] sm:$0xf]
  %v1164 = vunpack.c.l.b16 %v1148
  %v1165 = vunpack.c.l.b16 %v1149
  %v1166 = vunpack.c.l.b16 %v1150
  %v1167 = vunpack.c.l.b16 %v1151
  %v1168 = vunpack.c.l.b16 %v1152
  %v1169 = vunpack.c.l.b16 %v1153
  %v1170 = vunpack.c.l.b16 %v1154
  %v1171 = vunpack.c.l.b16 %v1155
  %v1172 = vpack.c.b16 %v1165, %v1164
  %v1173 = vpack.c.b16 %v1167, %v1166
  %v1174 = vpack.c.b16 %v1169, %v1168
  %v1175 = vpack.c.b16 %v1171, %v1170
  %v1181 = vsel %vm797, %v1145, 0
  %v1184 = vsel %vm797, %v1146, 0
  %1186 = vmatprep.subr.bf16.mxu0 0
  %1187 = vmatpush1.bf16.msra.mxu0 %v1172
  %1188 = vmatprep.subr.bf16.mxu0 0
  %1189 = vmatpush1.bf16.msra.mxu0 %v1173
  %1190 = vmatprep.subr.bf16.mxu0 0
  %1191 = vmatpush1.bf16.msra.mxu0 %v1174
  %1192 = vmatprep.subr.bf16.mxu0 0
  %1193 = vmatpush1.bf16.msra.mxu0 %v1175
  %1194 = vmatprep.subr.bf16.mxu0 0
  %1195 = vmatpush1.bf16.msra.mxu0 0
  %1196 = vmatprep.subr.bf16.mxu0 0
  %1197 = vmatpush1.bf16.msra.mxu0 0
  %1198 = vmatprep.subr.bf16.mxu0 0
  %1199 = vmatpush1.bf16.msra.mxu0 0
  %1200 = vmatprep.subr.bf16.mxu0 0
  %1201 = vmatpush1.bf16.msra.mxu0 0
  %1202 = vmatprep.subr.bf16.mxu0 0
  %1203 = vmatpush1.bf16.msra.mxu0 0
  %1204 = vmatprep.subr.bf16.mxu0 0
  %1205 = vmatpush1.bf16.msra.mxu0 0
  %1206 = vmatprep.subr.bf16.mxu0 0
  %1207 = vmatpush1.bf16.msra.mxu0 0
  %1208 = vmatprep.subr.bf16.mxu0 0
  %1209 = vmatpush1.bf16.msra.mxu0 0
  %1210 = vmatprep.subr.bf16.mxu0 0
  %1211 = vmatpush1.bf16.msra.mxu0 0
  %1212 = vmatprep.subr.bf16.mxu0 0
  %1213 = vmatpush1.bf16.msra.mxu0 0
  %1214 = vmatprep.subr.bf16.mxu0 0
  %1215 = vmatpush1.bf16.msra.mxu0 0
  %1216 = vmatprep.subr.bf16.mxu0 0
  %1217 = vmatpush1.bf16.msra.mxu0 0
  %1218 = vmatprep.mubr.bf16.mxu0 0
  %1219 = vmatmul.mubr.bf16.gmra.mrb[0].mxu0 %v805
  %v1220 = vpop.f32.mrb[0].mxu0
  %v1221 = vadd.f32 0.0, %v1220
  %v1222 = vpop.f32.mrb[0].mxu0
  %v1223 = vpop.f32.mrb[0].mxu0
  %v1224 = vadd.f32 0.0, %v1223
  %v1225 = vpop.f32.mrb[0].mxu0
  %1226 = vmatprep.mubr.bf16.mxu0 0
  %1227 = vmatmul.mubr.bf16.gmra.mrb[0].mxu0 %v808
  %v1228 = vpop.f32.mrb[0].mxu0
  %v1229 = vadd.f32 0.0, %v1228
  %v1230 = vpop.f32.mrb[0].mxu0
  %v1231 = vpop.f32.mrb[0].mxu0
  %v1232 = vadd.f32 0.0, %v1231
  %v1233 = vpop.f32.mrb[0].mxu0
  %1234 = vmatprep.mubr.bf16.mxu0 0
  %1235 = vmatmul.mubr.bf16.gmra.mrb[0].mxu0 %v811
  %v1236 = vpop.f32.mrb[0].mxu0
  %v1237 = vadd.f32 0.0, %v1236
  %v1238 = vpop.f32.mrb[0].mxu0
  %v1239 = vpop.f32.mrb[0].mxu0
  %v1240 = vadd.f32 0.0, %v1239
  %v1241 = vpop.f32.mrb[0].mxu0
  %1242 = vmatprep.mubr.bf16.mxu0 0
  %1243 = vmatmul.mubr.bf16.gmra.mrb[0].mxu0 %v814
  %v1244 = vpop.f32.mrb[0].mxu0
  %v1245 = vadd.f32 0.0, %v1244
  %v1246 = vpop.f32.mrb[0].mxu0
  %v1247 = vpop.f32.mrb[0].mxu0
  %v1248 = vadd.f32 0.0, %v1247
  %v1249 = vpop.f32.mrb[0].mxu0
  %1250 = vmatprep.mubr.bf16.mxu0 0
  %1251 = vmatmul.mubr.bf16.gmra.mrb[0].mxu0 %v817
  %v1252 = vpop.f32.mrb[0].mxu0
  %v1253 = vadd.f32 0.0, %v1252
  %v1254 = vpop.f32.mrb[0].mxu0
  %v1255 = vpop.f32.mrb[0].mxu0
  %v1256 = vadd.f32 0.0, %v1255
  %v1257 = vpop.f32.mrb[0].mxu0
  %1258 = vmatprep.mubr.bf16.mxu0 0
  %1259 = vmatmul.mubr.bf16.gmra.mrb[0].mxu0 %v820
  %v1260 = vpop.f32.mrb[0].mxu0
  %v1261 = vadd.f32 0.0, %v1260
  %v1262 = vpop.f32.mrb[0].mxu0
  %v1263 = vpop.f32.mrb[0].mxu0
  %v1264 = vadd.f32 0.0, %v1263
  %v1265 = vpop.f32.mrb[0].mxu0
  %1266 = vmatprep.mubr.bf16.mxu0 0
  %1267 = vmatmul.mubr.bf16.gmra.mrb[0].mxu0 %v1181
  %v1268 = vpop.f32.mrb[0].mxu0
  %v1269 = vadd.f32 0.0, %v1268
  %v1270 = vpop.f32.mrb[0].mxu0
  %v1271 = vpop.f32.mrb[0].mxu0
  %v1272 = vadd.f32 0.0, %v1271
  %v1273 = vpop.f32.mrb[0].mxu0
  %1274 = vmatprep.mubr.bf16.mxu0 0
  %1275 = vmatmul.mubr.bf16.gmra.mrb[0].mxu0 %v1184
  %v1276 = vpop.f32.mrb[0].mxu0
  %v1277 = vadd.f32 0.0, %v1276
  %v1278 = vpop.f32.mrb[0].mxu0
  %v1279 = vpop.f32.mrb[0].mxu0
  %v1280 = vadd.f32 0.0, %v1279
  %v1281 = vpop.f32.mrb[0].mxu0
  %1282 = vdwg.mxu0
  %1283 = vrot.lane.b32.xlu0 %v583, 48
  %v1284 = vpop.permute.xlu0 %1283
  %v1286 = vsel %vm47, %v1136, %v640
  %v1287 = vsel %vm740, %v1286, %v1284
  %v1288 = vpack.c.bf16 %v1143, %v1142
  %v1289 = vpack.c.bf16 %v1287, %v1144
  %s1290 = scalar_lea.vmem %s2, 96
  %v1291 = vld [vmem:[%s1290] sm:$0xf]
  %v1292 = vld [vmem:[%s1290 + $0x4] sm:$0xf]
  %v1293 = vld [vmem:[%s1290 + $0x8] sm:$0xf]
  %v1294 = vld [vmem:[%s1290 + $0xc] sm:$0xf]
  %v1295 = vld [vmem:[%s1290 + $0x10] sm:$0xf]
  %v1296 = vld [vmem:[%s1290 + $0x14] sm:$0xf]
  %v1297 = vld [vmem:[%s1290 + $0x18] sm:$0xf]
  %v1298 = vld [vmem:[%s1290 + $0x1c] sm:$0xf]
  %v1307 = vunpack.c.l.b16 %v1291
  %v1308 = vunpack.c.l.b16 %v1292
  %v1309 = vunpack.c.l.b16 %v1293
  %v1310 = vunpack.c.l.b16 %v1294
  %v1311 = vunpack.c.l.b16 %v1295
  %v1312 = vunpack.c.l.b16 %v1296
  %v1313 = vunpack.c.l.b16 %v1297
  %v1314 = vunpack.c.l.b16 %v1298
  %v1315 = vpack.c.b16 %v1308, %v1307
  %v1316 = vpack.c.b16 %v1310, %v1309
  %v1317 = vpack.c.b16 %v1312, %v1311
  %v1318 = vpack.c.b16 %v1314, %v1313
  %v1324 = vsel %vm797, %v1288, 0
  %v1327 = vsel %vm797, %v1289, 0
  %1329 = vmatprep.subr.bf16.mxu0 0
  %1330 = vmatpush1.bf16.msra.mxu0 %v1315
  %1331 = vmatprep.subr.bf16.mxu0 0
  %1332 = vmatpush1.bf16.msra.mxu0 %v1316
  %1333 = vmatprep.subr.bf16.mxu0 0
  %1334 = vmatpush1.bf16.msra.mxu0 %v1317
  %1335 = vmatprep.subr.bf16.mxu0 0
  %1336 = vmatpush1.bf16.msra.mxu0 %v1318
  %1337 = vmatprep.subr.bf16.mxu0 0
  %1338 = vmatpush1.bf16.msra.mxu0 0
  %1339 = vmatprep.subr.bf16.mxu0 0
  %1340 = vmatpush1.bf16.msra.mxu0 0
  %1341 = vmatprep.subr.bf16.mxu0 0
  %1342 = vmatpush1.bf16.msra.mxu0 0
  %1343 = vmatprep.subr.bf16.mxu0 0
  %1344 = vmatpush1.bf16.msra.mxu0 0
  %1345 = vmatprep.subr.bf16.mxu0 0
  %1346 = vmatpush1.bf16.msra.mxu0 0
  %1347 = vmatprep.subr.bf16.mxu0 0
  %1348 = vmatpush1.bf16.msra.mxu0 0
  %1349 = vmatprep.subr.bf16.mxu0 0
  %1350 = vmatpush1.bf16.msra.mxu0 0
  %1351 = vmatprep.subr.bf16.mxu0 0
  %1352 = vmatpush1.bf16.msra.mxu0 0
  %1353 = vmatprep.subr.bf16.mxu0 0
  %1354 = vmatpush1.bf16.msra.mxu0 0
  %1355 = vmatprep.subr.bf16.mxu0 0
  %1356 = vmatpush1.bf16.msra.mxu0 0
  %1357 = vmatprep.subr.bf16.mxu0 0
  %1358 = vmatpush1.bf16.msra.mxu0 0
  %1359 = vmatprep.subr.bf16.mxu0 0
  %1360 = vmatpush1.bf16.msra.mxu0 0
  %1361 = vmatprep.mubr.bf16.mxu0 0
  %1362 = vmatmul.mubr.bf16.gmra.mrb[0].mxu0 %v1001
  %v1363 = vpop.f32.mrb[0].mxu0
  %v1364 = vadd.f32 0.0, %v1363
  %v1365 = vpop.f32.mrb[0].mxu0
  %v1366 = vpop.f32.mrb[0].mxu0
  %v1367 = vadd.f32 0.0, %v1366
  %v1368 = vpop.f32.mrb[0].mxu0
  %1369 = vmatprep.mubr.bf16.mxu0 0
  %1370 = vmatmul.mubr.bf16.gmra.mrb[0].mxu0 %v1004
  %v1371 = vpop.f32.mrb[0].mxu0
  %v1372 = vadd.f32 0.0, %v1371
  %v1373 = vpop.f32.mrb[0].mxu0
  %v1374 = vpop.f32.mrb[0].mxu0
  %v1375 = vadd.f32 0.0, %v1374
  %v1376 = vpop.f32.mrb[0].mxu0
  %1377 = vmatprep.mubr.bf16.mxu0 0
  %1378 = vmatmul.mubr.bf16.gmra.mrb[0].mxu0 %v1007
  %v1379 = vpop.f32.mrb[0].mxu0
  %v1380 = vadd.f32 0.0, %v1379
  %v1381 = vpop.f32.mrb[0].mxu0
  %v1382 = vpop.f32.mrb[0].mxu0
  %v1383 = vadd.f32 0.0, %v1382
  %v1384 = vpop.f32.mrb[0].mxu0
  %1385 = vmatprep.mubr.bf16.mxu0 0
  %1386 = vmatmul.mubr.bf16.gmra.mrb[0].mxu0 %v1010
  %v1387 = vpop.f32.mrb[0].mxu0
  %v1388 = vadd.f32 0.0, %v1387
  %v1389 = vpop.f32.mrb[0].mxu0
  %v1390 = vpop.f32.mrb[0].mxu0
  %v1391 = vadd.f32 0.0, %v1390
  %v1392 = vpop.f32.mrb[0].mxu0
  %1393 = vmatprep.mubr.bf16.mxu0 0
  %1394 = vmatmul.mubr.bf16.gmra.mrb[0].mxu0 %v1013
  %v1395 = vpop.f32.mrb[0].mxu0
  %v1396 = vadd.f32 0.0, %v1395
  %v1397 = vpop.f32.mrb[0].mxu0
  %v1398 = vpop.f32.mrb[0].mxu0
  %v1399 = vadd.f32 0.0, %v1398
  %v1400 = vpop.f32.mrb[0].mxu0
  %1401 = vmatprep.mubr.bf16.mxu0 0
  %1402 = vmatmul.mubr.bf16.gmra.mrb[0].mxu0 %v1016
  %v1403 = vpop.f32.mrb[0].mxu0
  %v1404 = vadd.f32 0.0, %v1403
  %v1405 = vpop.f32.mrb[0].mxu0
  %v1406 = vpop.f32.mrb[0].mxu0
  %v1407 = vadd.f32 0.0, %v1406
  %v1408 = vpop.f32.mrb[0].mxu0
  %1409 = vmatprep.mubr.bf16.mxu0 0
  %1410 = vmatmul.mubr.bf16.gmra.mrb[0].mxu0 %v1324
  %v1411 = vpop.f32.mrb[0].mxu0
  %v1412 = vadd.f32 0.0, %v1411
  %v1413 = vpop.f32.mrb[0].mxu0
  %v1414 = vpop.f32.mrb[0].mxu0
  %v1415 = vadd.f32 0.0, %v1414
  %v1416 = vpop.f32.mrb[0].mxu0
  %1417 = vmatprep.mubr.bf16.mxu0 0
  %1418 = vmatmul.mubr.bf16.gmra.mrb[0].mxu0 %v1327
  %v1419 = vpop.f32.mrb[0].mxu0
  %v1420 = vadd.f32 0.0, %v1419
  %v1421 = vpop.f32.mrb[0].mxu0
  %v1422 = vpop.f32.mrb[0].mxu0
  %v1423 = vadd.f32 0.0, %v1422
  %v1424 = vpop.f32.mrb[0].mxu0
  %1425 = vdwg.mxu0
  %v1426 = vadd.s32 %v137, 128
  %v1427 = vadd.s32 %v137, 136
  %v1428 = vadd.s32 %v137, 144
  %v1429 = vadd.s32 %v137, 152
  %v1430 = vadd.s32 %v137, 160
  %v1431 = vadd.s32 %v137, 168
  %v1432 = vadd.s32 %v137, 176
  %v1433 = vadd.s32 %v137, 184
  %v1434 = vadd.s32 %v137, 192
  %v1435 = vadd.s32 %v137, 200
  %v1436 = vadd.s32 %v137, 208
  %v1437 = vadd.s32 %v137, 216
  %v1438 = vadd.s32 %v137, 224
  %v1439 = vadd.s32 %v137, 232
  %v1440 = vadd.s32 %v137, 240
  %v1441 = vadd.s32 %v137, 248
  %v1442 = vadd.s32 %v137, 256
  %v1443 = vadd.s32 %v137, 264
  %v1444 = vadd.s32 %v137, 272
  %v1445 = vadd.s32 %v137, 280
  %v1446 = vadd.s32 %v137, 288
  %v1447 = vadd.s32 %v137, 296
  %v1448 = vadd.s32 %v137, 304
  %v1449 = vadd.s32 %v137, 312
  %v1450 = vadd.s32 %v137, 320
  %v1451 = vadd.s32 %v137, 328
  %v1452 = vadd.s32 %v137, 336
  %v1453 = vadd.s32 %v137, 344
  %v1454 = vadd.s32 %v137, 352
  %v1455 = vadd.s32 %v137, 360
  %v1456 = vadd.s32 %v137, 368
  %v1457 = vadd.s32 %v137, 376
  %v1458 = vadd.s32 %v137, 384
  %v1459 = vadd.s32 %v137, 392
  %v1460 = vadd.s32 %v137, 400
  %v1461 = vadd.s32 %v137, 408
  %v1462 = vadd.s32 %v137, 416
  %v1463 = vadd.s32 %v137, 424
  %v1464 = vadd.s32 %v137, 432
  %v1465 = vadd.s32 %v137, 440
  %v1466 = vadd.s32 %v137, 448
  %v1467 = vadd.s32 %v137, 456
  %v1468 = vadd.s32 %v137, 464
  %v1469 = vadd.s32 %v137, 472
  %v1470 = vadd.s32 %v137, 480
  %v1471 = vadd.s32 %v137, 488
  %v1472 = vadd.s32 %v137, 496
  %v1473 = vadd.s32 %v137, 504
  %vm1474 = vcmp.lt.s32.totalorder %v1426, 0
  %v1475 = vsub.s32 0, %v1426
  %v1476 = vsel %vm1474, %v1475, %v1426
  %v1477 = vshrl.u32 %v1476, 3
  %v1478 = vand.u32 %v1476, 7
  %v1479 = vsub.s32 0, %v1478
  %v1480 = vsel %vm1474, %v1479, %v1478
  %vm1481 = vcmp.lt.s32.totalorder %v1427, 0
  %v1482 = vsub.s32 0, %v1427
  %v1483 = vsel %vm1481, %v1482, %v1427
  %v1484 = vshrl.u32 %v1483, 3
  %v1485 = vand.u32 %v1483, 7
  %v1486 = vsub.s32 0, %v1485
  %v1487 = vsel %vm1481, %v1486, %v1485
  %vm1488 = vcmp.lt.s32.totalorder %v1428, 0
  %v1489 = vsub.s32 0, %v1428
  %v1490 = vsel %vm1488, %v1489, %v1428
  %v1491 = vshrl.u32 %v1490, 3
  %v1492 = vand.u32 %v1490, 7
  %v1493 = vsub.s32 0, %v1492
  %v1494 = vsel %vm1488, %v1493, %v1492
  %vm1495 = vcmp.lt.s32.totalorder %v1429, 0
  %v1496 = vsub.s32 0, %v1429
  %v1497 = vsel %vm1495, %v1496, %v1429
  %v1498 = vshrl.u32 %v1497, 3
  %v1499 = vand.u32 %v1497, 7
  %v1500 = vsub.s32 0, %v1499
  %v1501 = vsel %vm1495, %v1500, %v1499
  %vm1502 = vcmp.lt.s32.totalorder %v1430, 0
  %v1503 = vsub.s32 0, %v1430
  %v1504 = vsel %vm1502, %v1503, %v1430
  %v1505 = vshrl.u32 %v1504, 3
  %v1506 = vand.u32 %v1504, 7
  %v1507 = vsub.s32 0, %v1506
  %v1508 = vsel %vm1502, %v1507, %v1506
  %vm1509 = vcmp.lt.s32.totalorder %v1431, 0
  %v1510 = vsub.s32 0, %v1431
  %v1511 = vsel %vm1509, %v1510, %v1431
  %v1512 = vshrl.u32 %v1511, 3
  %v1513 = vand.u32 %v1511, 7
  %v1514 = vsub.s32 0, %v1513
  %v1515 = vsel %vm1509, %v1514, %v1513
  %vm1516 = vcmp.lt.s32.totalorder %v1432, 0
  %v1517 = vsub.s32 0, %v1432
  %v1518 = vsel %vm1516, %v1517, %v1432
  %v1519 = vshrl.u32 %v1518, 3
  %v1520 = vand.u32 %v1518, 7
  %v1521 = vsub.s32 0, %v1520
  %v1522 = vsel %vm1516, %v1521, %v1520
  %vm1523 = vcmp.lt.s32.totalorder %v1433, 0
  %v1524 = vsub.s32 0, %v1433
  %v1525 = vsel %vm1523, %v1524, %v1433
  %v1526 = vshrl.u32 %v1525, 3
  %v1527 = vand.u32 %v1525, 7
  %v1528 = vsub.s32 0, %v1527
  %v1529 = vsel %vm1523, %v1528, %v1527
  %vm1530 = vcmp.lt.s32.totalorder %v1434, 0
  %v1531 = vsub.s32 0, %v1434
  %v1532 = vsel %vm1530, %v1531, %v1434
  %v1533 = vshrl.u32 %v1532, 3
  %v1534 = vand.u32 %v1532, 7
  %v1535 = vsub.s32 0, %v1534
  %v1536 = vsel %vm1530, %v1535, %v1534
  %vm1537 = vcmp.lt.s32.totalorder %v1435, 0
  %v1538 = vsub.s32 0, %v1435
  %v1539 = vsel %vm1537, %v1538, %v1435
  %v1540 = vshrl.u32 %v1539, 3
  %v1541 = vand.u32 %v1539, 7
  %v1542 = vsub.s32 0, %v1541
  %v1543 = vsel %vm1537, %v1542, %v1541
  %vm1544 = vcmp.lt.s32.totalorder %v1436, 0
  %v1545 = vsub.s32 0, %v1436
  %v1546 = vsel %vm1544, %v1545, %v1436
  %v1547 = vshrl.u32 %v1546, 3
  %v1548 = vand.u32 %v1546, 7
  %v1549 = vsub.s32 0, %v1548
  %v1550 = vsel %vm1544, %v1549, %v1548
  %vm1551 = vcmp.lt.s32.totalorder %v1437, 0
  %v1552 = vsub.s32 0, %v1437
  %v1553 = vsel %vm1551, %v1552, %v1437
  %v1554 = vshrl.u32 %v1553, 3
  %v1555 = vand.u32 %v1553, 7
  %v1556 = vsub.s32 0, %v1555
  %v1557 = vsel %vm1551, %v1556, %v1555
  %vm1558 = vcmp.lt.s32.totalorder %v1438, 0
  %v1559 = vsub.s32 0, %v1438
  %v1560 = vsel %vm1558, %v1559, %v1438
  %v1561 = vshrl.u32 %v1560, 3
  %v1562 = vand.u32 %v1560, 7
  %v1563 = vsub.s32 0, %v1562
  %v1564 = vsel %vm1558, %v1563, %v1562
  %vm1565 = vcmp.lt.s32.totalorder %v1439, 0
  %v1566 = vsub.s32 0, %v1439
  %v1567 = vsel %vm1565, %v1566, %v1439
  %v1568 = vshrl.u32 %v1567, 3
  %v1569 = vand.u32 %v1567, 7
  %v1570 = vsub.s32 0, %v1569
  %v1571 = vsel %vm1565, %v1570, %v1569
  %vm1572 = vcmp.lt.s32.totalorder %v1440, 0
  %v1573 = vsub.s32 0, %v1440
  %v1574 = vsel %vm1572, %v1573, %v1440
  %v1575 = vshrl.u32 %v1574, 3
  %v1576 = vand.u32 %v1574, 7
  %v1577 = vsub.s32 0, %v1576
  %v1578 = vsel %vm1572, %v1577, %v1576
  %vm1579 = vcmp.lt.s32.totalorder %v1441, 0
  %v1580 = vsub.s32 0, %v1441
  %v1581 = vsel %vm1579, %v1580, %v1441
  %v1582 = vshrl.u32 %v1581, 3
  %v1583 = vand.u32 %v1581, 7
  %v1584 = vsub.s32 0, %v1583
  %v1585 = vsel %vm1579, %v1584, %v1583
  %vm1586 = vcmp.lt.s32.totalorder %v1442, 0
  %v1587 = vsub.s32 0, %v1442
  %v1588 = vsel %vm1586, %v1587, %v1442
  %v1589 = vshrl.u32 %v1588, 3
  %v1590 = vand.u32 %v1588, 7
  %v1591 = vsub.s32 0, %v1590
  %v1592 = vsel %vm1586, %v1591, %v1590
  %vm1593 = vcmp.lt.s32.totalorder %v1443, 0
  %v1594 = vsub.s32 0, %v1443
  %v1595 = vsel %vm1593, %v1594, %v1443
  %v1596 = vshrl.u32 %v1595, 3
  %v1597 = vand.u32 %v1595, 7
  %v1598 = vsub.s32 0, %v1597
  %v1599 = vsel %vm1593, %v1598, %v1597
  %vm1600 = vcmp.lt.s32.totalorder %v1444, 0
  %v1601 = vsub.s32 0, %v1444
  %v1602 = vsel %vm1600, %v1601, %v1444
  %v1603 = vshrl.u32 %v1602, 3
  %v1604 = vand.u32 %v1602, 7
  %v1605 = vsub.s32 0, %v1604
  %v1606 = vsel %vm1600, %v1605, %v1604
  %vm1607 = vcmp.lt.s32.totalorder %v1445, 0
  %v1608 = vsub.s32 0, %v1445
  %v1609 = vsel %vm1607, %v1608, %v1445
  %v1610 = vshrl.u32 %v1609, 3
  %v1611 = vand.u32 %v1609, 7
  %v1612 = vsub.s32 0, %v1611
  %v1613 = vsel %vm1607, %v1612, %v1611
  %vm1614 = vcmp.lt.s32.totalorder %v1446, 0
  %v1615 = vsub.s32 0, %v1446
  %v1616 = vsel %vm1614, %v1615, %v1446
  %v1617 = vshrl.u32 %v1616, 3
  %v1618 = vand.u32 %v1616, 7
  %v1619 = vsub.s32 0, %v1618
  %v1620 = vsel %vm1614, %v1619, %v1618
  %vm1621 = vcmp.lt.s32.totalorder %v1447, 0
  %v1622 = vsub.s32 0, %v1447
  %v1623 = vsel %vm1621, %v1622, %v1447
  %v1624 = vshrl.u32 %v1623, 3
  %v1625 = vand.u32 %v1623, 7
  %v1626 = vsub.s32 0, %v1625
  %v1627 = vsel %vm1621, %v1626, %v1625
  %vm1628 = vcmp.lt.s32.totalorder %v1448, 0
  %v1629 = vsub.s32 0, %v1448
  %v1630 = vsel %vm1628, %v1629, %v1448
  %v1631 = vshrl.u32 %v1630, 3
  %v1632 = vand.u32 %v1630, 7
  %v1633 = vsub.s32 0, %v1632
  %v1634 = vsel %vm1628, %v1633, %v1632
  %vm1635 = vcmp.lt.s32.totalorder %v1449, 0
  %v1636 = vsub.s32 0, %v1449
  %v1637 = vsel %vm1635, %v1636, %v1449
  %v1638 = vshrl.u32 %v1637, 3
  %v1639 = vand.u32 %v1637, 7
  %v1640 = vsub.s32 0, %v1639
  %v1641 = vsel %vm1635, %v1640, %v1639
  %vm1642 = vcmp.lt.s32.totalorder %v1450, 0
  %v1643 = vsub.s32 0, %v1450
  %v1644 = vsel %vm1642, %v1643, %v1450
  %v1645 = vshrl.u32 %v1644, 3
  %v1646 = vand.u32 %v1644, 7
  %v1647 = vsub.s32 0, %v1646
  %v1648 = vsel %vm1642, %v1647, %v1646
  %vm1649 = vcmp.lt.s32.totalorder %v1451, 0
  %v1650 = vsub.s32 0, %v1451
  %v1651 = vsel %vm1649, %v1650, %v1451
  %v1652 = vshrl.u32 %v1651, 3
  %v1653 = vand.u32 %v1651, 7
  %v1654 = vsub.s32 0, %v1653
  %v1655 = vsel %vm1649, %v1654, %v1653
  %vm1656 = vcmp.lt.s32.totalorder %v1452, 0
  %v1657 = vsub.s32 0, %v1452
  %v1658 = vsel %vm1656, %v1657, %v1452
  %v1659 = vshrl.u32 %v1658, 3
  %v1660 = vand.u32 %v1658, 7
  %v1661 = vsub.s32 0, %v1660
  %v1662 = vsel %vm1656, %v1661, %v1660
  %vm1663 = vcmp.lt.s32.totalorder %v1453, 0
  %v1664 = vsub.s32 0, %v1453
  %v1665 = vsel %vm1663, %v1664, %v1453
  %v1666 = vshrl.u32 %v1665, 3
  %v1667 = vand.u32 %v1665, 7
  %v1668 = vsub.s32 0, %v1667
  %v1669 = vsel %vm1663, %v1668, %v1667
  %vm1670 = vcmp.lt.s32.totalorder %v1454, 0
  %v1671 = vsub.s32 0, %v1454
  %v1672 = vsel %vm1670, %v1671, %v1454
  %v1673 = vshrl.u32 %v1672, 3
  %v1674 = vand.u32 %v1672, 7
  %v1675 = vsub.s32 0, %v1674
  %v1676 = vsel %vm1670, %v1675, %v1674
  %vm1677 = vcmp.lt.s32.totalorder %v1455, 0
  %v1678 = vsub.s32 0, %v1455
  %v1679 = vsel %vm1677, %v1678, %v1455
  %v1680 = vshrl.u32 %v1679, 3
  %v1681 = vand.u32 %v1679, 7
  %v1682 = vsub.s32 0, %v1681
  %v1683 = vsel %vm1677, %v1682, %v1681
  %vm1684 = vcmp.lt.s32.totalorder %v1456, 0
  %v1685 = vsub.s32 0, %v1456
  %v1686 = vsel %vm1684, %v1685, %v1456
  %v1687 = vshrl.u32 %v1686, 3
  %v1688 = vand.u32 %v1686, 7
  %v1689 = vsub.s32 0, %v1688
  %v1690 = vsel %vm1684, %v1689, %v1688
  %vm1691 = vcmp.lt.s32.totalorder %v1457, 0
  %v1692 = vsub.s32 0, %v1457
  %v1693 = vsel %vm1691, %v1692, %v1457
  %v1694 = vshrl.u32 %v1693, 3
  %v1695 = vand.u32 %v1693, 7
  %v1696 = vsub.s32 0, %v1695
  %v1697 = vsel %vm1691, %v1696, %v1695
  %vm1698 = vcmp.lt.s32.totalorder %v1458, 0
  %v1699 = vsub.s32 0, %v1458
  %v1700 = vsel %vm1698, %v1699, %v1458
  %v1701 = vshrl.u32 %v1700, 3
  %v1702 = vand.u32 %v1700, 7
  %v1703 = vsub.s32 0, %v1702
  %v1704 = vsel %vm1698, %v1703, %v1702
  %vm1705 = vcmp.lt.s32.totalorder %v1459, 0
  %v1706 = vsub.s32 0, %v1459
  %v1707 = vsel %vm1705, %v1706, %v1459
  %v1708 = vshrl.u32 %v1707, 3
  %v1709 = vand.u32 %v1707, 7
  %v1710 = vsub.s32 0, %v1709
  %v1711 = vsel %vm1705, %v1710, %v1709
  %vm1712 = vcmp.lt.s32.totalorder %v1460, 0
  %v1713 = vsub.s32 0, %v1460
  %v1714 = vsel %vm1712, %v1713, %v1460
  %v1715 = vshrl.u32 %v1714, 3
  %v1716 = vand.u32 %v1714, 7
  %v1717 = vsub.s32 0, %v1716
  %v1718 = vsel %vm1712, %v1717, %v1716
  %vm1719 = vcmp.lt.s32.totalorder %v1461, 0
  %v1720 = vsub.s32 0, %v1461
  %v1721 = vsel %vm1719, %v1720, %v1461
  %v1722 = vshrl.u32 %v1721, 3
  %v1723 = vand.u32 %v1721, 7
  %v1724 = vsub.s32 0, %v1723
  %v1725 = vsel %vm1719, %v1724, %v1723
  %vm1726 = vcmp.lt.s32.totalorder %v1462, 0
  %v1727 = vsub.s32 0, %v1462
  %v1728 = vsel %vm1726, %v1727, %v1462
  %v1729 = vshrl.u32 %v1728, 3
  %v1730 = vand.u32 %v1728, 7
  %v1731 = vsub.s32 0, %v1730
  %v1732 = vsel %vm1726, %v1731, %v1730
  %vm1733 = vcmp.lt.s32.totalorder %v1463, 0
  %v1734 = vsub.s32 0, %v1463
  %v1735 = vsel %vm1733, %v1734, %v1463
  %v1736 = vshrl.u32 %v1735, 3
  %v1737 = vand.u32 %v1735, 7
  %v1738 = vsub.s32 0, %v1737
  %v1739 = vsel %vm1733, %v1738, %v1737
  %vm1740 = vcmp.lt.s32.totalorder %v1464, 0
  %v1741 = vsub.s32 0, %v1464
  %v1742 = vsel %vm1740, %v1741, %v1464
  %v1743 = vshrl.u32 %v1742, 3
  %v1744 = vand.u32 %v1742, 7
  %v1745 = vsub.s32 0, %v1744
  %v1746 = vsel %vm1740, %v1745, %v1744
  %vm1747 = vcmp.lt.s32.totalorder %v1465, 0
  %v1748 = vsub.s32 0, %v1465
  %v1749 = vsel %vm1747, %v1748, %v1465
  %v1750 = vshrl.u32 %v1749, 3
  %v1751 = vand.u32 %v1749, 7
  %v1752 = vsub.s32 0, %v1751
  %v1753 = vsel %vm1747, %v1752, %v1751
  %vm1754 = vcmp.lt.s32.totalorder %v1466, 0
  %v1755 = vsub.s32 0, %v1466
  %v1756 = vsel %vm1754, %v1755, %v1466
  %v1757 = vshrl.u32 %v1756, 3
  %v1758 = vand.u32 %v1756, 7
  %v1759 = vsub.s32 0, %v1758
  %v1760 = vsel %vm1754, %v1759, %v1758
  %vm1761 = vcmp.lt.s32.totalorder %v1467, 0
  %v1762 = vsub.s32 0, %v1467
  %v1763 = vsel %vm1761, %v1762, %v1467
  %v1764 = vshrl.u32 %v1763, 3
  %v1765 = vand.u32 %v1763, 7
  %v1766 = vsub.s32 0, %v1765
  %v1767 = vsel %vm1761, %v1766, %v1765
  %vm1768 = vcmp.lt.s32.totalorder %v1468, 0
  %v1769 = vsub.s32 0, %v1468
  %v1770 = vsel %vm1768, %v1769, %v1468
  %v1771 = vshrl.u32 %v1770, 3
  %v1772 = vand.u32 %v1770, 7
  %v1773 = vsub.s32 0, %v1772
  %v1774 = vsel %vm1768, %v1773, %v1772
  %vm1775 = vcmp.lt.s32.totalorder %v1469, 0
  %v1776 = vsub.s32 0, %v1469
  %v1777 = vsel %vm1775, %v1776, %v1469
  %v1778 = vshrl.u32 %v1777, 3
  %v1779 = vand.u32 %v1777, 7
  %v1780 = vsub.s32 0, %v1779
  %v1781 = vsel %vm1775, %v1780, %v1779
  %vm1782 = vcmp.lt.s32.totalorder %v1470, 0
  %v1783 = vsub.s32 0, %v1470
  %v1784 = vsel %vm1782, %v1783, %v1470
  %v1785 = vshrl.u32 %v1784, 3
  %v1786 = vand.u32 %v1784, 7
  %v1787 = vsub.s32 0, %v1786
  %v1788 = vsel %vm1782, %v1787, %v1786
  %vm1789 = vcmp.lt.s32.totalorder %v1471, 0
  %v1790 = vsub.s32 0, %v1471
  %v1791 = vsel %vm1789, %v1790, %v1471
  %v1792 = vshrl.u32 %v1791, 3
  %v1793 = vand.u32 %v1791, 7
  %v1794 = vsub.s32 0, %v1793
  %v1795 = vsel %vm1789, %v1794, %v1793
  %vm1796 = vcmp.lt.s32.totalorder %v1472, 0
  %v1797 = vsub.s32 0, %v1472
  %v1798 = vsel %vm1796, %v1797, %v1472
  %v1799 = vshrl.u32 %v1798, 3
  %v1800 = vand.u32 %v1798, 7
  %v1801 = vsub.s32 0, %v1800
  %v1802 = vsel %vm1796, %v1801, %v1800
  %vm1803 = vcmp.lt.s32.totalorder %v1473, 0
  %v1804 = vsub.s32 0, %v1473
  %v1805 = vsel %vm1803, %v1804, %v1473
  %v1806 = vshrl.u32 %v1805, 3
  %v1807 = vand.u32 %v1805, 7
  %v1808 = vsub.s32 0, %v1807
  %v1809 = vsel %vm1803, %v1808, %v1807
  %vm1810 = vcmp.ne.s32.totalorder %v1480, 0
  %vm1811 = vcmp.ne.s32.totalorder %v1487, 0
  %vm1812 = vcmp.ne.s32.totalorder %v1494, 0
  %vm1813 = vcmp.ne.s32.totalorder %v1501, 0
  %vm1814 = vcmp.ne.s32.totalorder %v1508, 0
  %vm1815 = vcmp.ne.s32.totalorder %v1515, 0
  %vm1816 = vcmp.ne.s32.totalorder %v1522, 0
  %vm1817 = vcmp.ne.s32.totalorder %v1529, 0
  %vm1818 = vcmp.ne.s32.totalorder %v1536, 0
  %vm1819 = vcmp.ne.s32.totalorder %v1543, 0
  %vm1820 = vcmp.ne.s32.totalorder %v1550, 0
  %vm1821 = vcmp.ne.s32.totalorder %v1557, 0
  %vm1822 = vcmp.ne.s32.totalorder %v1564, 0
  %vm1823 = vcmp.ne.s32.totalorder %v1571, 0
  %vm1824 = vcmp.ne.s32.totalorder %v1578, 0
  %vm1825 = vcmp.ne.s32.totalorder %v1585, 0
  %vm1826 = vcmp.ne.s32.totalorder %v1592, 0
  %vm1827 = vcmp.ne.s32.totalorder %v1599, 0
  %vm1828 = vcmp.ne.s32.totalorder %v1606, 0
  %vm1829 = vcmp.ne.s32.totalorder %v1613, 0
  %vm1830 = vcmp.ne.s32.totalorder %v1620, 0
  %vm1831 = vcmp.ne.s32.totalorder %v1627, 0
  %vm1832 = vcmp.ne.s32.totalorder %v1634, 0
  %vm1833 = vcmp.ne.s32.totalorder %v1641, 0
  %vm1834 = vcmp.ne.s32.totalorder %v1648, 0
  %vm1835 = vcmp.ne.s32.totalorder %v1655, 0
  %vm1836 = vcmp.ne.s32.totalorder %v1662, 0
  %vm1837 = vcmp.ne.s32.totalorder %v1669, 0
  %vm1838 = vcmp.ne.s32.totalorder %v1676, 0
  %vm1839 = vcmp.ne.s32.totalorder %v1683, 0
  %vm1840 = vcmp.ne.s32.totalorder %v1690, 0
  %vm1841 = vcmp.ne.s32.totalorder %v1697, 0
  %vm1842 = vcmp.ne.s32.totalorder %v1704, 0
  %vm1843 = vcmp.ne.s32.totalorder %v1711, 0
  %vm1844 = vcmp.ne.s32.totalorder %v1718, 0
  %vm1845 = vcmp.ne.s32.totalorder %v1725, 0
  %vm1846 = vcmp.ne.s32.totalorder %v1732, 0
  %vm1847 = vcmp.ne.s32.totalorder %v1739, 0
  %vm1848 = vcmp.ne.s32.totalorder %v1746, 0
  %vm1849 = vcmp.ne.s32.totalorder %v1753, 0
  %vm1850 = vcmp.ne.s32.totalorder %v1760, 0
  %vm1851 = vcmp.ne.s32.totalorder %v1767, 0
  %vm1852 = vcmp.ne.s32.totalorder %v1774, 0
  %vm1853 = vcmp.ne.s32.totalorder %v1781, 0
  %vm1854 = vcmp.ne.s32.totalorder %v1788, 0
  %vm1855 = vcmp.ne.s32.totalorder %v1795, 0
  %vm1856 = vcmp.ne.s32.totalorder %v1802, 0
  %vm1857 = vcmp.ne.s32.totalorder %v1809, 0
  %vm1858 = vcmp.lt.s32.totalorder %v1480, 0
  %vm1859 = vcmp.lt.s32.totalorder %v1487, 0
  %vm1860 = vcmp.lt.s32.totalorder %v1494, 0
  %vm1861 = vcmp.lt.s32.totalorder %v1501, 0
  %vm1862 = vcmp.lt.s32.totalorder %v1508, 0
  %vm1863 = vcmp.lt.s32.totalorder %v1515, 0
  %vm1864 = vcmp.lt.s32.totalorder %v1522, 0
  %vm1865 = vcmp.lt.s32.totalorder %v1529, 0
  %vm1866 = vcmp.lt.s32.totalorder %v1536, 0
  %vm1867 = vcmp.lt.s32.totalorder %v1543, 0
  %vm1868 = vcmp.lt.s32.totalorder %v1550, 0
  %vm1869 = vcmp.lt.s32.totalorder %v1557, 0
  %vm1870 = vcmp.lt.s32.totalorder %v1564, 0
  %vm1871 = vcmp.lt.s32.totalorder %v1571, 0
  %vm1872 = vcmp.lt.s32.totalorder %v1578, 0
  %vm1873 = vcmp.lt.s32.totalorder %v1585, 0
  %vm1874 = vcmp.lt.s32.totalorder %v1592, 0
  %vm1875 = vcmp.lt.s32.totalorder %v1599, 0
  %vm1876 = vcmp.lt.s32.totalorder %v1606, 0
  %vm1877 = vcmp.lt.s32.totalorder %v1613, 0
  %vm1878 = vcmp.lt.s32.totalorder %v1620, 0
  %vm1879 = vcmp.lt.s32.totalorder %v1627, 0
  %vm1880 = vcmp.lt.s32.totalorder %v1634, 0
  %vm1881 = vcmp.lt.s32.totalorder %v1641, 0
  %vm1882 = vcmp.lt.s32.totalorder %v1648, 0
  %vm1883 = vcmp.lt.s32.totalorder %v1655, 0
  %vm1884 = vcmp.lt.s32.totalorder %v1662, 0
  %vm1885 = vcmp.lt.s32.totalorder %v1669, 0
  %vm1886 = vcmp.lt.s32.totalorder %v1676, 0
  %vm1887 = vcmp.lt.s32.totalorder %v1683, 0
  %vm1888 = vcmp.lt.s32.totalorder %v1690, 0
  %vm1889 = vcmp.lt.s32.totalorder %v1697, 0
  %vm1890 = vcmp.lt.s32.totalorder %v1704, 0
  %vm1891 = vcmp.lt.s32.totalorder %v1711, 0
  %vm1892 = vcmp.lt.s32.totalorder %v1718, 0
  %vm1893 = vcmp.lt.s32.totalorder %v1725, 0
  %vm1894 = vcmp.lt.s32.totalorder %v1732, 0
  %vm1895 = vcmp.lt.s32.totalorder %v1739, 0
  %vm1896 = vcmp.lt.s32.totalorder %v1746, 0
  %vm1897 = vcmp.lt.s32.totalorder %v1753, 0
  %vm1898 = vcmp.lt.s32.totalorder %v1760, 0
  %vm1899 = vcmp.lt.s32.totalorder %v1767, 0
  %vm1900 = vcmp.lt.s32.totalorder %v1774, 0
  %vm1901 = vcmp.lt.s32.totalorder %v1781, 0
  %vm1902 = vcmp.lt.s32.totalorder %v1788, 0
  %vm1903 = vcmp.lt.s32.totalorder %v1795, 0
  %vm1904 = vcmp.lt.s32.totalorder %v1802, 0
  %vm1905 = vcmp.lt.s32.totalorder %v1809, 0
  %vm1906 = vmand %vm1858, %vm1810
  %vm1907 = vmand %vm1859, %vm1811
  %vm1908 = vmand %vm1860, %vm1812
  %vm1909 = vmand %vm1861, %vm1813
  %vm1910 = vmand %vm1862, %vm1814
  %vm1911 = vmand %vm1863, %vm1815
  %vm1912 = vmand %vm1864, %vm1816
  %vm1913 = vmand %vm1865, %vm1817
  %vm1914 = vmand %vm1866, %vm1818
  %vm1915 = vmand %vm1867, %vm1819
  %vm1916 = vmand %vm1868, %vm1820
  %vm1917 = vmand %vm1869, %vm1821
  %vm1918 = vmand %vm1870, %vm1822
  %vm1919 = vmand %vm1871, %vm1823
  %vm1920 = vmand %vm1872, %vm1824
  %vm1921 = vmand %vm1873, %vm1825
  %vm1922 = vmand %vm1874, %vm1826
  %vm1923 = vmand %vm1875, %vm1827
  %vm1924 = vmand %vm1876, %vm1828
  %vm1925 = vmand %vm1877, %vm1829
  %vm1926 = vmand %vm1878, %vm1830
  %vm1927 = vmand %vm1879, %vm1831
  %vm1928 = vmand %vm1880, %vm1832
  %vm1929 = vmand %vm1881, %vm1833
  %vm1930 = vmand %vm1882, %vm1834
  %vm1931 = vmand %vm1883, %vm1835
  %vm1932 = vmand %vm1884, %vm1836
  %vm1933 = vmand %vm1885, %vm1837
  %vm1934 = vmand %vm1886, %vm1838
  %vm1935 = vmand %vm1887, %vm1839
  %vm1936 = vmand %vm1888, %vm1840
  %vm1937 = vmand %vm1889, %vm1841
  %vm1938 = vmand %vm1890, %vm1842
  %vm1939 = vmand %vm1891, %vm1843
  %vm1940 = vmand %vm1892, %vm1844
  %vm1941 = vmand %vm1893, %vm1845
  %vm1942 = vmand %vm1894, %vm1846
  %vm1943 = vmand %vm1895, %vm1847
  %vm1944 = vmand %vm1896, %vm1848
  %vm1945 = vmand %vm1897, %vm1849
  %vm1946 = vmand %vm1898, %vm1850
  %vm1947 = vmand %vm1899, %vm1851
  %vm1948 = vmand %vm1900, %vm1852
  %vm1949 = vmand %vm1901, %vm1853
  %vm1950 = vmand %vm1902, %vm1854
  %vm1951 = vmand %vm1903, %vm1855
  %vm1952 = vmand %vm1904, %vm1856
  %vm1953 = vmand %vm1905, %vm1857
  %v1954 = vadd.s32 %v1480, 8
  %v1955 = vadd.s32 %v1487, 8
  %v1956 = vadd.s32 %v1494, 8
  %v1957 = vadd.s32 %v1501, 8
  %v1958 = vadd.s32 %v1508, 8
  %v1959 = vadd.s32 %v1515, 8
  %v1960 = vadd.s32 %v1522, 8
  %v1961 = vadd.s32 %v1529, 8
  %v1962 = vadd.s32 %v1536, 8
  %v1963 = vadd.s32 %v1543, 8
  %v1964 = vadd.s32 %v1550, 8
  %v1965 = vadd.s32 %v1557, 8
  %v1966 = vadd.s32 %v1564, 8
  %v1967 = vadd.s32 %v1571, 8
  %v1968 = vadd.s32 %v1578, 8
  %v1969 = vadd.s32 %v1585, 8
  %v1970 = vadd.s32 %v1592, 8
  %v1971 = vadd.s32 %v1599, 8
  %v1972 = vadd.s32 %v1606, 8
  %v1973 = vadd.s32 %v1613, 8
  %v1974 = vadd.s32 %v1620, 8
  %v1975 = vadd.s32 %v1627, 8
  %v1976 = vadd.s32 %v1634, 8
  %v1977 = vadd.s32 %v1641, 8
  %v1978 = vadd.s32 %v1648, 8
  %v1979 = vadd.s32 %v1655, 8
  %v1980 = vadd.s32 %v1662, 8
  %v1981 = vadd.s32 %v1669, 8
  %v1982 = vadd.s32 %v1676, 8
  %v1983 = vadd.s32 %v1683, 8
  %v1984 = vadd.s32 %v1690, 8
  %v1985 = vadd.s32 %v1697, 8
  %v1986 = vadd.s32 %v1704, 8
  %v1987 = vadd.s32 %v1711, 8
  %v1988 = vadd.s32 %v1718, 8
  %v1989 = vadd.s32 %v1725, 8
  %v1990 = vadd.s32 %v1732, 8
  %v1991 = vadd.s32 %v1739, 8
  %v1992 = vadd.s32 %v1746, 8
  %v1993 = vadd.s32 %v1753, 8
  %v1994 = vadd.s32 %v1760, 8
  %v1995 = vadd.s32 %v1767, 8
  %v1996 = vadd.s32 %v1774, 8
  %v1997 = vadd.s32 %v1781, 8
  %v1998 = vadd.s32 %v1788, 8
  %v1999 = vadd.s32 %v1795, 8
  %v2000 = vadd.s32 %v1802, 8
  %v2001 = vadd.s32 %v1809, 8
  %v2002 = vsel %vm1906, %v1954, %v1480
  %v2003 = vsel %vm1907, %v1955, %v1487
  %v2004 = vsel %vm1908, %v1956, %v1494
  %v2005 = vsel %vm1909, %v1957, %v1501
  %v2006 = vsel %vm1910, %v1958, %v1508
  %v2007 = vsel %vm1911, %v1959, %v1515
  %v2008 = vsel %vm1912, %v1960, %v1522
  %v2009 = vsel %vm1913, %v1961, %v1529
  %v2010 = vsel %vm1914, %v1962, %v1536
  %v2011 = vsel %vm1915, %v1963, %v1543
  %v2012 = vsel %vm1916, %v1964, %v1550
  %v2013 = vsel %vm1917, %v1965, %v1557
  %v2014 = vsel %vm1918, %v1966, %v1564
  %v2015 = vsel %vm1919, %v1967, %v1571
  %v2016 = vsel %vm1920, %v1968, %v1578
  %v2017 = vsel %vm1921, %v1969, %v1585
  %v2018 = vsel %vm1922, %v1970, %v1592
  %v2019 = vsel %vm1923, %v1971, %v1599
  %v2020 = vsel %vm1924, %v1972, %v1606
  %v2021 = vsel %vm1925, %v1973, %v1613
  %v2022 = vsel %vm1926, %v1974, %v1620
  %v2023 = vsel %vm1927, %v1975, %v1627
  %v2024 = vsel %vm1928, %v1976, %v1634
  %v2025 = vsel %vm1929, %v1977, %v1641
  %v2026 = vsel %vm1930, %v1978, %v1648
  %v2027 = vsel %vm1931, %v1979, %v1655
  %v2028 = vsel %vm1932, %v1980, %v1662
  %v2029 = vsel %vm1933, %v1981, %v1669
  %v2030 = vsel %vm1934, %v1982, %v1676
  %v2031 = vsel %vm1935, %v1983, %v1683
  %v2032 = vsel %vm1936, %v1984, %v1690
  %v2033 = vsel %vm1937, %v1985, %v1697
  %v2034 = vsel %vm1938, %v1986, %v1704
  %v2035 = vsel %vm1939, %v1987, %v1711
  %v2036 = vsel %vm1940, %v1988, %v1718
  %v2037 = vsel %vm1941, %v1989, %v1725
  %v2038 = vsel %vm1942, %v1990, %v1732
  %v2039 = vsel %vm1943, %v1991, %v1739
  %v2040 = vsel %vm1944, %v1992, %v1746
  %v2041 = vsel %vm1945, %v1993, %v1753
  %v2042 = vsel %vm1946, %v1994, %v1760
  %v2043 = vsel %vm1947, %v1995, %v1767
  %v2044 = vsel %vm1948, %v1996, %v1774
  %v2045 = vsel %vm1949, %v1997, %v1781
  %v2046 = vsel %vm1950, %v1998, %v1788
  %v2047 = vsel %vm1951, %v1999, %v1795
  %v2048 = vsel %vm1952, %v2000, %v1802
  %v2049 = vsel %vm1953, %v2001, %v1809
  %vm2050 = vcmp.lt.s32.totalorder %v2002, 2
  %vm2051 = vcmp.lt.s32.totalorder %v2003, 2
  %vm2052 = vcmp.lt.s32.totalorder %v2004, 2
  %vm2053 = vcmp.lt.s32.totalorder %v2005, 2
  %vm2054 = vcmp.lt.s32.totalorder %v2006, 2
  %vm2055 = vcmp.lt.s32.totalorder %v2007, 2
  %vm2056 = vcmp.lt.s32.totalorder %v2008, 2
  %vm2057 = vcmp.lt.s32.totalorder %v2009, 2
  %vm2058 = vcmp.lt.s32.totalorder %v2010, 2
  %vm2059 = vcmp.lt.s32.totalorder %v2011, 2
  %vm2060 = vcmp.lt.s32.totalorder %v2012, 2
  %vm2061 = vcmp.lt.s32.totalorder %v2013, 2
  %vm2062 = vcmp.lt.s32.totalorder %v2014, 2
  %vm2063 = vcmp.lt.s32.totalorder %v2015, 2
  %vm2064 = vcmp.lt.s32.totalorder %v2016, 2
  %vm2065 = vcmp.lt.s32.totalorder %v2017, 2
  %vm2066 = vcmp.lt.s32.totalorder %v2018, 2
  %vm2067 = vcmp.lt.s32.totalorder %v2019, 2
  %vm2068 = vcmp.lt.s32.totalorder %v2020, 2
  %vm2069 = vcmp.lt.s32.totalorder %v2021, 2
  %vm2070 = vcmp.lt.s32.totalorder %v2022, 2
  %vm2071 = vcmp.lt.s32.totalorder %v2023, 2
  %vm2072 = vcmp.lt.s32.totalorder %v2024, 2
  %vm2073 = vcmp.lt.s32.totalorder %v2025, 2
  %vm2074 = vcmp.lt.s32.totalorder %v2026, 2
  %vm2075 = vcmp.lt.s32.totalorder %v2027, 2
  %vm2076 = vcmp.lt.s32.totalorder %v2028, 2
  %vm2077 = vcmp.lt.s32.totalorder %v2029, 2
  %vm2078 = vcmp.lt.s32.totalorder %v2030, 2
  %vm2079 = vcmp.lt.s32.totalorder %v2031, 2
  %vm2080 = vcmp.lt.s32.totalorder %v2032, 2
  %vm2081 = vcmp.lt.s32.totalorder %v2033, 2
  %vm2082 = vcmp.lt.s32.totalorder %v2034, 2
  %vm2083 = vcmp.lt.s32.totalorder %v2035, 2
  %vm2084 = vcmp.lt.s32.totalorder %v2036, 2
  %vm2085 = vcmp.lt.s32.totalorder %v2037, 2
  %vm2086 = vcmp.lt.s32.totalorder %v2038, 2
  %vm2087 = vcmp.lt.s32.totalorder %v2039, 2
  %vm2088 = vcmp.lt.s32.totalorder %v2040, 2
  %vm2089 = vcmp.lt.s32.totalorder %v2041, 2
  %vm2090 = vcmp.lt.s32.totalorder %v2042, 2
  %vm2091 = vcmp.lt.s32.totalorder %v2043, 2
  %vm2092 = vcmp.lt.s32.totalorder %v2044, 2
  %vm2093 = vcmp.lt.s32.totalorder %v2045, 2
  %vm2094 = vcmp.lt.s32.totalorder %v2046, 2
  %vm2095 = vcmp.lt.s32.totalorder %v2047, 2
  %vm2096 = vcmp.lt.s32.totalorder %v2048, 2
  %vm2097 = vcmp.lt.s32.totalorder %v2049, 2
  %v2098 = vsel %vm2050, 1, 0
  %v2099 = vsel %vm2051, 1, 0
  %v2100 = vsel %vm2052, 1, 0
  %v2101 = vsel %vm2053, 1, 0
  %v2102 = vsel %vm2054, 1, 0
  %v2103 = vsel %vm2055, 1, 0
  %v2104 = vsel %vm2056, 1, 0
  %v2105 = vsel %vm2057, 1, 0
  %v2106 = vsel %vm2058, 1, 0
  %v2107 = vsel %vm2059, 1, 0
  %v2108 = vsel %vm2060, 1, 0
  %v2109 = vsel %vm2061, 1, 0
  %v2110 = vsel %vm2062, 1, 0
  %v2111 = vsel %vm2063, 1, 0
  %v2112 = vsel %vm2064, 1, 0
  %v2113 = vsel %vm2065, 1, 0
  %v2114 = vsel %vm2066, 1, 0
  %v2115 = vsel %vm2067, 1, 0
  %v2116 = vsel %vm2068, 1, 0
  %v2117 = vsel %vm2069, 1, 0
  %v2118 = vsel %vm2070, 1, 0
  %v2119 = vsel %vm2071, 1, 0
  %v2120 = vsel %vm2072, 1, 0
  %v2121 = vsel %vm2073, 1, 0
  %v2122 = vsel %vm2074, 1, 0
  %v2123 = vsel %vm2075, 1, 0
  %v2124 = vsel %vm2076, 1, 0
  %v2125 = vsel %vm2077, 1, 0
  %v2126 = vsel %vm2078, 1, 0
  %v2127 = vsel %vm2079, 1, 0
  %v2128 = vsel %vm2080, 1, 0
  %v2129 = vsel %vm2081, 1, 0
  %v2130 = vsel %vm2082, 1, 0
  %v2131 = vsel %vm2083, 1, 0
  %v2132 = vsel %vm2084, 1, 0
  %v2133 = vsel %vm2085, 1, 0
  %v2134 = vsel %vm2086, 1, 0
  %v2135 = vsel %vm2087, 1, 0
  %v2136 = vsel %vm2088, 1, 0
  %v2137 = vsel %vm2089, 1, 0
  %v2138 = vsel %vm2090, 1, 0
  %v2139 = vsel %vm2091, 1, 0
  %v2140 = vsel %vm2092, 1, 0
  %v2141 = vsel %vm2093, 1, 0
  %v2142 = vsel %vm2094, 1, 0
  %v2143 = vsel %vm2095, 1, 0
  %v2144 = vsel %vm2096, 1, 0
  %v2145 = vsel %vm2097, 1, 0
  %v2146 = vcvt.s32.f32 %v2098
  %v2147 = vcvt.s32.f32 %v2099
  %v2148 = vcvt.s32.f32 %v2100
  %v2149 = vcvt.s32.f32 %v2101
  %v2150 = vcvt.s32.f32 %v2102
  %v2151 = vcvt.s32.f32 %v2103
  %v2152 = vcvt.s32.f32 %v2104
  %v2153 = vcvt.s32.f32 %v2105
  %v2154 = vcvt.s32.f32 %v2106
  %v2155 = vcvt.s32.f32 %v2107
  %v2156 = vcvt.s32.f32 %v2108
  %v2157 = vcvt.s32.f32 %v2109
  %v2158 = vcvt.s32.f32 %v2110
  %v2159 = vcvt.s32.f32 %v2111
  %v2160 = vcvt.s32.f32 %v2112
  %v2161 = vcvt.s32.f32 %v2113
  %v2162 = vcvt.s32.f32 %v2114
  %v2163 = vcvt.s32.f32 %v2115
  %v2164 = vcvt.s32.f32 %v2116
  %v2165 = vcvt.s32.f32 %v2117
  %v2166 = vcvt.s32.f32 %v2118
  %v2167 = vcvt.s32.f32 %v2119
  %v2168 = vcvt.s32.f32 %v2120
  %v2169 = vcvt.s32.f32 %v2121
  %v2170 = vcvt.s32.f32 %v2122
  %v2171 = vcvt.s32.f32 %v2123
  %v2172 = vcvt.s32.f32 %v2124
  %v2173 = vcvt.s32.f32 %v2125
  %v2174 = vcvt.s32.f32 %v2126
  %v2175 = vcvt.s32.f32 %v2127
  %v2176 = vcvt.s32.f32 %v2128
  %v2177 = vcvt.s32.f32 %v2129
  %v2178 = vcvt.s32.f32 %v2130
  %v2179 = vcvt.s32.f32 %v2131
  %v2180 = vcvt.s32.f32 %v2132
  %v2181 = vcvt.s32.f32 %v2133
  %v2182 = vcvt.s32.f32 %v2134
  %v2183 = vcvt.s32.f32 %v2135
  %v2184 = vcvt.s32.f32 %v2136
  %v2185 = vcvt.s32.f32 %v2137
  %v2186 = vcvt.s32.f32 %v2138
  %v2187 = vcvt.s32.f32 %v2139
  %v2188 = vcvt.s32.f32 %v2140
  %v2189 = vcvt.s32.f32 %v2141
  %v2190 = vcvt.s32.f32 %v2142
  %v2191 = vcvt.s32.f32 %v2143
  %v2192 = vcvt.s32.f32 %v2144
  %v2193 = vcvt.s32.f32 %v2145
  %v2194 = vmul.f32 %v857, %v377
  %v2195 = vmul.f32 %v1053, %v378
  %v2196 = vmul.f32 %v860, %v379
  %v2197 = vmul.f32 %v1056, %v380
  %v2198 = vmul.f32 %v865, %v381
  %v2199 = vmul.f32 %v1061, %v382
  %v2200 = vmul.f32 %v868, %v383
  %v2201 = vmul.f32 %v1064, %v384
  %v2202 = vmul.f32 %v1221, %v385
  %v2203 = vmul.f32 %v1364, %v386
  %v2204 = vmul.f32 %v1224, %v387
  %v2205 = vmul.f32 %v1367, %v388
  %v2206 = vmul.f32 %v1229, %v389
  %v2207 = vmul.f32 %v1372, %v390
  %v2208 = vmul.f32 %v1232, %v391
  %v2209 = vmul.f32 %v1375, %v392
  %v2210 = vmul.f32 %v873, %v2146
  %v2211 = vmul.f32 %v1069, %v2147
  %v2212 = vmul.f32 %v876, %v2148
  %v2213 = vmul.f32 %v1072, %v2149
  %v2214 = vmul.f32 %v881, %v2150
  %v2215 = vmul.f32 %v1077, %v2151
  %v2216 = vmul.f32 %v884, %v2152
  %v2217 = vmul.f32 %v1080, %v2153
  %v2218 = vmul.f32 %v1237, %v2154
  %v2219 = vmul.f32 %v1380, %v2155
  %v2220 = vmul.f32 %v1240, %v2156
  %v2221 = vmul.f32 %v1383, %v2157
  %v2222 = vmul.f32 %v1245, %v2158
  %v2223 = vmul.f32 %v1388, %v2159
  %v2224 = vmul.f32 %v1248, %v2160
  %v2225 = vmul.f32 %v1391, %v2161
  %v2226 = vmul.f32 %v889, %v2162
  %v2227 = vmul.f32 %v1085, %v2163
  %v2228 = vmul.f32 %v892, %v2164
  %v2229 = vmul.f32 %v1088, %v2165
  %v2230 = vmul.f32 %v897, %v2166
  %v2231 = vmul.f32 %v1093, %v2167
  %v2232 = vmul.f32 %v900, %v2168
  %v2233 = vmul.f32 %v1096, %v2169
  %v2234 = vmul.f32 %v1253, %v2170
  %v2235 = vmul.f32 %v1396, %v2171
  %v2236 = vmul.f32 %v1256, %v2172
  %v2237 = vmul.f32 %v1399, %v2173
  %v2238 = vmul.f32 %v1261, %v2174
  %v2239 = vmul.f32 %v1404, %v2175
  %v2240 = vmul.f32 %v1264, %v2176
  %v2241 = vmul.f32 %v1407, %v2177
  %v2242 = vmul.f32 %v905, %v2178
  %v2243 = vmul.f32 %v1101, %v2179
  %v2244 = vmul.f32 %v908, %v2180
  %v2245 = vmul.f32 %v1104, %v2181
  %v2246 = vmul.f32 %v913, %v2182
  %v2247 = vmul.f32 %v1109, %v2183
  %v2248 = vmul.f32 %v916, %v2184
  %v2249 = vmul.f32 %v1112, %v2185
  %v2250 = vmul.f32 %v1269, %v2186
  %v2251 = vmul.f32 %v1412, %v2187
  %v2252 = vmul.f32 %v1272, %v2188
  %v2253 = vmul.f32 %v1415, %v2189
  %v2254 = vmul.f32 %v1277, %v2190
  %v2255 = vmul.f32 %v1420, %v2191
  %v2256 = vmul.f32 %v1280, %v2192
  %v2257 = vmul.f32 %v1423, %v2193
  %vm2258 = vcmask 64512
  %v2259 = vsel %vm2258, %v2194, 0.0
  %v2260 = vsel %vm2258, %v2195, 0.0
  %v2261 = vadd.f32 %v2259, %v2260
  %v2262 = vsel %vm2258, %v2196, 0.0
  %v2263 = vadd.f32 %v2261, %v2262
  %v2264 = vsel %vm2258, %v2197, 0.0
  %v2265 = vadd.f32 %v2263, %v2264
  %v2266 = vsel %vm2258, %v2198, 0.0
  %v2267 = vadd.f32 %v2265, %v2266
  %v2268 = vsel %vm2258, %v2199, 0.0
  %v2269 = vadd.f32 %v2267, %v2268
  %v2270 = vsel %vm2258, %v2200, 0.0
  %v2271 = vadd.f32 %v2269, %v2270
  %v2272 = vsel %vm2258, %v2201, 0.0
  %v2273 = vadd.f32 %v2271, %v2272
  %v2274 = vsel %vm2258, %v2202, 0.0
  %v2275 = vadd.f32 %v2273, %v2274
  %v2276 = vsel %vm2258, %v2203, 0.0
  %v2277 = vadd.f32 %v2275, %v2276
  %v2278 = vsel %vm2258, %v2204, 0.0
  %v2279 = vadd.f32 %v2277, %v2278
  %v2280 = vsel %vm2258, %v2205, 0.0
  %v2281 = vadd.f32 %v2279, %v2280
  %v2282 = vsel %vm2258, %v2206, 0.0
  %v2283 = vadd.f32 %v2281, %v2282
  %v2284 = vsel %vm2258, %v2207, 0.0
  %v2285 = vadd.f32 %v2283, %v2284
  %v2286 = vsel %vm2258, %v2208, 0.0
  %v2287 = vadd.f32 %v2285, %v2286
  %v2288 = vsel %vm2258, %v2209, 0.0
  %v2289 = vadd.f32 %v2287, %v2288
  %v2290 = vsel %vm2258, %v2210, 0.0
  %v2291 = vadd.f32 %v2289, %v2290
  %v2292 = vsel %vm2258, %v2211, 0.0
  %v2293 = vadd.f32 %v2291, %v2292
  %v2294 = vsel %vm2258, %v2212, 0.0
  %v2295 = vadd.f32 %v2293, %v2294
  %v2296 = vsel %vm2258, %v2213, 0.0
  %v2297 = vadd.f32 %v2295, %v2296
  %v2298 = vsel %vm2258, %v2214, 0.0
  %v2299 = vadd.f32 %v2297, %v2298
  %v2300 = vsel %vm2258, %v2215, 0.0
  %v2301 = vadd.f32 %v2299, %v2300
  %v2302 = vsel %vm2258, %v2216, 0.0
  %v2303 = vadd.f32 %v2301, %v2302
  %v2304 = vsel %vm2258, %v2217, 0.0
  %v2305 = vadd.f32 %v2303, %v2304
  %v2306 = vsel %vm2258, %v2218, 0.0
  %v2307 = vadd.f32 %v2305, %v2306
  %v2308 = vsel %vm2258, %v2219, 0.0
  %v2309 = vadd.f32 %v2307, %v2308
  %v2310 = vsel %vm2258, %v2220, 0.0
  %v2311 = vadd.f32 %v2309, %v2310
  %v2312 = vsel %vm2258, %v2221, 0.0
  %v2313 = vadd.f32 %v2311, %v2312
  %v2314 = vsel %vm2258, %v2222, 0.0
  %v2315 = vadd.f32 %v2313, %v2314
  %v2316 = vsel %vm2258, %v2223, 0.0
  %v2317 = vadd.f32 %v2315, %v2316
  %v2318 = vsel %vm2258, %v2224, 0.0
  %v2319 = vadd.f32 %v2317, %v2318
  %v2320 = vsel %vm2258, %v2225, 0.0
  %v2321 = vadd.f32 %v2319, %v2320
  %v2322 = vsel %vm2258, %v2226, 0.0
  %v2323 = vadd.f32 %v2321, %v2322
  %v2324 = vsel %vm2258, %v2227, 0.0
  %v2325 = vadd.f32 %v2323, %v2324
  %v2326 = vsel %vm2258, %v2228, 0.0
  %v2327 = vadd.f32 %v2325, %v2326
  %v2328 = vsel %vm2258, %v2229, 0.0
  %v2329 = vadd.f32 %v2327, %v2328
  %v2330 = vsel %vm2258, %v2230, 0.0
  %v2331 = vadd.f32 %v2329, %v2330
  %v2332 = vsel %vm2258, %v2231, 0.0
  %v2333 = vadd.f32 %v2331, %v2332
  %v2334 = vsel %vm2258, %v2232, 0.0
  %v2335 = vadd.f32 %v2333, %v2334
  %v2336 = vsel %vm2258, %v2233, 0.0
  %v2337 = vadd.f32 %v2335, %v2336
  %v2338 = vsel %vm2258, %v2234, 0.0
  %v2339 = vadd.f32 %v2337, %v2338
  %v2340 = vsel %vm2258, %v2235, 0.0
  %v2341 = vadd.f32 %v2339, %v2340
  %v2342 = vsel %vm2258, %v2236, 0.0
  %v2343 = vadd.f32 %v2341, %v2342
  %v2344 = vsel %vm2258, %v2237, 0.0
  %v2345 = vadd.f32 %v2343, %v2344
  %v2346 = vsel %vm2258, %v2238, 0.0
  %v2347 = vadd.f32 %v2345, %v2346
  %v2348 = vsel %vm2258, %v2239, 0.0
  %v2349 = vadd.f32 %v2347, %v2348
  %v2350 = vsel %vm2258, %v2240, 0.0
  %v2351 = vadd.f32 %v2349, %v2350
  %v2352 = vsel %vm2258, %v2241, 0.0
  %v2353 = vadd.f32 %v2351, %v2352
  %v2354 = vsel %vm2258, %v2242, 0.0
  %v2355 = vadd.f32 %v2353, %v2354
  %v2356 = vsel %vm2258, %v2243, 0.0
  %v2357 = vadd.f32 %v2355, %v2356
  %v2358 = vsel %vm2258, %v2244, 0.0
  %v2359 = vadd.f32 %v2357, %v2358
  %v2360 = vsel %vm2258, %v2245, 0.0
  %v2361 = vadd.f32 %v2359, %v2360
  %v2362 = vsel %vm2258, %v2246, 0.0
  %v2363 = vadd.f32 %v2361, %v2362
  %v2364 = vsel %vm2258, %v2247, 0.0
  %v2365 = vadd.f32 %v2363, %v2364
  %v2366 = vsel %vm2258, %v2248, 0.0
  %v2367 = vadd.f32 %v2365, %v2366
  %v2368 = vsel %vm2258, %v2249, 0.0
  %v2369 = vadd.f32 %v2367, %v2368
  %v2370 = vsel %vm2258, %v2250, 0.0
  %v2371 = vadd.f32 %v2369, %v2370
  %v2372 = vsel %vm2258, %v2251, 0.0
  %v2373 = vadd.f32 %v2371, %v2372
  %v2374 = vsel %vm2258, %v2252, 0.0
  %v2375 = vadd.f32 %v2373, %v2374
  %v2376 = vsel %vm2258, %v2253, 0.0
  %v2377 = vadd.f32 %v2375, %v2376
  %v2378 = vsel %vm2258, %v2254, 0.0
  %v2379 = vadd.f32 %v2377, %v2378
  %v2380 = vsel %vm2258, %v2255, 0.0
  %v2381 = vadd.f32 %v2379, %v2380
  %v2382 = vsel %vm2258, %v2256, 0.0
  %v2383 = vadd.f32 %v2381, %v2382
  %v2384 = vsel %vm2258, %v2257, 0.0
  %v2385 = vadd.f32 %v2383, %v2384
  %v2386 = vrot.slane %v2385, 4
  %v2387 = vadd.f32 %v2385, %v2386
  %v2388 = vrot.slane %v2387, 2
  %v2389 = vadd.f32 %v2387, %v2388
  %v2390 = vrot.slane %v2389, 1
  %v2391 = vadd.f32 %v2389, %v2390
  %v2392 = vmul.f32 %v2391, 0.0078125
  %v2393 = vsub.f32 %v857, %v2392
  %v2394 = vsub.f32 %v1053, %v2392
  %v2395 = vsub.f32 %v860, %v2392
  %v2396 = vsub.f32 %v1056, %v2392
  %v2397 = vsub.f32 %v865, %v2392
  %v2398 = vsub.f32 %v1061, %v2392
  %v2399 = vsub.f32 %v868, %v2392
  %v2400 = vsub.f32 %v1064, %v2392
  %v2401 = vsub.f32 %v1221, %v2392
  %v2402 = vsub.f32 %v1364, %v2392
  %v2403 = vsub.f32 %v1224, %v2392
  %v2404 = vsub.f32 %v1367, %v2392
  %v2405 = vsub.f32 %v1229, %v2392
  %v2406 = vsub.f32 %v1372, %v2392
  %v2407 = vsub.f32 %v1232, %v2392
  %v2408 = vsub.f32 %v1375, %v2392
  %v2409 = vsub.f32 %v873, %v2392
  %v2410 = vsub.f32 %v1069, %v2392
  %v2411 = vsub.f32 %v876, %v2392
  %v2412 = vsub.f32 %v1072, %v2392
  %v2413 = vsub.f32 %v881, %v2392
  %v2414 = vsub.f32 %v1077, %v2392
  %v2415 = vsub.f32 %v884, %v2392
  %v2416 = vsub.f32 %v1080, %v2392
  %v2417 = vsub.f32 %v1237, %v2392
  %v2418 = vsub.f32 %v1380, %v2392
  %v2419 = vsub.f32 %v1240, %v2392
  %v2420 = vsub.f32 %v1383, %v2392
  %v2421 = vsub.f32 %v1245, %v2392
  %v2422 = vsub.f32 %v1388, %v2392
  %v2423 = vsub.f32 %v1248, %v2392
  %v2424 = vsub.f32 %v1391, %v2392
  %v2425 = vsub.f32 %v889, %v2392
  %v2426 = vsub.f32 %v1085, %v2392
  %v2427 = vsub.f32 %v892, %v2392
  %v2428 = vsub.f32 %v1088, %v2392
  %v2429 = vsub.f32 %v897, %v2392
  %v2430 = vsub.f32 %v1093, %v2392
  %v2431 = vsub.f32 %v900, %v2392
  %v2432 = vsub.f32 %v1096, %v2392
  %v2433 = vsub.f32 %v1253, %v2392
  %v2434 = vsub.f32 %v1396, %v2392
  %v2435 = vsub.f32 %v1256, %v2392
  %v2436 = vsub.f32 %v1399, %v2392
  %v2437 = vsub.f32 %v1261, %v2392
  %v2438 = vsub.f32 %v1404, %v2392
  %v2439 = vsub.f32 %v1264, %v2392
  %v2440 = vsub.f32 %v1407, %v2392
  %v2441 = vsub.f32 %v905, %v2392
  %v2442 = vsub.f32 %v1101, %v2392
  %v2443 = vsub.f32 %v908, %v2392
  %v2444 = vsub.f32 %v1104, %v2392
  %v2445 = vsub.f32 %v913, %v2392
  %v2446 = vsub.f32 %v1109, %v2392
  %v2447 = vsub.f32 %v916, %v2392
  %v2448 = vsub.f32 %v1112, %v2392
  %v2449 = vsub.f32 %v1269, %v2392
  %v2450 = vsub.f32 %v1412, %v2392
  %v2451 = vsub.f32 %v1272, %v2392
  %v2452 = vsub.f32 %v1415, %v2392
  %v2453 = vsub.f32 %v1277, %v2392
  %v2454 = vsub.f32 %v1420, %v2392
  %v2455 = vsub.f32 %v1280, %v2392
  %v2456 = vsub.f32 %v1423, %v2392
  %v2457 = vmul.f32 %v2393, %v2393
  %v2458 = vmul.f32 %v2394, %v2394
  %v2459 = vmul.f32 %v2395, %v2395
  %v2460 = vmul.f32 %v2396, %v2396
  %v2461 = vmul.f32 %v2397, %v2397
  %v2462 = vmul.f32 %v2398, %v2398
  %v2463 = vmul.f32 %v2399, %v2399
  %v2464 = vmul.f32 %v2400, %v2400
  %v2465 = vmul.f32 %v2401, %v2401
  %v2466 = vmul.f32 %v2402, %v2402
  %v2467 = vmul.f32 %v2403, %v2403
  %v2468 = vmul.f32 %v2404, %v2404
  %v2469 = vmul.f32 %v2405, %v2405
  %v2470 = vmul.f32 %v2406, %v2406
  %v2471 = vmul.f32 %v2407, %v2407
  %v2472 = vmul.f32 %v2408, %v2408
  %v2473 = vmul.f32 %v2409, %v2409
  %v2474 = vmul.f32 %v2410, %v2410
  %v2475 = vmul.f32 %v2411, %v2411
  %v2476 = vmul.f32 %v2412, %v2412
  %v2477 = vmul.f32 %v2413, %v2413
  %v2478 = vmul.f32 %v2414, %v2414
  %v2479 = vmul.f32 %v2415, %v2415
  %v2480 = vmul.f32 %v2416, %v2416
  %v2481 = vmul.f32 %v2417, %v2417
  %v2482 = vmul.f32 %v2418, %v2418
  %v2483 = vmul.f32 %v2419, %v2419
  %v2484 = vmul.f32 %v2420, %v2420
  %v2485 = vmul.f32 %v2421, %v2421
  %v2486 = vmul.f32 %v2422, %v2422
  %v2487 = vmul.f32 %v2423, %v2423
  %v2488 = vmul.f32 %v2424, %v2424
  %v2489 = vmul.f32 %v2425, %v2425
  %v2490 = vmul.f32 %v2426, %v2426
  %v2491 = vmul.f32 %v2427, %v2427
  %v2492 = vmul.f32 %v2428, %v2428
  %v2493 = vmul.f32 %v2429, %v2429
  %v2494 = vmul.f32 %v2430, %v2430
  %v2495 = vmul.f32 %v2431, %v2431
  %v2496 = vmul.f32 %v2432, %v2432
  %v2497 = vmul.f32 %v2433, %v2433
  %v2498 = vmul.f32 %v2434, %v2434
  %v2499 = vmul.f32 %v2435, %v2435
  %v2500 = vmul.f32 %v2436, %v2436
  %v2501 = vmul.f32 %v2437, %v2437
  %v2502 = vmul.f32 %v2438, %v2438
  %v2503 = vmul.f32 %v2439, %v2439
  %v2504 = vmul.f32 %v2440, %v2440
  %v2505 = vmul.f32 %v2441, %v2441
  %v2506 = vmul.f32 %v2442, %v2442
  %v2507 = vmul.f32 %v2443, %v2443
  %v2508 = vmul.f32 %v2444, %v2444
  %v2509 = vmul.f32 %v2445, %v2445
  %v2510 = vmul.f32 %v2446, %v2446
  %v2511 = vmul.f32 %v2447, %v2447
  %v2512 = vmul.f32 %v2448, %v2448
  %v2513 = vmul.f32 %v2449, %v2449
  %v2514 = vmul.f32 %v2450, %v2450
  %v2515 = vmul.f32 %v2451, %v2451
  %v2516 = vmul.f32 %v2452, %v2452
  %v2517 = vmul.f32 %v2453, %v2453
  %v2518 = vmul.f32 %v2454, %v2454
  %v2519 = vmul.f32 %v2455, %v2455
  %v2520 = vmul.f32 %v2456, %v2456
  %v2521 = vmul.f32 %v2457, %v377
  %v2522 = vmul.f32 %v2458, %v378
  %v2523 = vmul.f32 %v2459, %v379
  %v2524 = vmul.f32 %v2460, %v380
  %v2525 = vmul.f32 %v2461, %v381
  %v2526 = vmul.f32 %v2462, %v382
  %v2527 = vmul.f32 %v2463, %v383
  %v2528 = vmul.f32 %v2464, %v384
  %v2529 = vmul.f32 %v2465, %v385
  %v2530 = vmul.f32 %v2466, %v386
  %v2531 = vmul.f32 %v2467, %v387
  %v2532 = vmul.f32 %v2468, %v388
  %v2533 = vmul.f32 %v2469, %v389
  %v2534 = vmul.f32 %v2470, %v390
  %v2535 = vmul.f32 %v2471, %v391
  %v2536 = vmul.f32 %v2472, %v392
  %v2537 = vmul.f32 %v2473, %v2146
  %v2538 = vmul.f32 %v2474, %v2147
  %v2539 = vmul.f32 %v2475, %v2148
  %v2540 = vmul.f32 %v2476, %v2149
  %v2541 = vmul.f32 %v2477, %v2150
  %v2542 = vmul.f32 %v2478, %v2151
  %v2543 = vmul.f32 %v2479, %v2152
  %v2544 = vmul.f32 %v2480, %v2153
  %v2545 = vmul.f32 %v2481, %v2154
  %v2546 = vmul.f32 %v2482, %v2155
  %v2547 = vmul.f32 %v2483, %v2156
  %v2548 = vmul.f32 %v2484, %v2157
  %v2549 = vmul.f32 %v2485, %v2158
  %v2550 = vmul.f32 %v2486, %v2159
  %v2551 = vmul.f32 %v2487, %v2160
  %v2552 = vmul.f32 %v2488, %v2161
  %v2553 = vmul.f32 %v2489, %v2162
  %v2554 = vmul.f32 %v2490, %v2163
  %v2555 = vmul.f32 %v2491, %v2164
  %v2556 = vmul.f32 %v2492, %v2165
  %v2557 = vmul.f32 %v2493, %v2166
  %v2558 = vmul.f32 %v2494, %v2167
  %v2559 = vmul.f32 %v2495, %v2168
  %v2560 = vmul.f32 %v2496, %v2169
  %v2561 = vmul.f32 %v2497, %v2170
  %v2562 = vmul.f32 %v2498, %v2171
  %v2563 = vmul.f32 %v2499, %v2172
  %v2564 = vmul.f32 %v2500, %v2173
  %v2565 = vmul.f32 %v2501, %v2174
  %v2566 = vmul.f32 %v2502, %v2175
  %v2567 = vmul.f32 %v2503, %v2176
  %v2568 = vmul.f32 %v2504, %v2177
  %v2569 = vmul.f32 %v2505, %v2178
  %v2570 = vmul.f32 %v2506, %v2179
  %v2571 = vmul.f32 %v2507, %v2180
  %v2572 = vmul.f32 %v2508, %v2181
  %v2573 = vmul.f32 %v2509, %v2182
  %v2574 = vmul.f32 %v2510, %v2183
  %v2575 = vmul.f32 %v2511, %v2184
  %v2576 = vmul.f32 %v2512, %v2185
  %v2577 = vmul.f32 %v2513, %v2186
  %v2578 = vmul.f32 %v2514, %v2187
  %v2579 = vmul.f32 %v2515, %v2188
  %v2580 = vmul.f32 %v2516, %v2189
  %v2581 = vmul.f32 %v2517, %v2190
  %v2582 = vmul.f32 %v2518, %v2191
  %v2583 = vmul.f32 %v2519, %v2192
  %v2584 = vmul.f32 %v2520, %v2193
  %v2585 = vsel %vm2258, %v2521, 0.0
  %v2586 = vsel %vm2258, %v2522, 0.0
  %v2587 = vadd.f32 %v2585, %v2586
  %v2588 = vsel %vm2258, %v2523, 0.0
  %v2589 = vadd.f32 %v2587, %v2588
  %v2590 = vsel %vm2258, %v2524, 0.0
  %v2591 = vadd.f32 %v2589, %v2590
  %v2592 = vsel %vm2258, %v2525, 0.0
  %v2593 = vadd.f32 %v2591, %v2592
  %v2594 = vsel %vm2258, %v2526, 0.0
  %v2595 = vadd.f32 %v2593, %v2594
  %v2596 = vsel %vm2258, %v2527, 0.0
  %v2597 = vadd.f32 %v2595, %v2596
  %v2598 = vsel %vm2258, %v2528, 0.0
  %v2599 = vadd.f32 %v2597, %v2598
  %v2600 = vsel %vm2258, %v2529, 0.0
  %v2601 = vadd.f32 %v2599, %v2600
  %v2602 = vsel %vm2258, %v2530, 0.0
  %v2603 = vadd.f32 %v2601, %v2602
  %v2604 = vsel %vm2258, %v2531, 0.0
  %v2605 = vadd.f32 %v2603, %v2604
  %v2606 = vsel %vm2258, %v2532, 0.0
  %v2607 = vadd.f32 %v2605, %v2606
  %v2608 = vsel %vm2258, %v2533, 0.0
  %v2609 = vadd.f32 %v2607, %v2608
  %v2610 = vsel %vm2258, %v2534, 0.0
  %v2611 = vadd.f32 %v2609, %v2610
  %v2612 = vsel %vm2258, %v2535, 0.0
  %v2613 = vadd.f32 %v2611, %v2612
  %v2614 = vsel %vm2258, %v2536, 0.0
  %v2615 = vadd.f32 %v2613, %v2614
  %v2616 = vsel %vm2258, %v2537, 0.0
  %v2617 = vadd.f32 %v2615, %v2616
  %v2618 = vsel %vm2258, %v2538, 0.0
  %v2619 = vadd.f32 %v2617, %v2618
  %v2620 = vsel %vm2258, %v2539, 0.0
  %v2621 = vadd.f32 %v2619, %v2620
  %v2622 = vsel %vm2258, %v2540, 0.0
  %v2623 = vadd.f32 %v2621, %v2622
  %v2624 = vsel %vm2258, %v2541, 0.0
  %v2625 = vadd.f32 %v2623, %v2624
  %v2626 = vsel %vm2258, %v2542, 0.0
  %v2627 = vadd.f32 %v2625, %v2626
  %v2628 = vsel %vm2258, %v2543, 0.0
  %v2629 = vadd.f32 %v2627, %v2628
  %v2630 = vsel %vm2258, %v2544, 0.0
  %v2631 = vadd.f32 %v2629, %v2630
  %v2632 = vsel %vm2258, %v2545, 0.0
  %v2633 = vadd.f32 %v2631, %v2632
  %v2634 = vsel %vm2258, %v2546, 0.0
  %v2635 = vadd.f32 %v2633, %v2634
  %v2636 = vsel %vm2258, %v2547, 0.0
  %v2637 = vadd.f32 %v2635, %v2636
  %v2638 = vsel %vm2258, %v2548, 0.0
  %v2639 = vadd.f32 %v2637, %v2638
  %v2640 = vsel %vm2258, %v2549, 0.0
  %v2641 = vadd.f32 %v2639, %v2640
  %v2642 = vsel %vm2258, %v2550, 0.0
  %v2643 = vadd.f32 %v2641, %v2642
  %v2644 = vsel %vm2258, %v2551, 0.0
  %v2645 = vadd.f32 %v2643, %v2644
  %v2646 = vsel %vm2258, %v2552, 0.0
  %v2647 = vadd.f32 %v2645, %v2646
  %v2648 = vsel %vm2258, %v2553, 0.0
  %v2649 = vadd.f32 %v2647, %v2648
  %v2650 = vsel %vm2258, %v2554, 0.0
  %v2651 = vadd.f32 %v2649, %v2650
  %v2652 = vsel %vm2258, %v2555, 0.0
  %v2653 = vadd.f32 %v2651, %v2652
  %v2654 = vsel %vm2258, %v2556, 0.0
  %v2655 = vadd.f32 %v2653, %v2654
  %v2656 = vsel %vm2258, %v2557, 0.0
  %v2657 = vadd.f32 %v2655, %v2656
  %v2658 = vsel %vm2258, %v2558, 0.0
  %v2659 = vadd.f32 %v2657, %v2658
  %v2660 = vsel %vm2258, %v2559, 0.0
  %v2661 = vadd.f32 %v2659, %v2660
  %v2662 = vsel %vm2258, %v2560, 0.0
  %v2663 = vadd.f32 %v2661, %v2662
  %v2664 = vsel %vm2258, %v2561, 0.0
  %v2665 = vadd.f32 %v2663, %v2664
  %v2666 = vsel %vm2258, %v2562, 0.0
  %v2667 = vadd.f32 %v2665, %v2666
  %v2668 = vsel %vm2258, %v2563, 0.0
  %v2669 = vadd.f32 %v2667, %v2668
  %v2670 = vsel %vm2258, %v2564, 0.0
  %v2671 = vadd.f32 %v2669, %v2670
  %v2672 = vsel %vm2258, %v2565, 0.0
  %v2673 = vadd.f32 %v2671, %v2672
  %v2674 = vsel %vm2258, %v2566, 0.0
  %v2675 = vadd.f32 %v2673, %v2674
  %v2676 = vsel %vm2258, %v2567, 0.0
  %v2677 = vadd.f32 %v2675, %v2676
  %v2678 = vsel %vm2258, %v2568, 0.0
  %v2679 = vadd.f32 %v2677, %v2678
  %v2680 = vsel %vm2258, %v2569, 0.0
  %v2681 = vadd.f32 %v2679, %v2680
  %v2682 = vsel %vm2258, %v2570, 0.0
  %v2683 = vadd.f32 %v2681, %v2682
  %v2684 = vsel %vm2258, %v2571, 0.0
  %v2685 = vadd.f32 %v2683, %v2684
  %v2686 = vsel %vm2258, %v2572, 0.0
  %v2687 = vadd.f32 %v2685, %v2686
  %v2688 = vsel %vm2258, %v2573, 0.0
  %v2689 = vadd.f32 %v2687, %v2688
  %v2690 = vsel %vm2258, %v2574, 0.0
  %v2691 = vadd.f32 %v2689, %v2690
  %v2692 = vsel %vm2258, %v2575, 0.0
  %v2693 = vadd.f32 %v2691, %v2692
  %v2694 = vsel %vm2258, %v2576, 0.0
  %v2695 = vadd.f32 %v2693, %v2694
  %v2696 = vsel %vm2258, %v2577, 0.0
  %v2697 = vadd.f32 %v2695, %v2696
  %v2698 = vsel %vm2258, %v2578, 0.0
  %v2699 = vadd.f32 %v2697, %v2698
  %v2700 = vsel %vm2258, %v2579, 0.0
  %v2701 = vadd.f32 %v2699, %v2700
  %v2702 = vsel %vm2258, %v2580, 0.0
  %v2703 = vadd.f32 %v2701, %v2702
  %v2704 = vsel %vm2258, %v2581, 0.0
  %v2705 = vadd.f32 %v2703, %v2704
  %v2706 = vsel %vm2258, %v2582, 0.0
  %v2707 = vadd.f32 %v2705, %v2706
  %v2708 = vsel %vm2258, %v2583, 0.0
  %v2709 = vadd.f32 %v2707, %v2708
  %v2710 = vsel %vm2258, %v2584, 0.0
  %v2711 = vadd.f32 %v2709, %v2710
  %v2712 = vrot.slane %v2711, 4
  %v2713 = vadd.f32 %v2711, %v2712
  %v2714 = vrot.slane %v2713, 2
  %v2715 = vadd.f32 %v2713, %v2714
  %v2716 = vrot.slane %v2715, 1
  %v2717 = vadd.f32 %v2715, %v2716
  %v2718 = vmul.f32 %v2717, 0.0078125
  %v2719 = vadd.f32 %v2718, 1e-05
  %v2720 = vrsqrt.pop %v2719
  %v2721 = vmul.f32 %v2393, %v2720
  %v2722 = vmul.f32 %v2394, %v2720
  %v2723 = vmul.f32 %v2395, %v2720
  %v2724 = vmul.f32 %v2396, %v2720
  %v2725 = vmul.f32 %v2397, %v2720
  %v2726 = vmul.f32 %v2398, %v2720
  %v2727 = vmul.f32 %v2399, %v2720
  %v2728 = vmul.f32 %v2400, %v2720
  %v2729 = vmul.f32 %v2401, %v2720
  %v2730 = vmul.f32 %v2402, %v2720
  %v2731 = vmul.f32 %v2403, %v2720
  %v2732 = vmul.f32 %v2404, %v2720
  %v2733 = vmul.f32 %v2405, %v2720
  %v2734 = vmul.f32 %v2406, %v2720
  %v2735 = vmul.f32 %v2407, %v2720
  %v2736 = vmul.f32 %v2408, %v2720
  %v2737 = vmul.f32 %v2409, %v2720
  %v2738 = vmul.f32 %v2410, %v2720
  %v2739 = vmul.f32 %v2411, %v2720
  %v2740 = vmul.f32 %v2412, %v2720
  %v2741 = vmul.f32 %v2413, %v2720
  %v2742 = vmul.f32 %v2414, %v2720
  %v2743 = vmul.f32 %v2415, %v2720
  %v2744 = vmul.f32 %v2416, %v2720
  %v2745 = vmul.f32 %v2417, %v2720
  %v2746 = vmul.f32 %v2418, %v2720
  %v2747 = vmul.f32 %v2419, %v2720
  %v2748 = vmul.f32 %v2420, %v2720
  %v2749 = vmul.f32 %v2421, %v2720
  %v2750 = vmul.f32 %v2422, %v2720
  %v2751 = vmul.f32 %v2423, %v2720
  %v2752 = vmul.f32 %v2424, %v2720
  %v2753 = vmul.f32 %v2425, %v2720
  %v2754 = vmul.f32 %v2426, %v2720
  %v2755 = vmul.f32 %v2427, %v2720
  %v2756 = vmul.f32 %v2428, %v2720
  %v2757 = vmul.f32 %v2429, %v2720
  %v2758 = vmul.f32 %v2430, %v2720
  %v2759 = vmul.f32 %v2431, %v2720
  %v2760 = vmul.f32 %v2432, %v2720
  %v2761 = vmul.f32 %v2433, %v2720
  %v2762 = vmul.f32 %v2434, %v2720
  %v2763 = vmul.f32 %v2435, %v2720
  %v2764 = vmul.f32 %v2436, %v2720
  %v2765 = vmul.f32 %v2437, %v2720
  %v2766 = vmul.f32 %v2438, %v2720
  %v2767 = vmul.f32 %v2439, %v2720
  %v2768 = vmul.f32 %v2440, %v2720
  %v2769 = vmul.f32 %v2441, %v2720
  %v2770 = vmul.f32 %v2442, %v2720
  %v2771 = vmul.f32 %v2443, %v2720
  %v2772 = vmul.f32 %v2444, %v2720
  %v2773 = vmul.f32 %v2445, %v2720
  %v2774 = vmul.f32 %v2446, %v2720
  %v2775 = vmul.f32 %v2447, %v2720
  %v2776 = vmul.f32 %v2448, %v2720
  %v2777 = vmul.f32 %v2449, %v2720
  %v2778 = vmul.f32 %v2450, %v2720
  %v2779 = vmul.f32 %v2451, %v2720
  %v2780 = vmul.f32 %v2452, %v2720
  %v2781 = vmul.f32 %v2453, %v2720
  %v2782 = vmul.f32 %v2454, %v2720
  %v2783 = vmul.f32 %v2455, %v2720
  %v2784 = vmul.f32 %v2456, %v2720
  %v2785 = vmul.f32 %v2721, 0.2
  %v2786 = vmul.f32 %v2722, 0.2
  %v2787 = vmul.f32 %v2723, 0.2
  %v2788 = vmul.f32 %v2724, 0.2
  %v2789 = vmul.f32 %v2725, 0.2
  %v2790 = vmul.f32 %v2726, 0.2
  %v2791 = vmul.f32 %v2727, 0.2
  %v2792 = vmul.f32 %v2728, 0.2
  %v2793 = vmul.f32 %v2729, 0.2
  %v2794 = vmul.f32 %v2730, 0.2
  %v2795 = vmul.f32 %v2731, 0.2
  %v2796 = vmul.f32 %v2732, 0.2
  %v2797 = vmul.f32 %v2733, 0.2
  %v2798 = vmul.f32 %v2734, 0.2
  %v2799 = vmul.f32 %v2735, 0.2
  %v2800 = vmul.f32 %v2736, 0.2
  %v2801 = vmul.f32 %v2737, 0.2
  %v2802 = vmul.f32 %v2738, 0.2
  %v2803 = vmul.f32 %v2739, 0.2
  %v2804 = vmul.f32 %v2740, 0.2
  %v2805 = vmul.f32 %v2741, 0.2
  %v2806 = vmul.f32 %v2742, 0.2
  %v2807 = vmul.f32 %v2743, 0.2
  %v2808 = vmul.f32 %v2744, 0.2
  %v2809 = vmul.f32 %v2745, 0.2
  %v2810 = vmul.f32 %v2746, 0.2
  %v2811 = vmul.f32 %v2747, 0.2
  %v2812 = vmul.f32 %v2748, 0.2
  %v2813 = vmul.f32 %v2749, 0.2
  %v2814 = vmul.f32 %v2750, 0.2
  %v2815 = vmul.f32 %v2751, 0.2
  %v2816 = vmul.f32 %v2752, 0.2
  %v2817 = vmul.f32 %v2753, 0.2
  %v2818 = vmul.f32 %v2754, 0.2
  %v2819 = vmul.f32 %v2755, 0.2
  %v2820 = vmul.f32 %v2756, 0.2
  %v2821 = vmul.f32 %v2757, 0.2
  %v2822 = vmul.f32 %v2758, 0.2
  %v2823 = vmul.f32 %v2759, 0.2
  %v2824 = vmul.f32 %v2760, 0.2
  %v2825 = vmul.f32 %v2761, 0.2
  %v2826 = vmul.f32 %v2762, 0.2
  %v2827 = vmul.f32 %v2763, 0.2
  %v2828 = vmul.f32 %v2764, 0.2
  %v2829 = vmul.f32 %v2765, 0.2
  %v2830 = vmul.f32 %v2766, 0.2
  %v2831 = vmul.f32 %v2767, 0.2
  %v2832 = vmul.f32 %v2768, 0.2
  %v2833 = vmul.f32 %v2769, 0.2
  %v2834 = vmul.f32 %v2770, 0.2
  %v2835 = vmul.f32 %v2771, 0.2
  %v2836 = vmul.f32 %v2772, 0.2
  %v2837 = vmul.f32 %v2773, 0.2
  %v2838 = vmul.f32 %v2774, 0.2
  %v2839 = vmul.f32 %v2775, 0.2
  %v2840 = vmul.f32 %v2776, 0.2
  %v2841 = vmul.f32 %v2777, 0.2
  %v2842 = vmul.f32 %v2778, 0.2
  %v2843 = vmul.f32 %v2779, 0.2
  %v2844 = vmul.f32 %v2780, 0.2
  %v2845 = vmul.f32 %v2781, 0.2
  %v2846 = vmul.f32 %v2782, 0.2
  %v2847 = vmul.f32 %v2783, 0.2
  %v2848 = vmul.f32 %v2784, 0.2
  %v2849 = vmax.f32 %v2721, %v2785
  %v2850 = vmax.f32 %v2722, %v2786
  %v2851 = vmax.f32 %v2723, %v2787
  %v2852 = vmax.f32 %v2724, %v2788
  %v2853 = vmax.f32 %v2725, %v2789
  %v2854 = vmax.f32 %v2726, %v2790
  %v2855 = vmax.f32 %v2727, %v2791
  %v2856 = vmax.f32 %v2728, %v2792
  %v2857 = vmax.f32 %v2729, %v2793
  %v2858 = vmax.f32 %v2730, %v2794
  %v2859 = vmax.f32 %v2731, %v2795
  %v2860 = vmax.f32 %v2732, %v2796
  %v2861 = vmax.f32 %v2733, %v2797
  %v2862 = vmax.f32 %v2734, %v2798
  %v2863 = vmax.f32 %v2735, %v2799
  %v2864 = vmax.f32 %v2736, %v2800
  %v2865 = vmax.f32 %v2737, %v2801
  %v2866 = vmax.f32 %v2738, %v2802
  %v2867 = vmax.f32 %v2739, %v2803
  %v2868 = vmax.f32 %v2740, %v2804
  %v2869 = vmax.f32 %v2741, %v2805
  %v2870 = vmax.f32 %v2742, %v2806
  %v2871 = vmax.f32 %v2743, %v2807
  %v2872 = vmax.f32 %v2744, %v2808
  %v2873 = vmax.f32 %v2745, %v2809
  %v2874 = vmax.f32 %v2746, %v2810
  %v2875 = vmax.f32 %v2747, %v2811
  %v2876 = vmax.f32 %v2748, %v2812
  %v2877 = vmax.f32 %v2749, %v2813
  %v2878 = vmax.f32 %v2750, %v2814
  %v2879 = vmax.f32 %v2751, %v2815
  %v2880 = vmax.f32 %v2752, %v2816
  %v2881 = vmax.f32 %v2753, %v2817
  %v2882 = vmax.f32 %v2754, %v2818
  %v2883 = vmax.f32 %v2755, %v2819
  %v2884 = vmax.f32 %v2756, %v2820
  %v2885 = vmax.f32 %v2757, %v2821
  %v2886 = vmax.f32 %v2758, %v2822
  %v2887 = vmax.f32 %v2759, %v2823
  %v2888 = vmax.f32 %v2760, %v2824
  %v2889 = vmax.f32 %v2761, %v2825
  %v2890 = vmax.f32 %v2762, %v2826
  %v2891 = vmax.f32 %v2763, %v2827
  %v2892 = vmax.f32 %v2764, %v2828
  %v2893 = vmax.f32 %v2765, %v2829
  %v2894 = vmax.f32 %v2766, %v2830
  %v2895 = vmax.f32 %v2767, %v2831
  %v2896 = vmax.f32 %v2768, %v2832
  %v2897 = vmax.f32 %v2769, %v2833
  %v2898 = vmax.f32 %v2770, %v2834
  %v2899 = vmax.f32 %v2771, %v2835
  %v2900 = vmax.f32 %v2772, %v2836
  %v2901 = vmax.f32 %v2773, %v2837
  %v2902 = vmax.f32 %v2774, %v2838
  %v2903 = vmax.f32 %v2775, %v2839
  %v2904 = vmax.f32 %v2776, %v2840
  %v2905 = vmax.f32 %v2777, %v2841
  %v2906 = vmax.f32 %v2778, %v2842
  %v2907 = vmax.f32 %v2779, %v2843
  %v2908 = vmax.f32 %v2780, %v2844
  %v2909 = vmax.f32 %v2781, %v2845
  %v2910 = vmax.f32 %v2782, %v2846
  %v2911 = vmax.f32 %v2783, %v2847
  %v2912 = vmax.f32 %v2784, %v2848
  %2969 = vrot.lane.b32.xlu0 0.0, 8
  %v2970 = vpop.permute.xlu0 %2969
  %2971 = vrot.lane.b32.xlu0 %v2849, 8
  %v2972 = vpop.permute.xlu0 %2971
  %2973 = vrot.lane.b32.xlu0 %v2850, 8
  %v2974 = vpop.permute.xlu0 %2973
  %2975 = vrot.lane.b32.xlu0 %v2851, 8
  %v2976 = vpop.permute.xlu0 %2975
  %2977 = vrot.lane.b32.xlu0 %v2852, 8
  %v2978 = vpop.permute.xlu0 %2977
  %2979 = vrot.lane.b32.xlu0 %v2853, 8
  %v2980 = vpop.permute.xlu0 %2979
  %2981 = vrot.lane.b32.xlu0 %v2854, 8
  %v2982 = vpop.permute.xlu0 %2981
  %2983 = vrot.lane.b32.xlu0 %v2855, 8
  %v2984 = vpop.permute.xlu0 %2983
  %2985 = vrot.lane.b32.xlu0 %v2857, 8
  %v2986 = vpop.permute.xlu0 %2985
  %2987 = vrot.lane.b32.xlu0 %v2858, 8
  %v2988 = vpop.permute.xlu0 %2987
  %2989 = vrot.lane.b32.xlu0 %v2859, 8
  %v2990 = vpop.permute.xlu0 %2989
  %2991 = vrot.lane.b32.xlu0 %v2860, 8
  %v2992 = vpop.permute.xlu0 %2991
  %2993 = vrot.lane.b32.xlu0 %v2861, 8
  %v2994 = vpop.permute.xlu0 %2993
  %2995 = vrot.lane.b32.xlu0 %v2862, 8
  %v2996 = vpop.permute.xlu0 %2995
  %2997 = vrot.lane.b32.xlu0 %v2863, 8
  %v2998 = vpop.permute.xlu0 %2997
  %2999 = vrot.lane.b32.xlu0 %v2865, 8
  %v3000 = vpop.permute.xlu0 %2999
  %3001 = vrot.lane.b32.xlu0 %v2866, 8
  %v3002 = vpop.permute.xlu0 %3001
  %3003 = vrot.lane.b32.xlu0 %v2867, 8
  %v3004 = vpop.permute.xlu0 %3003
  %3005 = vrot.lane.b32.xlu0 %v2868, 8
  %v3006 = vpop.permute.xlu0 %3005
  %3007 = vrot.lane.b32.xlu0 %v2869, 8
  %v3008 = vpop.permute.xlu0 %3007
  %3009 = vrot.lane.b32.xlu0 %v2870, 8
  %v3010 = vpop.permute.xlu0 %3009
  %3011 = vrot.lane.b32.xlu0 %v2871, 8
  %v3012 = vpop.permute.xlu0 %3011
  %3013 = vrot.lane.b32.xlu0 %v2873, 8
  %v3014 = vpop.permute.xlu0 %3013
  %3015 = vrot.lane.b32.xlu0 %v2874, 8
  %v3016 = vpop.permute.xlu0 %3015
  %3017 = vrot.lane.b32.xlu0 %v2875, 8
  %v3018 = vpop.permute.xlu0 %3017
  %3019 = vrot.lane.b32.xlu0 %v2876, 8
  %v3020 = vpop.permute.xlu0 %3019
  %3021 = vrot.lane.b32.xlu0 %v2877, 8
  %v3022 = vpop.permute.xlu0 %3021
  %3023 = vrot.lane.b32.xlu0 %v2878, 8
  %v3024 = vpop.permute.xlu0 %3023
  %3025 = vrot.lane.b32.xlu0 %v2879, 8
  %v3026 = vpop.permute.xlu0 %3025
  %3027 = vrot.lane.b32.xlu0 %v2881, 8
  %v3028 = vpop.permute.xlu0 %3027
  %3029 = vrot.lane.b32.xlu0 %v2882, 8
  %v3030 = vpop.permute.xlu0 %3029
  %3031 = vrot.lane.b32.xlu0 %v2883, 8
  %v3032 = vpop.permute.xlu0 %3031
  %3033 = vrot.lane.b32.xlu0 %v2884, 8
  %v3034 = vpop.permute.xlu0 %3033
  %3035 = vrot.lane.b32.xlu0 %v2885, 8
  %v3036 = vpop.permute.xlu0 %3035
  %3037 = vrot.lane.b32.xlu0 %v2886, 8
  %v3038 = vpop.permute.xlu0 %3037
  %3039 = vrot.lane.b32.xlu0 %v2887, 8
  %v3040 = vpop.permute.xlu0 %3039
  %3041 = vrot.lane.b32.xlu0 %v2889, 8
  %v3042 = vpop.permute.xlu0 %3041
  %3043 = vrot.lane.b32.xlu0 %v2890, 8
  %v3044 = vpop.permute.xlu0 %3043
  %3045 = vrot.lane.b32.xlu0 %v2891, 8
  %v3046 = vpop.permute.xlu0 %3045
  %3047 = vrot.lane.b32.xlu0 %v2892, 8
  %v3048 = vpop.permute.xlu0 %3047
  %3049 = vrot.lane.b32.xlu0 %v2893, 8
  %v3050 = vpop.permute.xlu0 %3049
  %3051 = vrot.lane.b32.xlu0 %v2894, 8
  %v3052 = vpop.permute.xlu0 %3051
  %3053 = vrot.lane.b32.xlu0 %v2895, 8
  %v3054 = vpop.permute.xlu0 %3053
  %3055 = vrot.lane.b32.xlu0 %v2897, 8
  %v3056 = vpop.permute.xlu0 %3055
  %3057 = vrot.lane.b32.xlu0 %v2898, 8
  %v3058 = vpop.permute.xlu0 %3057
  %3059 = vrot.lane.b32.xlu0 %v2899, 8
  %v3060 = vpop.permute.xlu0 %3059
  %3061 = vrot.lane.b32.xlu0 %v2900, 8
  %v3062 = vpop.permute.xlu0 %3061
  %3063 = vrot.lane.b32.xlu0 %v2901, 8
  %v3064 = vpop.permute.xlu0 %3063
  %3065 = vrot.lane.b32.xlu0 %v2902, 8
  %v3066 = vpop.permute.xlu0 %3065
  %3067 = vrot.lane.b32.xlu0 %v2903, 8
  %v3068 = vpop.permute.xlu0 %3067
  %3069 = vrot.lane.b32.xlu0 %v2905, 8
  %v3070 = vpop.permute.xlu0 %3069
  %3071 = vrot.lane.b32.xlu0 %v2906, 8
  %v3072 = vpop.permute.xlu0 %3071
  %3073 = vrot.lane.b32.xlu0 %v2907, 8
  %v3074 = vpop.permute.xlu0 %3073
  %3075 = vrot.lane.b32.xlu0 %v2908, 8
  %v3076 = vpop.permute.xlu0 %3075
  %3077 = vrot.lane.b32.xlu0 %v2909, 8
  %v3078 = vpop.permute.xlu0 %3077
  %3079 = vrot.lane.b32.xlu0 %v2910, 8
  %v3080 = vpop.permute.xlu0 %3079
  %3081 = vrot.lane.b32.xlu0 %v2911, 8
  %v3082 = vpop.permute.xlu0 %3081
  %3147 = vrot.lane.b32.xlu0 %v2849, 16
  %v3148 = vpop.permute.xlu0 %3147
  %3149 = vrot.lane.b32.xlu0 %v2850, 16
  %v3150 = vpop.permute.xlu0 %3149
  %3151 = vrot.lane.b32.xlu0 %v2851, 16
  %v3152 = vpop.permute.xlu0 %3151
  %3153 = vrot.lane.b32.xlu0 %v2852, 16
  %v3154 = vpop.permute.xlu0 %3153
  %3155 = vrot.lane.b32.xlu0 %v2853, 16
  %v3156 = vpop.permute.xlu0 %3155
  %3157 = vrot.lane.b32.xlu0 %v2854, 16
  %v3158 = vpop.permute.xlu0 %3157
  %3159 = vrot.lane.b32.xlu0 %v2855, 16
  %v3160 = vpop.permute.xlu0 %3159
  %3161 = vrot.lane.b32.xlu0 %v2856, 16
  %v3162 = vpop.permute.xlu0 %3161
  %3163 = vrot.lane.b32.xlu0 %v2857, 16
  %v3164 = vpop.permute.xlu0 %3163
  %3165 = vrot.lane.b32.xlu0 %v2858, 16
  %v3166 = vpop.permute.xlu0 %3165
  %3167 = vrot.lane.b32.xlu0 %v2859, 16
  %v3168 = vpop.permute.xlu0 %3167
  %3169 = vrot.lane.b32.xlu0 %v2860, 16
  %v3170 = vpop.permute.xlu0 %3169
  %3171 = vrot.lane.b32.xlu0 %v2861, 16
  %v3172 = vpop.permute.xlu0 %3171
  %3173 = vrot.lane.b32.xlu0 %v2862, 16
  %v3174 = vpop.permute.xlu0 %3173
  %3175 = vrot.lane.b32.xlu0 %v2863, 16
  %v3176 = vpop.permute.xlu0 %3175
  %3177 = vrot.lane.b32.xlu0 %v2864, 16
  %v3178 = vpop.permute.xlu0 %3177
  %3179 = vrot.lane.b32.xlu0 %v2865, 16
  %v3180 = vpop.permute.xlu0 %3179
  %3181 = vrot.lane.b32.xlu0 %v2866, 16
  %v3182 = vpop.permute.xlu0 %3181
  %3183 = vrot.lane.b32.xlu0 %v2867, 16
  %v3184 = vpop.permute.xlu0 %3183
  %3185 = vrot.lane.b32.xlu0 %v2868, 16
  %v3186 = vpop.permute.xlu0 %3185
  %3187 = vrot.lane.b32.xlu0 %v2869, 16
  %v3188 = vpop.permute.xlu0 %3187
  %3189 = vrot.lane.b32.xlu0 %v2870, 16
  %v3190 = vpop.permute.xlu0 %3189
  %3191 = vrot.lane.b32.xlu0 %v2871, 16
  %v3192 = vpop.permute.xlu0 %3191
  %3193 = vrot.lane.b32.xlu0 %v2872, 16
  %v3194 = vpop.permute.xlu0 %3193
  %3195 = vrot.lane.b32.xlu0 %v2873, 16
  %v3196 = vpop.permute.xlu0 %3195
  %3197 = vrot.lane.b32.xlu0 %v2874, 16
  %v3198 = vpop.permute.xlu0 %3197
  %3199 = vrot.lane.b32.xlu0 %v2875, 16
  %v3200 = vpop.permute.xlu0 %3199
  %3201 = vrot.lane.b32.xlu0 %v2876, 16
  %v3202 = vpop.permute.xlu0 %3201
  %3203 = vrot.lane.b32.xlu0 %v2877, 16
  %v3204 = vpop.permute.xlu0 %3203
  %3205 = vrot.lane.b32.xlu0 %v2878, 16
  %v3206 = vpop.permute.xlu0 %3205
  %3207 = vrot.lane.b32.xlu0 %v2879, 16
  %v3208 = vpop.permute.xlu0 %3207
  %3209 = vrot.lane.b32.xlu0 %v2880, 16
  %v3210 = vpop.permute.xlu0 %3209
  %3211 = vrot.lane.b32.xlu0 %v2881, 16
  %v3212 = vpop.permute.xlu0 %3211
  %3213 = vrot.lane.b32.xlu0 %v2882, 16
  %v3214 = vpop.permute.xlu0 %3213
  %3215 = vrot.lane.b32.xlu0 %v2883, 16
  %v3216 = vpop.permute.xlu0 %3215
  %3217 = vrot.lane.b32.xlu0 %v2884, 16
  %v3218 = vpop.permute.xlu0 %3217
  %3219 = vrot.lane.b32.xlu0 %v2885, 16
  %v3220 = vpop.permute.xlu0 %3219
  %3221 = vrot.lane.b32.xlu0 %v2886, 16
  %v3222 = vpop.permute.xlu0 %3221
  %3223 = vrot.lane.b32.xlu0 %v2887, 16
  %v3224 = vpop.permute.xlu0 %3223
  %3225 = vrot.lane.b32.xlu0 %v2888, 16
  %v3226 = vpop.permute.xlu0 %3225
  %3227 = vrot.lane.b32.xlu0 %v2889, 16
  %v3228 = vpop.permute.xlu0 %3227
  %3229 = vrot.lane.b32.xlu0 %v2890, 16
  %v3230 = vpop.permute.xlu0 %3229
  %3231 = vrot.lane.b32.xlu0 %v2891, 16
  %v3232 = vpop.permute.xlu0 %3231
  %3233 = vrot.lane.b32.xlu0 %v2892, 16
  %v3234 = vpop.permute.xlu0 %3233
  %3235 = vrot.lane.b32.xlu0 %v2893, 16
  %v3236 = vpop.permute.xlu0 %3235
  %3237 = vrot.lane.b32.xlu0 %v2894, 16
  %v3238 = vpop.permute.xlu0 %3237
  %3239 = vrot.lane.b32.xlu0 %v2895, 16
  %v3240 = vpop.permute.xlu0 %3239
  %3241 = vrot.lane.b32.xlu0 %v2896, 16
  %v3242 = vpop.permute.xlu0 %3241
  %3243 = vrot.lane.b32.xlu0 %v2897, 16
  %v3244 = vpop.permute.xlu0 %3243
  %3245 = vrot.lane.b32.xlu0 %v2898, 16
  %v3246 = vpop.permute.xlu0 %3245
  %3247 = vrot.lane.b32.xlu0 %v2899, 16
  %v3248 = vpop.permute.xlu0 %3247
  %3249 = vrot.lane.b32.xlu0 %v2900, 16
  %v3250 = vpop.permute.xlu0 %3249
  %3251 = vrot.lane.b32.xlu0 %v2901, 16
  %v3252 = vpop.permute.xlu0 %3251
  %3253 = vrot.lane.b32.xlu0 %v2902, 16
  %v3254 = vpop.permute.xlu0 %3253
  %3255 = vrot.lane.b32.xlu0 %v2903, 16
  %v3256 = vpop.permute.xlu0 %3255
  %3257 = vrot.lane.b32.xlu0 %v2904, 16
  %v3258 = vpop.permute.xlu0 %3257
  %3315 = vrot.lane.b32.xlu0 0.0, 24
  %v3316 = vpop.permute.xlu0 %3315
  %3317 = vrot.lane.b32.xlu0 %v2849, 24
  %v3318 = vpop.permute.xlu0 %3317
  %3319 = vrot.lane.b32.xlu0 %v2850, 24
  %v3320 = vpop.permute.xlu0 %3319
  %3321 = vrot.lane.b32.xlu0 %v2851, 24
  %v3322 = vpop.permute.xlu0 %3321
  %3323 = vrot.lane.b32.xlu0 %v2852, 24
  %v3324 = vpop.permute.xlu0 %3323
  %3325 = vrot.lane.b32.xlu0 %v2853, 24
  %v3326 = vpop.permute.xlu0 %3325
  %3327 = vrot.lane.b32.xlu0 %v2854, 24
  %v3328 = vpop.permute.xlu0 %3327
  %3329 = vrot.lane.b32.xlu0 %v2855, 24
  %v3330 = vpop.permute.xlu0 %3329
  %3331 = vrot.lane.b32.xlu0 %v2857, 24
  %v3332 = vpop.permute.xlu0 %3331
  %3333 = vrot.lane.b32.xlu0 %v2858, 24
  %v3334 = vpop.permute.xlu0 %3333
  %3335 = vrot.lane.b32.xlu0 %v2859, 24
  %v3336 = vpop.permute.xlu0 %3335
  %3337 = vrot.lane.b32.xlu0 %v2860, 24
  %v3338 = vpop.permute.xlu0 %3337
  %3339 = vrot.lane.b32.xlu0 %v2861, 24
  %v3340 = vpop.permute.xlu0 %3339
  %3341 = vrot.lane.b32.xlu0 %v2862, 24
  %v3342 = vpop.permute.xlu0 %3341
  %3343 = vrot.lane.b32.xlu0 %v2863, 24
  %v3344 = vpop.permute.xlu0 %3343
  %3345 = vrot.lane.b32.xlu0 %v2865, 24
  %v3346 = vpop.permute.xlu0 %3345
  %3347 = vrot.lane.b32.xlu0 %v2866, 24
  %v3348 = vpop.permute.xlu0 %3347
  %3349 = vrot.lane.b32.xlu0 %v2867, 24
  %v3350 = vpop.permute.xlu0 %3349
  %3351 = vrot.lane.b32.xlu0 %v2868, 24
  %v3352 = vpop.permute.xlu0 %3351
  %3353 = vrot.lane.b32.xlu0 %v2869, 24
  %v3354 = vpop.permute.xlu0 %3353
  %3355 = vrot.lane.b32.xlu0 %v2870, 24
  %v3356 = vpop.permute.xlu0 %3355
  %3357 = vrot.lane.b32.xlu0 %v2871, 24
  %v3358 = vpop.permute.xlu0 %3357
  %3359 = vrot.lane.b32.xlu0 %v2873, 24
  %v3360 = vpop.permute.xlu0 %3359
  %3361 = vrot.lane.b32.xlu0 %v2874, 24
  %v3362 = vpop.permute.xlu0 %3361
  %3363 = vrot.lane.b32.xlu0 %v2875, 24
  %v3364 = vpop.permute.xlu0 %3363
  %3365 = vrot.lane.b32.xlu0 %v2876, 24
  %v3366 = vpop.permute.xlu0 %3365
  %3367 = vrot.lane.b32.xlu0 %v2877, 24
  %v3368 = vpop.permute.xlu0 %3367
  %3369 = vrot.lane.b32.xlu0 %v2878, 24
  %v3370 = vpop.permute.xlu0 %3369
  %3371 = vrot.lane.b32.xlu0 %v2879, 24
  %v3372 = vpop.permute.xlu0 %3371
  %3373 = vrot.lane.b32.xlu0 %v2881, 24
  %v3374 = vpop.permute.xlu0 %3373
  %3375 = vrot.lane.b32.xlu0 %v2882, 24
  %v3376 = vpop.permute.xlu0 %3375
  %3377 = vrot.lane.b32.xlu0 %v2883, 24
  %v3378 = vpop.permute.xlu0 %3377
  %3379 = vrot.lane.b32.xlu0 %v2884, 24
  %v3380 = vpop.permute.xlu0 %3379
  %3381 = vrot.lane.b32.xlu0 %v2885, 24
  %v3382 = vpop.permute.xlu0 %3381
  %3383 = vrot.lane.b32.xlu0 %v2886, 24
  %v3384 = vpop.permute.xlu0 %3383
  %3385 = vrot.lane.b32.xlu0 %v2887, 24
  %v3386 = vpop.permute.xlu0 %3385
  %3387 = vrot.lane.b32.xlu0 %v2889, 24
  %v3388 = vpop.permute.xlu0 %3387
  %3389 = vrot.lane.b32.xlu0 %v2890, 24
  %v3390 = vpop.permute.xlu0 %3389
  %3391 = vrot.lane.b32.xlu0 %v2891, 24
  %v3392 = vpop.permute.xlu0 %3391
  %3393 = vrot.lane.b32.xlu0 %v2892, 24
  %v3394 = vpop.permute.xlu0 %3393
  %3395 = vrot.lane.b32.xlu0 %v2893, 24
  %v3396 = vpop.permute.xlu0 %3395
  %3397 = vrot.lane.b32.xlu0 %v2894, 24
  %v3398 = vpop.permute.xlu0 %3397
  %3399 = vrot.lane.b32.xlu0 %v2895, 24
  %v3400 = vpop.permute.xlu0 %3399
  %3401 = vrot.lane.b32.xlu0 %v2897, 24
  %v3402 = vpop.permute.xlu0 %3401
  %3403 = vrot.lane.b32.xlu0 %v2898, 24
  %v3404 = vpop.permute.xlu0 %3403
  %3405 = vrot.lane.b32.xlu0 %v2899, 24
  %v3406 = vpop.permute.xlu0 %3405
  %3407 = vrot.lane.b32.xlu0 %v2900, 24
  %v3408 = vpop.permute.xlu0 %3407
  %3409 = vrot.lane.b32.xlu0 %v2901, 24
  %v3410 = vpop.permute.xlu0 %3409
  %3411 = vrot.lane.b32.xlu0 %v2902, 24
  %v3412 = vpop.permute.xlu0 %3411
  %3413 = vrot.lane.b32.xlu0 %v2903, 24
  %v3414 = vpop.permute.xlu0 %3413
  %v3465 = vsel %vm2258, %v2849, %v2970
  %v3466 = vsel %vm2258, %v2850, %v2972
  %v3467 = vsel %vm2258, %v2851, %v2974
  %v3468 = vsel %vm2258, %v2852, %v2976
  %v3469 = vsel %vm2258, %v2853, %v2978
  %v3470 = vsel %vm2258, %v2854, %v2980
  %v3471 = vsel %vm2258, %v2855, %v2982
  %v3472 = vsel %vm2258, %v2856, %v2984
  %v3473 = vsel %vm2258, %v2857, %v2970
  %v3474 = vsel %vm2258, %v2858, %v2986
  %v3475 = vsel %vm2258, %v2859, %v2988
  %v3476 = vsel %vm2258, %v2860, %v2990
  %v3477 = vsel %vm2258, %v2861, %v2992
  %v3478 = vsel %vm2258, %v2862, %v2994
  %v3479 = vsel %vm2258, %v2863, %v2996
  %v3480 = vsel %vm2258, %v2864, %v2998
  %v3481 = vsel %vm2258, %v2865, %v2970
  %v3482 = vsel %vm2258, %v2866, %v3000
  %v3483 = vsel %vm2258, %v2867, %v3002
  %v3484 = vsel %vm2258, %v2868, %v3004
  %v3485 = vsel %vm2258, %v2869, %v3006
  %v3486 = vsel %vm2258, %v2870, %v3008
  %v3487 = vsel %vm2258, %v2871, %v3010
  %v3488 = vsel %vm2258, %v2872, %v3012
  %v3489 = vsel %vm2258, %v2873, %v2970
  %v3490 = vsel %vm2258, %v2874, %v3014
  %v3491 = vsel %vm2258, %v2875, %v3016
  %v3492 = vsel %vm2258, %v2876, %v3018
  %v3493 = vsel %vm2258, %v2877, %v3020
  %v3494 = vsel %vm2258, %v2878, %v3022
  %v3495 = vsel %vm2258, %v2879, %v3024
  %v3496 = vsel %vm2258, %v2880, %v3026
  %v3497 = vsel %vm2258, %v2881, %v2970
  %v3498 = vsel %vm2258, %v2882, %v3028
  %v3499 = vsel %vm2258, %v2883, %v3030
  %v3500 = vsel %vm2258, %v2884, %v3032
  %v3501 = vsel %vm2258, %v2885, %v3034
  %v3502 = vsel %vm2258, %v2886, %v3036
  %v3503 = vsel %vm2258, %v2887, %v3038
  %v3504 = vsel %vm2258, %v2888, %v3040
  %v3505 = vsel %vm2258, %v2889, %v2970
  %v3506 = vsel %vm2258, %v2890, %v3042
  %v3507 = vsel %vm2258, %v2891, %v3044
  %v3508 = vsel %vm2258, %v2892, %v3046
  %v3509 = vsel %vm2258, %v2893, %v3048
  %v3510 = vsel %vm2258, %v2894, %v3050
  %v3511 = vsel %vm2258, %v2895, %v3052
  %v3512 = vsel %vm2258, %v2896, %v3054
  %v3513 = vsel %vm2258, %v2897, %v2970
  %v3514 = vsel %vm2258, %v2898, %v3056
  %v3515 = vsel %vm2258, %v2899, %v3058
  %v3516 = vsel %vm2258, %v2900, %v3060
  %v3517 = vsel %vm2258, %v2901, %v3062
  %v3518 = vsel %vm2258, %v2902, %v3064
  %v3519 = vsel %vm2258, %v2903, %v3066
  %v3520 = vsel %vm2258, %v2904, %v3068
  %v3521 = vsel %vm2258, %v2905, %v2970
  %v3522 = vsel %vm2258, %v2906, %v3070
  %v3523 = vsel %vm2258, %v2907, %v3072
  %v3524 = vsel %vm2258, %v2908, %v3074
  %v3525 = vsel %vm2258, %v2909, %v3076
  %v3526 = vsel %vm2258, %v2910, %v3078
  %v3527 = vsel %vm2258, %v2911, %v3080
  %v3528 = vsel %vm2258, %v2912, %v3082
  %v3529 = vsel %vm409, %v3465, %v598
  %v3530 = vsel %vm409, %v3466, %v598
  %v3531 = vsel %vm409, %v3467, %v598
  %v3532 = vsel %vm409, %v3468, %v598
  %v3533 = vsel %vm409, %v3469, %v598
  %v3534 = vsel %vm409, %v3470, %v598
  %v3535 = vsel %vm409, %v3471, %v598
  %v3536 = vsel %vm409, %v3472, %v598
  %v3537 = vsel %vm409, %v3473, %v3148
  %v3538 = vsel %vm409, %v3474, %v3150
  %v3539 = vsel %vm409, %v3475, %v3152
  %v3540 = vsel %vm409, %v3476, %v3154
  %v3541 = vsel %vm409, %v3477, %v3156
  %v3542 = vsel %vm409, %v3478, %v3158
  %v3543 = vsel %vm409, %v3479, %v3160
  %v3544 = vsel %vm409, %v3480, %v3162
  %v3545 = vsel %vm409, %v3481, %v3164
  %v3546 = vsel %vm409, %v3482, %v3166
  %v3547 = vsel %vm409, %v3483, %v3168
  %v3548 = vsel %vm409, %v3484, %v3170
  %v3549 = vsel %vm409, %v3485, %v3172
  %v3550 = vsel %vm409, %v3486, %v3174
  %v3551 = vsel %vm409, %v3487, %v3176
  %v3552 = vsel %vm409, %v3488, %v3178
  %v3553 = vsel %vm409, %v3489, %v3180
  %v3554 = vsel %vm409, %v3490, %v3182
  %v3555 = vsel %vm409, %v3491, %v3184
  %v3556 = vsel %vm409, %v3492, %v3186
  %v3557 = vsel %vm409, %v3493, %v3188
  %v3558 = vsel %vm409, %v3494, %v3190
  %v3559 = vsel %vm409, %v3495, %v3192
  %v3560 = vsel %vm409, %v3496, %v3194
  %v3561 = vsel %vm409, %v3497, %v3196
  %v3562 = vsel %vm409, %v3498, %v3198
  %v3563 = vsel %vm409, %v3499, %v3200
  %v3564 = vsel %vm409, %v3500, %v3202
  %v3565 = vsel %vm409, %v3501, %v3204
  %v3566 = vsel %vm409, %v3502, %v3206
  %v3567 = vsel %vm409, %v3503, %v3208
  %v3568 = vsel %vm409, %v3504, %v3210
  %v3569 = vsel %vm409, %v3505, %v3212
  %v3570 = vsel %vm409, %v3506, %v3214
  %v3571 = vsel %vm409, %v3507, %v3216
  %v3572 = vsel %vm409, %v3508, %v3218
  %v3573 = vsel %vm409, %v3509, %v3220
  %v3574 = vsel %vm409, %v3510, %v3222
  %v3575 = vsel %vm409, %v3511, %v3224
  %v3576 = vsel %vm409, %v3512, %v3226
  %v3577 = vsel %vm409, %v3513, %v3228
  %v3578 = vsel %vm409, %v3514, %v3230
  %v3579 = vsel %vm409, %v3515, %v3232
  %v3580 = vsel %vm409, %v3516, %v3234
  %v3581 = vsel %vm409, %v3517, %v3236
  %v3582 = vsel %vm409, %v3518, %v3238
  %v3583 = vsel %vm409, %v3519, %v3240
  %v3584 = vsel %vm409, %v3520, %v3242
  %v3585 = vsel %vm409, %v3521, %v3244
  %v3586 = vsel %vm409, %v3522, %v3246
  %v3587 = vsel %vm409, %v3523, %v3248
  %v3588 = vsel %vm409, %v3524, %v3250
  %v3589 = vsel %vm409, %v3525, %v3252
  %v3590 = vsel %vm409, %v3526, %v3254
  %v3591 = vsel %vm409, %v3527, %v3256
  %v3592 = vsel %vm409, %v3528, %v3258
  %vm3593 = vcmask 195584
  %v3594 = vsel %vm3593, %v3529, %v3316
  %v3595 = vsel %vm3593, %v3530, %v3316
  %v3596 = vsel %vm3593, %v3531, %v3316
  %v3597 = vsel %vm3593, %v3532, %v3316
  %v3598 = vsel %vm3593, %v3533, %v3316
  %v3599 = vsel %vm3593, %v3534, %v3316
  %v3600 = vsel %vm3593, %v3535, %v3316
  %v3601 = vsel %vm3593, %v3536, %v3316
  %v3602 = vsel %vm3593, %v3537, %v3316
  %v3603 = vsel %vm3593, %v3538, %v3318
  %v3604 = vsel %vm3593, %v3539, %v3320
  %v3605 = vsel %vm3593, %v3540, %v3322
  %v3606 = vsel %vm3593, %v3541, %v3324
  %v3607 = vsel %vm3593, %v3542, %v3326
  %v3608 = vsel %vm3593, %v3543, %v3328
  %v3609 = vsel %vm3593, %v3544, %v3330
  %v3610 = vsel %vm3593, %v3545, %v3316
  %v3611 = vsel %vm3593, %v3546, %v3332
  %v3612 = vsel %vm3593, %v3547, %v3334
  %v3613 = vsel %vm3593, %v3548, %v3336
  %v3614 = vsel %vm3593, %v3549, %v3338
  %v3615 = vsel %vm3593, %v3550, %v3340
  %v3616 = vsel %vm3593, %v3551, %v3342
  %v3617 = vsel %vm3593, %v3552, %v3344
  %v3618 = vsel %vm3593, %v3553, %v3316
  %v3619 = vsel %vm3593, %v3554, %v3346
  %v3620 = vsel %vm3593, %v3555, %v3348
  %v3621 = vsel %vm3593, %v3556, %v3350
  %v3622 = vsel %vm3593, %v3557, %v3352
  %v3623 = vsel %vm3593, %v3558, %v3354
  %v3624 = vsel %vm3593, %v3559, %v3356
  %v3625 = vsel %vm3593, %v3560, %v3358
  %v3626 = vsel %vm3593, %v3561, %v3316
  %v3627 = vsel %vm3593, %v3562, %v3360
  %v3628 = vsel %vm3593, %v3563, %v3362
  %v3629 = vsel %vm3593, %v3564, %v3364
  %v3630 = vsel %vm3593, %v3565, %v3366
  %v3631 = vsel %vm3593, %v3566, %v3368
  %v3632 = vsel %vm3593, %v3567, %v3370
  %v3633 = vsel %vm3593, %v3568, %v3372
  %v3634 = vsel %vm3593, %v3569, %v3316
  %v3635 = vsel %vm3593, %v3570, %v3374
  %v3636 = vsel %vm3593, %v3571, %v3376
  %v3637 = vsel %vm3593, %v3572, %v3378
  %v3638 = vsel %vm3593, %v3573, %v3380
  %v3639 = vsel %vm3593, %v3574, %v3382
  %v3640 = vsel %vm3593, %v3575, %v3384
  %v3641 = vsel %vm3593, %v3576, %v3386
  %v3642 = vsel %vm3593, %v3577, %v3316
  %v3643 = vsel %vm3593, %v3578, %v3388
  %v3644 = vsel %vm3593, %v3579, %v3390
  %v3645 = vsel %vm3593, %v3580, %v3392
  %v3646 = vsel %vm3593, %v3581, %v3394
  %v3647 = vsel %vm3593, %v3582, %v3396
  %v3648 = vsel %vm3593, %v3583, %v3398
  %v3649 = vsel %vm3593, %v3584, %v3400
  %v3650 = vsel %vm3593, %v3585, %v3316
  %v3651 = vsel %vm3593, %v3586, %v3402
  %v3652 = vsel %vm3593, %v3587, %v3404
  %v3653 = vsel %vm3593, %v3588, %v3406
  %v3654 = vsel %vm3593, %v3589, %v3408
  %v3655 = vsel %vm3593, %v3590, %v3410
  %v3656 = vsel %vm3593, %v3591, %v3412
  %v3657 = vsel %vm3593, %v3592, %v3414
  %v3658 = vpack.c.bf16 %v3595, %v3594
  %v3659 = vpack.c.bf16 %v3597, %v3596
  %v3660 = vpack.c.bf16 %v3599, %v3598
  %v3661 = vpack.c.bf16 %v3601, %v3600
  %v3662 = vpack.c.bf16 %v3603, %v3602
  %v3663 = vpack.c.bf16 %v3605, %v3604
  %v3664 = vpack.c.bf16 %v3607, %v3606
  %v3665 = vpack.c.bf16 %v3609, %v3608
  %v3666 = vpack.c.bf16 %v3611, %v3610
  %v3667 = vpack.c.bf16 %v3613, %v3612
  %v3668 = vpack.c.bf16 %v3615, %v3614
  %v3669 = vpack.c.bf16 %v3617, %v3616
  %v3670 = vpack.c.bf16 %v3619, %v3618
  %v3671 = vpack.c.bf16 %v3621, %v3620
  %v3672 = vpack.c.bf16 %v3623, %v3622
  %v3673 = vpack.c.bf16 %v3625, %v3624
  %v3674 = vpack.c.bf16 %v3627, %v3626
  %v3675 = vpack.c.bf16 %v3629, %v3628
  %v3676 = vpack.c.bf16 %v3631, %v3630
  %v3677 = vpack.c.bf16 %v3633, %v3632
  %v3678 = vpack.c.bf16 %v3635, %v3634
  %v3679 = vpack.c.bf16 %v3637, %v3636
  %v3680 = vpack.c.bf16 %v3639, %v3638
  %v3681 = vpack.c.bf16 %v3641, %v3640
  %v3682 = vpack.c.bf16 %v3643, %v3642
  %v3683 = vpack.c.bf16 %v3645, %v3644
  %v3684 = vpack.c.bf16 %v3647, %v3646
  %v3685 = vpack.c.bf16 %v3649, %v3648
  %v3686 = vpack.c.bf16 %v3651, %v3650
  %v3687 = vpack.c.bf16 %v3653, %v3652
  %v3688 = vpack.c.bf16 %v3655, %v3654
  %v3689 = vpack.c.bf16 %v3657, %v3656
  %v3690 = vld [vmem:[%s3] sm:$0xf]
  %v3691 = vld [vmem:[%s3 + $0x4] sm:$0xf]
  %v3692 = vld [vmem:[%s3 + $0x8] sm:$0xf]
  %v3693 = vld [vmem:[%s3 + $0xc] sm:$0xf]
  %3695 = vrot.lane.b32.xlu0 %v2856, 8
  %v3696 = vpop.permute.xlu0 %3695
  %3697 = vrot.lane.b32.xlu0 %v2864, 8
  %v3698 = vpop.permute.xlu0 %3697
  %3699 = vrot.lane.b32.xlu0 %v2872, 8
  %v3700 = vpop.permute.xlu0 %3699
  %3701 = vrot.lane.b32.xlu0 %v2880, 8
  %v3702 = vpop.permute.xlu0 %3701
  %3703 = vrot.lane.b32.xlu0 %v2888, 8
  %v3704 = vpop.permute.xlu0 %3703
  %3705 = vrot.lane.b32.xlu0 %v2896, 8
  %v3706 = vpop.permute.xlu0 %3705
  %3707 = vrot.lane.b32.xlu0 %v2904, 8
  %v3708 = vpop.permute.xlu0 %3707
  %3709 = vrot.lane.b32.xlu0 %v2912, 8
  %v3710 = vpop.permute.xlu0 %3709
  %3719 = vrot.lane.b32.xlu0 %v2856, 24
  %v3720 = vpop.permute.xlu0 %3719
  %3721 = vrot.lane.b32.xlu0 %v2864, 24
  %v3722 = vpop.permute.xlu0 %3721
  %3723 = vrot.lane.b32.xlu0 %v2872, 24
  %v3724 = vpop.permute.xlu0 %3723
  %3725 = vrot.lane.b32.xlu0 %v2880, 24
  %v3726 = vpop.permute.xlu0 %3725
  %3727 = vrot.lane.b32.xlu0 %v2888, 24
  %v3728 = vpop.permute.xlu0 %3727
  %3729 = vrot.lane.b32.xlu0 %v2896, 24
  %v3730 = vpop.permute.xlu0 %3729
  %3731 = vrot.lane.b32.xlu0 %v2904, 24
  %v3732 = vpop.permute.xlu0 %3731
  %v3740 = vsel %vm2258, 0.0, %v3696
  %v3741 = vsel %vm2258, 0.0, %v3698
  %v3742 = vsel %vm2258, 0.0, %v3700
  %v3743 = vsel %vm2258, 0.0, %v3702
  %v3744 = vsel %vm2258, 0.0, %v3704
  %v3745 = vsel %vm2258, 0.0, %v3706
  %v3746 = vsel %vm2258, 0.0, %v3708
  %v3747 = vsel %vm2258, 0.0, %v3710
  %v3748 = vsel %vm409, %v3740, %v598
  %v3749 = vsel %vm409, %v3741, %v598
  %v3750 = vsel %vm409, %v3742, %v598
  %v3751 = vsel %vm409, %v3743, %v598
  %v3752 = vsel %vm409, %v3744, %v598
  %v3753 = vsel %vm409, %v3745, %v598
  %v3754 = vsel %vm409, %v3746, %v598
  %v3755 = vsel %vm409, %v3747, %v598
  %v3756 = vsel %vm3593, %v3748, %v3316
  %v3757 = vsel %vm3593, %v3749, %v3720
  %v3758 = vsel %vm3593, %v3750, %v3722
  %v3759 = vsel %vm3593, %v3751, %v3724
  %v3760 = vsel %vm3593, %v3752, %v3726
  %v3761 = vsel %vm3593, %v3753, %v3728
  %v3762 = vsel %vm3593, %v3754, %v3730
  %v3763 = vsel %vm3593, %v3755, %v3732
  %v3764 = vpack.c.bf16 %v3596, %v3595
  %v3765 = vpack.c.bf16 %v3598, %v3597
  %v3766 = vpack.c.bf16 %v3600, %v3599
  %v3767 = vpack.c.bf16 %v3756, %v3601
  %v3768 = vpack.c.bf16 %v3604, %v3603
  %v3769 = vpack.c.bf16 %v3606, %v3605
  %v3770 = vpack.c.bf16 %v3608, %v3607
  %v3771 = vpack.c.bf16 %v3757, %v3609
  %v3772 = vpack.c.bf16 %v3612, %v3611
  %v3773 = vpack.c.bf16 %v3614, %v3613
  %v3774 = vpack.c.bf16 %v3616, %v3615
  %v3775 = vpack.c.bf16 %v3758, %v3617
  %v3776 = vpack.c.bf16 %v3620, %v3619
  %v3777 = vpack.c.bf16 %v3622, %v3621
  %v3778 = vpack.c.bf16 %v3624, %v3623
  %v3779 = vpack.c.bf16 %v3759, %v3625
  %v3780 = vpack.c.bf16 %v3628, %v3627
  %v3781 = vpack.c.bf16 %v3630, %v3629
  %v3782 = vpack.c.bf16 %v3632, %v3631
  %v3783 = vpack.c.bf16 %v3760, %v3633
  %v3784 = vpack.c.bf16 %v3636, %v3635
  %v3785 = vpack.c.bf16 %v3638, %v3637
  %v3786 = vpack.c.bf16 %v3640, %v3639
  %v3787 = vpack.c.bf16 %v3761, %v3641
  %v3788 = vpack.c.bf16 %v3644, %v3643
  %v3789 = vpack.c.bf16 %v3646, %v3645
  %v3790 = vpack.c.bf16 %v3648, %v3647
  %v3791 = vpack.c.bf16 %v3762, %v3649
  %v3792 = vpack.c.bf16 %v3652, %v3651
  %v3793 = vpack.c.bf16 %v3654, %v3653
  %v3794 = vpack.c.bf16 %v3656, %v3655
  %v3795 = vpack.c.bf16 %v3763, %v3657
  %s3796 = scalar_lea.vmem %s3, 16
  %v3797 = vld [vmem:[%s3796] sm:$0xf]
  %v3798 = vld [vmem:[%s3796 + $0x4] sm:$0xf]
  %v3799 = vld [vmem:[%s3796 + $0x8] sm:$0xf]
  %v3800 = vld [vmem:[%s3796 + $0xc] sm:$0xf]
  %3801 = vrot.lane.b32.xlu0 %v2905, 16
  %v3802 = vpop.permute.xlu0 %3801
  %3803 = vrot.lane.b32.xlu0 %v2906, 16
  %v3804 = vpop.permute.xlu0 %3803
  %3805 = vrot.lane.b32.xlu0 %v2907, 16
  %v3806 = vpop.permute.xlu0 %3805
  %3807 = vrot.lane.b32.xlu0 %v2908, 16
  %v3808 = vpop.permute.xlu0 %3807
  %3809 = vrot.lane.b32.xlu0 %v2909, 16
  %v3810 = vpop.permute.xlu0 %3809
  %3811 = vrot.lane.b32.xlu0 %v2910, 16
  %v3812 = vpop.permute.xlu0 %3811
  %3813 = vrot.lane.b32.xlu0 %v2911, 16
  %v3814 = vpop.permute.xlu0 %3813
  %3815 = vrot.lane.b32.xlu0 %v2912, 16
  %v3816 = vpop.permute.xlu0 %3815
  %3825 = vrot.lane.b32.xlu0 %v2905, 24
  %v3826 = vpop.permute.xlu0 %3825
  %3827 = vrot.lane.b32.xlu0 %v2906, 24
  %v3828 = vpop.permute.xlu0 %3827
  %3829 = vrot.lane.b32.xlu0 %v2907, 24
  %v3830 = vpop.permute.xlu0 %3829
  %3831 = vrot.lane.b32.xlu0 %v2908, 24
  %v3832 = vpop.permute.xlu0 %3831
  %3833 = vrot.lane.b32.xlu0 %v2909, 24
  %v3834 = vpop.permute.xlu0 %3833
  %3835 = vrot.lane.b32.xlu0 %v2910, 24
  %v3836 = vpop.permute.xlu0 %3835
  %3837 = vrot.lane.b32.xlu0 %v2911, 24
  %v3838 = vpop.permute.xlu0 %3837
  %v3846 = vsel %vm2258, 0.0, %v2970
  %v3847 = vsel %vm409, %v3846, %v3802
  %v3848 = vsel %vm409, %v3846, %v3804
  %v3849 = vsel %vm409, %v3846, %v3806
  %v3850 = vsel %vm409, %v3846, %v3808
  %v3851 = vsel %vm409, %v3846, %v3810
  %v3852 = vsel %vm409, %v3846, %v3812
  %v3853 = vsel %vm409, %v3846, %v3814
  %v3854 = vsel %vm409, %v3846, %v3816
  %v3855 = vsel %vm3593, %v3847, %v3316
  %v3856 = vsel %vm3593, %v3848, %v3826
  %v3857 = vsel %vm3593, %v3849, %v3828
  %v3858 = vsel %vm3593, %v3850, %v3830
  %v3859 = vsel %vm3593, %v3851, %v3832
  %v3860 = vsel %vm3593, %v3852, %v3834
  %v3861 = vsel %vm3593, %v3853, %v3836
  %v3862 = vsel %vm3593, %v3854, %v3838
  %v3863 = vpack.c.bf16 %v3856, %v3855
  %v3864 = vpack.c.bf16 %v3858, %v3857
  %v3865 = vpack.c.bf16 %v3860, %v3859
  %v3866 = vpack.c.bf16 %v3862, %v3861
  %s3867 = scalar_lea.vmem %s3, 32
  %v3868 = vld [vmem:[%s3867] sm:$0xf]
  %v3869 = vld [vmem:[%s3867 + $0x4] sm:$0xf]
  %v3870 = vld [vmem:[%s3867 + $0x8] sm:$0xf]
  %v3871 = vld [vmem:[%s3867 + $0xc] sm:$0xf]
  %3872 = vrot.lane.b32.xlu0 %v2912, 24
  %v3873 = vpop.permute.xlu0 %3872
  %v3875 = vsel %vm409, %v3846, %v598
  %v3876 = vsel %vm3593, %v3875, %v3873
  %v3877 = vpack.c.bf16 %v3857, %v3856
  %v3878 = vpack.c.bf16 %v3859, %v3858
  %v3879 = vpack.c.bf16 %v3861, %v3860
  %v3880 = vpack.c.bf16 %v3876, %v3862
  %s3881 = scalar_lea.vmem %s3, 48
  %v3882 = vld [vmem:[%s3881] sm:$0xf]
  %v3883 = vld [vmem:[%s3881 + $0x4] sm:$0xf]
  %v3884 = vld [vmem:[%s3881 + $0x8] sm:$0xf]
  %v3885 = vld [vmem:[%s3881 + $0xc] sm:$0xf]
  %v3886 = vld [vmem:[%s4] sm:$0x1]
  %v3888 = vlaneseq
  %v3889 = vshrl.u32 %v3888, 7
  %v3890 = vsub.s32 0, %v3889
  %v3891 = vrot.slane %v3886, %v3890
  %v3897 = vunpack.c.l.b16 %v3690
  %v3898 = vunpack.c.l.b16 %v3691
  %v3899 = vunpack.c.l.b16 %v3692
  %v3900 = vunpack.c.l.b16 %v3693
  %v3901 = vpack.c.b16 %v3898, %v3897
  %v3902 = vpack.c.b16 %v3900, %v3899
  %v3906 = vsel %vm47, %v3658, 0
  %v3909 = vsel %vm47, %v3659, 0
  %v3912 = vsel %vm47, %v3660, 0
  %v3915 = vsel %vm47, %v3661, 0
  %v3918 = vsel %vm47, %v3662, 0
  %v3921 = vsel %vm47, %v3663, 0
  %v3924 = vsel %vm47, %v3664, 0
  %v3927 = vsel %vm47, %v3665, 0
  %v3930 = vsel %vm47, %v3666, 0
  %v3933 = vsel %vm47, %v3667, 0
  %v3936 = vsel %vm47, %v3668, 0
  %v3939 = vsel %vm47, %v3669, 0
  %v3942 = vsel %vm47, %v3670, 0
  %v3945 = vsel %vm47, %v3671, 0
  %v3948 = vsel %vm47, %v3672, 0
  %v3951 = vsel %vm47, %v3673, 0
  %v3954 = vsel %vm47, %v3674, 0
  %v3957 = vsel %vm47, %v3675, 0
  %v3960 = vsel %vm47, %v3676, 0
  %v3963 = vsel %vm47, %v3677, 0
  %v3966 = vsel %vm47, %v3678, 0
  %v3969 = vsel %vm47, %v3679, 0
  %v3972 = vsel %vm47, %v3680, 0
  %v3975 = vsel %vm47, %v3681, 0
  %v3978 = vsel %vm47, %v3682, 0
  %v3981 = vsel %vm47, %v3683, 0
  %v3984 = vsel %vm47, %v3684, 0
  %v3987 = vsel %vm47, %v3685, 0
  %v3990 = vsel %vm47, %v3686, 0
  %v3993 = vsel %vm47, %v3687, 0
  %v3996 = vsel %vm47, %v3688, 0
  %v3999 = vsel %vm47, %v3689, 0
  %4001 = vmatprep.subr.bf16.mxu0 0
  %4002 = vmatpush1.bf16.msra.mxu0 %v3901
  %4003 = vmatprep.subr.bf16.mxu0 0
  %4004 = vmatpush1.bf16.msra.mxu0 %v3902
  %4005 = vmatprep.subr.bf16.mxu0 0
  %4006 = vmatpush1.bf16.msra.mxu0 0
  %4007 = vmatprep.subr.bf16.mxu0 0
  %4008 = vmatpush1.bf16.msra.mxu0 0
  %4009 = vmatprep.subr.bf16.mxu0 0
  %4010 = vmatpush1.bf16.msra.mxu0 0
  %4011 = vmatprep.subr.bf16.mxu0 0
  %4012 = vmatpush1.bf16.msra.mxu0 0
  %4013 = vmatprep.subr.bf16.mxu0 0
  %4014 = vmatpush1.bf16.msra.mxu0 0
  %4015 = vmatprep.subr.bf16.mxu0 0
  %4016 = vmatpush1.bf16.msra.mxu0 0
  %4017 = vmatprep.subr.bf16.mxu0 0
  %4018 = vmatpush1.bf16.msra.mxu0 0
  %4019 = vmatprep.subr.bf16.mxu0 0
  %4020 = vmatpush1.bf16.msra.mxu0 0
  %4021 = vmatprep.subr.bf16.mxu0 0
  %4022 = vmatpush1.bf16.msra.mxu0 0
  %4023 = vmatprep.subr.bf16.mxu0 0
  %4024 = vmatpush1.bf16.msra.mxu0 0
  %4025 = vmatprep.subr.bf16.mxu0 0
  %4026 = vmatpush1.bf16.msra.mxu0 0
  %4027 = vmatprep.subr.bf16.mxu0 0
  %4028 = vmatpush1.bf16.msra.mxu0 0
  %4029 = vmatprep.subr.bf16.mxu0 0
  %4030 = vmatpush1.bf16.msra.mxu0 0
  %4031 = vmatprep.subr.bf16.mxu0 0
  %4032 = vmatpush1.bf16.msra.mxu0 0
  %4033 = vmatprep.mubr.bf16.mxu0 0
  %4034 = vmatmul.mubr.bf16.gmra.mrb[0].mxu0 %v3906
  %v4035 = vpop.f32.mrb[0].mxu0
  %v4036 = vadd.f32 %v3891, %v4035
  %v4037 = vpop.f32.mrb[0].mxu0
  %v4038 = vpop.f32.mrb[0].mxu0
  %v4039 = vadd.f32 %v3891, %v4038
  %v4040 = vpop.f32.mrb[0].mxu0
  %4041 = vmatprep.mubr.bf16.mxu0 0
  %4042 = vmatmul.mubr.bf16.gmra.mrb[0].mxu0 %v3909
  %v4043 = vpop.f32.mrb[0].mxu0
  %v4044 = vadd.f32 %v3891, %v4043
  %v4045 = vpop.f32.mrb[0].mxu0
  %v4046 = vpop.f32.mrb[0].mxu0
  %v4047 = vadd.f32 %v3891, %v4046
  %v4048 = vpop.f32.mrb[0].mxu0
  %4049 = vmatprep.mubr.bf16.mxu0 0
  %4050 = vmatmul.mubr.bf16.gmra.mrb[0].mxu0 %v3912
  %v4051 = vpop.f32.mrb[0].mxu0
  %v4052 = vadd.f32 %v3891, %v4051
  %v4053 = vpop.f32.mrb[0].mxu0
  %v4054 = vpop.f32.mrb[0].mxu0
  %v4055 = vadd.f32 %v3891, %v4054
  %v4056 = vpop.f32.mrb[0].mxu0
  %4057 = vmatprep.mubr.bf16.mxu0 0
  %4058 = vmatmul.mubr.bf16.gmra.mrb[0].mxu0 %v3915
  %v4059 = vpop.f32.mrb[0].mxu0
  %v4060 = vadd.f32 %v3891, %v4059
  %v4061 = vpop.f32.mrb[0].mxu0
  %v4062 = vpop.f32.mrb[0].mxu0
  %v4063 = vadd.f32 %v3891, %v4062
  %v4064 = vpop.f32.mrb[0].mxu0
  %4065 = vmatprep.mubr.bf16.mxu0 0
  %4066 = vmatmul.mubr.bf16.gmra.mrb[0].mxu0 %v3918
  %v4067 = vpop.f32.mrb[0].mxu0
  %v4068 = vadd.f32 %v3891, %v4067
  %v4069 = vpop.f32.mrb[0].mxu0
  %v4070 = vpop.f32.mrb[0].mxu0
  %v4071 = vadd.f32 %v3891, %v4070
  %v4072 = vpop.f32.mrb[0].mxu0
  %4073 = vmatprep.mubr.bf16.mxu0 0
  %4074 = vmatmul.mubr.bf16.gmra.mrb[0].mxu0 %v3921
  %v4075 = vpop.f32.mrb[0].mxu0
  %v4076 = vadd.f32 %v3891, %v4075
  %v4077 = vpop.f32.mrb[0].mxu0
  %v4078 = vpop.f32.mrb[0].mxu0
  %v4079 = vadd.f32 %v3891, %v4078
  %v4080 = vpop.f32.mrb[0].mxu0
  %4081 = vmatprep.mubr.bf16.mxu0 0
  %4082 = vmatmul.mubr.bf16.gmra.mrb[0].mxu0 %v3924
  %v4083 = vpop.f32.mrb[0].mxu0
  %v4084 = vadd.f32 %v3891, %v4083
  %v4085 = vpop.f32.mrb[0].mxu0
  %v4086 = vpop.f32.mrb[0].mxu0
  %v4087 = vadd.f32 %v3891, %v4086
  %v4088 = vpop.f32.mrb[0].mxu0
  %4089 = vmatprep.mubr.bf16.mxu0 0
  %4090 = vmatmul.mubr.bf16.gmra.mrb[0].mxu0 %v3927
  %v4091 = vpop.f32.mrb[0].mxu0
  %v4092 = vadd.f32 %v3891, %v4091
  %v4093 = vpop.f32.mrb[0].mxu0
  %v4094 = vpop.f32.mrb[0].mxu0
  %v4095 = vadd.f32 %v3891, %v4094
  %v4096 = vpop.f32.mrb[0].mxu0
  %4097 = vmatprep.mubr.bf16.mxu0 0
  %4098 = vmatmul.mubr.bf16.gmra.mrb[0].mxu0 %v3930
  %v4099 = vpop.f32.mrb[0].mxu0
  %v4100 = vadd.f32 %v3891, %v4099
  %v4101 = vpop.f32.mrb[0].mxu0
  %v4102 = vpop.f32.mrb[0].mxu0
  %v4103 = vadd.f32 %v3891, %v4102
  %v4104 = vpop.f32.mrb[0].mxu0
  %4105 = vmatprep.mubr.bf16.mxu0 0
  %4106 = vmatmul.mubr.bf16.gmra.mrb[0].mxu0 %v3933
  %v4107 = vpop.f32.mrb[0].mxu0
  %v4108 = vadd.f32 %v3891, %v4107
  %v4109 = vpop.f32.mrb[0].mxu0
  %v4110 = vpop.f32.mrb[0].mxu0
  %v4111 = vadd.f32 %v3891, %v4110
  %v4112 = vpop.f32.mrb[0].mxu0
  %4113 = vmatprep.mubr.bf16.mxu0 0
  %4114 = vmatmul.mubr.bf16.gmra.mrb[0].mxu0 %v3936
  %v4115 = vpop.f32.mrb[0].mxu0
  %v4116 = vadd.f32 %v3891, %v4115
  %v4117 = vpop.f32.mrb[0].mxu0
  %v4118 = vpop.f32.mrb[0].mxu0
  %v4119 = vadd.f32 %v3891, %v4118
  %v4120 = vpop.f32.mrb[0].mxu0
  %4121 = vmatprep.mubr.bf16.mxu0 0
  %4122 = vmatmul.mubr.bf16.gmra.mrb[0].mxu0 %v3939
  %v4123 = vpop.f32.mrb[0].mxu0
  %v4124 = vadd.f32 %v3891, %v4123
  %v4125 = vpop.f32.mrb[0].mxu0
  %v4126 = vpop.f32.mrb[0].mxu0
  %v4127 = vadd.f32 %v3891, %v4126
  %v4128 = vpop.f32.mrb[0].mxu0
  %4129 = vmatprep.mubr.bf16.mxu0 0
  %4130 = vmatmul.mubr.bf16.gmra.mrb[0].mxu0 %v3942
  %v4131 = vpop.f32.mrb[0].mxu0
  %v4132 = vadd.f32 %v3891, %v4131
  %v4133 = vpop.f32.mrb[0].mxu0
  %v4134 = vpop.f32.mrb[0].mxu0
  %v4135 = vadd.f32 %v3891, %v4134
  %v4136 = vpop.f32.mrb[0].mxu0
  %4137 = vmatprep.mubr.bf16.mxu0 0
  %4138 = vmatmul.mubr.bf16.gmra.mrb[0].mxu0 %v3945
  %v4139 = vpop.f32.mrb[0].mxu0
  %v4140 = vadd.f32 %v3891, %v4139
  %v4141 = vpop.f32.mrb[0].mxu0
  %v4142 = vpop.f32.mrb[0].mxu0
  %v4143 = vadd.f32 %v3891, %v4142
  %v4144 = vpop.f32.mrb[0].mxu0
  %4145 = vmatprep.mubr.bf16.mxu0 0
  %4146 = vmatmul.mubr.bf16.gmra.mrb[0].mxu0 %v3948
  %v4147 = vpop.f32.mrb[0].mxu0
  %v4148 = vadd.f32 %v3891, %v4147
  %v4149 = vpop.f32.mrb[0].mxu0
  %v4150 = vpop.f32.mrb[0].mxu0
  %v4151 = vadd.f32 %v3891, %v4150
  %v4152 = vpop.f32.mrb[0].mxu0
  %4153 = vmatprep.mubr.bf16.mxu0 0
  %4154 = vmatmul.mubr.bf16.gmra.mrb[0].mxu0 %v3951
  %v4155 = vpop.f32.mrb[0].mxu0
  %v4156 = vadd.f32 %v3891, %v4155
  %v4157 = vpop.f32.mrb[0].mxu0
  %v4158 = vpop.f32.mrb[0].mxu0
  %v4159 = vadd.f32 %v3891, %v4158
  %v4160 = vpop.f32.mrb[0].mxu0
  %4161 = vmatprep.mubr.bf16.mxu0 0
  %4162 = vmatmul.mubr.bf16.gmra.mrb[0].mxu0 %v3954
  %v4163 = vpop.f32.mrb[0].mxu0
  %v4164 = vadd.f32 %v3891, %v4163
  %v4165 = vpop.f32.mrb[0].mxu0
  %v4166 = vpop.f32.mrb[0].mxu0
  %v4167 = vadd.f32 %v3891, %v4166
  %v4168 = vpop.f32.mrb[0].mxu0
  %4169 = vmatprep.mubr.bf16.mxu0 0
  %4170 = vmatmul.mubr.bf16.gmra.mrb[0].mxu0 %v3957
  %v4171 = vpop.f32.mrb[0].mxu0
  %v4172 = vadd.f32 %v3891, %v4171
  %v4173 = vpop.f32.mrb[0].mxu0
  %v4174 = vpop.f32.mrb[0].mxu0
  %v4175 = vadd.f32 %v3891, %v4174
  %v4176 = vpop.f32.mrb[0].mxu0
  %4177 = vmatprep.mubr.bf16.mxu0 0
  %4178 = vmatmul.mubr.bf16.gmra.mrb[0].mxu0 %v3960
  %v4179 = vpop.f32.mrb[0].mxu0
  %v4180 = vadd.f32 %v3891, %v4179
  %v4181 = vpop.f32.mrb[0].mxu0
  %v4182 = vpop.f32.mrb[0].mxu0
  %v4183 = vadd.f32 %v3891, %v4182
  %v4184 = vpop.f32.mrb[0].mxu0
  %4185 = vmatprep.mubr.bf16.mxu0 0
  %4186 = vmatmul.mubr.bf16.gmra.mrb[0].mxu0 %v3963
  %v4187 = vpop.f32.mrb[0].mxu0
  %v4188 = vadd.f32 %v3891, %v4187
  %v4189 = vpop.f32.mrb[0].mxu0
  %v4190 = vpop.f32.mrb[0].mxu0
  %v4191 = vadd.f32 %v3891, %v4190
  %v4192 = vpop.f32.mrb[0].mxu0
  %4193 = vmatprep.mubr.bf16.mxu0 0
  %4194 = vmatmul.mubr.bf16.gmra.mrb[0].mxu0 %v3966
  %v4195 = vpop.f32.mrb[0].mxu0
  %v4196 = vadd.f32 %v3891, %v4195
  %v4197 = vpop.f32.mrb[0].mxu0
  %v4198 = vpop.f32.mrb[0].mxu0
  %v4199 = vadd.f32 %v3891, %v4198
  %v4200 = vpop.f32.mrb[0].mxu0
  %4201 = vmatprep.mubr.bf16.mxu0 0
  %4202 = vmatmul.mubr.bf16.gmra.mrb[0].mxu0 %v3969
  %v4203 = vpop.f32.mrb[0].mxu0
  %v4204 = vadd.f32 %v3891, %v4203
  %v4205 = vpop.f32.mrb[0].mxu0
  %v4206 = vpop.f32.mrb[0].mxu0
  %v4207 = vadd.f32 %v3891, %v4206
  %v4208 = vpop.f32.mrb[0].mxu0
  %4209 = vmatprep.mubr.bf16.mxu0 0
  %4210 = vmatmul.mubr.bf16.gmra.mrb[0].mxu0 %v3972
  %v4211 = vpop.f32.mrb[0].mxu0
  %v4212 = vadd.f32 %v3891, %v4211
  %v4213 = vpop.f32.mrb[0].mxu0
  %v4214 = vpop.f32.mrb[0].mxu0
  %v4215 = vadd.f32 %v3891, %v4214
  %v4216 = vpop.f32.mrb[0].mxu0
  %4217 = vmatprep.mubr.bf16.mxu0 0
  %4218 = vmatmul.mubr.bf16.gmra.mrb[0].mxu0 %v3975
  %v4219 = vpop.f32.mrb[0].mxu0
  %v4220 = vadd.f32 %v3891, %v4219
  %v4221 = vpop.f32.mrb[0].mxu0
  %v4222 = vpop.f32.mrb[0].mxu0
  %v4223 = vadd.f32 %v3891, %v4222
  %v4224 = vpop.f32.mrb[0].mxu0
  %4225 = vmatprep.mubr.bf16.mxu0 0
  %4226 = vmatmul.mubr.bf16.gmra.mrb[0].mxu0 %v3978
  %v4227 = vpop.f32.mrb[0].mxu0
  %v4228 = vadd.f32 %v3891, %v4227
  %v4229 = vpop.f32.mrb[0].mxu0
  %v4230 = vpop.f32.mrb[0].mxu0
  %v4231 = vadd.f32 %v3891, %v4230
  %v4232 = vpop.f32.mrb[0].mxu0
  %4233 = vmatprep.mubr.bf16.mxu0 0
  %4234 = vmatmul.mubr.bf16.gmra.mrb[0].mxu0 %v3981
  %v4235 = vpop.f32.mrb[0].mxu0
  %v4236 = vadd.f32 %v3891, %v4235
  %v4237 = vpop.f32.mrb[0].mxu0
  %v4238 = vpop.f32.mrb[0].mxu0
  %v4239 = vadd.f32 %v3891, %v4238
  %v4240 = vpop.f32.mrb[0].mxu0
  %4241 = vmatprep.mubr.bf16.mxu0 0
  %4242 = vmatmul.mubr.bf16.gmra.mrb[0].mxu0 %v3984
  %v4243 = vpop.f32.mrb[0].mxu0
  %v4244 = vadd.f32 %v3891, %v4243
  %v4245 = vpop.f32.mrb[0].mxu0
  %v4246 = vpop.f32.mrb[0].mxu0
  %v4247 = vadd.f32 %v3891, %v4246
  %v4248 = vpop.f32.mrb[0].mxu0
  %4249 = vmatprep.mubr.bf16.mxu0 0
  %4250 = vmatmul.mubr.bf16.gmra.mrb[0].mxu0 %v3987
  %v4251 = vpop.f32.mrb[0].mxu0
  %v4252 = vadd.f32 %v3891, %v4251
  %v4253 = vpop.f32.mrb[0].mxu0
  %v4254 = vpop.f32.mrb[0].mxu0
  %v4255 = vadd.f32 %v3891, %v4254
  %v4256 = vpop.f32.mrb[0].mxu0
  %4257 = vmatprep.mubr.bf16.mxu0 0
  %4258 = vmatmul.mubr.bf16.gmra.mrb[0].mxu0 %v3990
  %v4259 = vpop.f32.mrb[0].mxu0
  %v4260 = vadd.f32 %v3891, %v4259
  %v4261 = vpop.f32.mrb[0].mxu0
  %v4262 = vpop.f32.mrb[0].mxu0
  %v4263 = vadd.f32 %v3891, %v4262
  %v4264 = vpop.f32.mrb[0].mxu0
  %4265 = vmatprep.mubr.bf16.mxu0 0
  %4266 = vmatmul.mubr.bf16.gmra.mrb[0].mxu0 %v3993
  %v4267 = vpop.f32.mrb[0].mxu0
  %v4268 = vadd.f32 %v3891, %v4267
  %v4269 = vpop.f32.mrb[0].mxu0
  %v4270 = vpop.f32.mrb[0].mxu0
  %v4271 = vadd.f32 %v3891, %v4270
  %v4272 = vpop.f32.mrb[0].mxu0
  %4273 = vmatprep.mubr.bf16.mxu0 0
  %4274 = vmatmul.mubr.bf16.gmra.mrb[0].mxu0 %v3996
  %v4275 = vpop.f32.mrb[0].mxu0
  %v4276 = vadd.f32 %v3891, %v4275
  %v4277 = vpop.f32.mrb[0].mxu0
  %v4278 = vpop.f32.mrb[0].mxu0
  %v4279 = vadd.f32 %v3891, %v4278
  %v4280 = vpop.f32.mrb[0].mxu0
  %4281 = vmatprep.mubr.bf16.mxu0 0
  %4282 = vmatmul.mubr.bf16.gmra.mrb[0].mxu0 %v3999
  %v4283 = vpop.f32.mrb[0].mxu0
  %v4284 = vadd.f32 %v3891, %v4283
  %v4285 = vpop.f32.mrb[0].mxu0
  %v4286 = vpop.f32.mrb[0].mxu0
  %v4287 = vadd.f32 %v3891, %v4286
  %v4288 = vpop.f32.mrb[0].mxu0
  %4289 = vdwg.mxu0
  %v4290 = vtanh.pop %v4036
  %v4291 = vtanh.pop %v4039
  %v4292 = vtanh.pop %v4044
  %v4293 = vtanh.pop %v4047
  %v4294 = vtanh.pop %v4052
  %v4295 = vtanh.pop %v4055
  %v4296 = vtanh.pop %v4060
  %v4297 = vtanh.pop %v4063
  %v4298 = vtanh.pop %v4068
  %v4299 = vtanh.pop %v4071
  %v4300 = vtanh.pop %v4076
  %v4301 = vtanh.pop %v4079
  %v4302 = vtanh.pop %v4084
  %v4303 = vtanh.pop %v4087
  %v4304 = vtanh.pop %v4092
  %v4305 = vtanh.pop %v4095
  %v4306 = vtanh.pop %v4100
  %v4307 = vtanh.pop %v4103
  %v4308 = vtanh.pop %v4108
  %v4309 = vtanh.pop %v4111
  %v4310 = vtanh.pop %v4116
  %v4311 = vtanh.pop %v4119
  %v4312 = vtanh.pop %v4124
  %v4313 = vtanh.pop %v4127
  %v4314 = vtanh.pop %v4132
  %v4315 = vtanh.pop %v4135
  %v4316 = vtanh.pop %v4140
  %v4317 = vtanh.pop %v4143
  %v4318 = vtanh.pop %v4148
  %v4319 = vtanh.pop %v4151
  %v4320 = vtanh.pop %v4156
  %v4321 = vtanh.pop %v4159
  %v4322 = vtanh.pop %v4164
  %v4323 = vtanh.pop %v4167
  %v4324 = vtanh.pop %v4172
  %v4325 = vtanh.pop %v4175
  %v4326 = vtanh.pop %v4180
  %v4327 = vtanh.pop %v4183
  %v4328 = vtanh.pop %v4188
  %v4329 = vtanh.pop %v4191
  %v4330 = vtanh.pop %v4196
  %v4331 = vtanh.pop %v4199
  %v4332 = vtanh.pop %v4204
  %v4333 = vtanh.pop %v4207
  %v4334 = vtanh.pop %v4212
  %v4335 = vtanh.pop %v4215
  %v4336 = vtanh.pop %v4220
  %v4337 = vtanh.pop %v4223
  %v4338 = vtanh.pop %v4228
  %v4339 = vtanh.pop %v4231
  %v4340 = vtanh.pop %v4236
  %v4341 = vtanh.pop %v4239
  %v4342 = vtanh.pop %v4244
  %v4343 = vtanh.pop %v4247
  %v4344 = vtanh.pop %v4252
  %v4345 = vtanh.pop %v4255
  %v4346 = vtanh.pop %v4260
  %v4347 = vtanh.pop %v4263
  %v4348 = vtanh.pop %v4268
  %v4349 = vtanh.pop %v4271
  %v4350 = vtanh.pop %v4276
  %v4351 = vtanh.pop %v4279
  %v4352 = vtanh.pop %v4284
  %v4353 = vtanh.pop %v4287
  %4354 = vst [vmem:[%s5] sm:$0xff] %v4290
  %4355 = vst [vmem:[%s5 + $0x8] sm:$0xff] %v4291
  %4356 = vst [vmem:[%s5 + $0x10] sm:$0xff] %v4292
  %4357 = vst [vmem:[%s5 + $0x18] sm:$0xff] %v4293
  %4358 = vst [vmem:[%s5 + $0x20] sm:$0xff] %v4294
  %4359 = vst [vmem:[%s5 + $0x28] sm:$0xff] %v4295
  %4360 = vst [vmem:[%s5 + $0x30] sm:$0xff] %v4296
  %4361 = vst [vmem:[%s5 + $0x38] sm:$0xff] %v4297
  %4362 = vst [vmem:[%s5 + $0x40] sm:$0xff] %v4298
  %4363 = vst [vmem:[%s5 + $0x48] sm:$0xff] %v4299
  %4364 = vst [vmem:[%s5 + $0x50] sm:$0xff] %v4300
  %4365 = vst [vmem:[%s5 + $0x58] sm:$0xff] %v4301
  %4366 = vst [vmem:[%s5 + $0x60] sm:$0xff] %v4302
  %4367 = vst [vmem:[%s5 + $0x68] sm:$0xff] %v4303
  %4368 = vst [vmem:[%s5 + $0x70] sm:$0xff] %v4304
  %4369 = vst [vmem:[%s5 + $0x78] sm:$0xff] %v4305
  %4370 = vst [vmem:[%s5 + $0x80] sm:$0xff] %v4306
  %4371 = vst [vmem:[%s5 + $0x88] sm:$0xff] %v4307
  %4372 = vst [vmem:[%s5 + $0x90] sm:$0xff] %v4308
  %4373 = vst [vmem:[%s5 + $0x98] sm:$0xff] %v4309
  %4374 = vst [vmem:[%s5 + $0xa0] sm:$0xff] %v4310
  %4375 = vst [vmem:[%s5 + $0xa8] sm:$0xff] %v4311
  %4376 = vst [vmem:[%s5 + $0xb0] sm:$0xff] %v4312
  %4377 = vst [vmem:[%s5 + $0xb8] sm:$0xff] %v4313
  %4378 = vst [vmem:[%s5 + $0xc0] sm:$0xff] %v4314
  %4379 = vst [vmem:[%s5 + $0xc8] sm:$0xff] %v4315
  %4380 = vst [vmem:[%s5 + $0xd0] sm:$0xff] %v4316
  %4381 = vst [vmem:[%s5 + $0xd8] sm:$0xff] %v4317
  %4382 = vst [vmem:[%s5 + $0xe0] sm:$0xff] %v4318
  %4383 = vst [vmem:[%s5 + $0xe8] sm:$0xff] %v4319
  %4384 = vst [vmem:[%s5 + $0xf0] sm:$0xff] %v4320
  %4385 = vst [vmem:[%s5 + $0xf8] sm:$0xff] %v4321
  %4386 = vst [vmem:[%s5 + $0x100] sm:$0xff] %v4322
  %4387 = vst [vmem:[%s5 + $0x108] sm:$0xff] %v4323
  %4388 = vst [vmem:[%s5 + $0x110] sm:$0xff] %v4324
  %4389 = vst [vmem:[%s5 + $0x118] sm:$0xff] %v4325
  %4390 = vst [vmem:[%s5 + $0x120] sm:$0xff] %v4326
  %4391 = vst [vmem:[%s5 + $0x128] sm:$0xff] %v4327
  %4392 = vst [vmem:[%s5 + $0x130] sm:$0xff] %v4328
  %4393 = vst [vmem:[%s5 + $0x138] sm:$0xff] %v4329
  %4394 = vst [vmem:[%s5 + $0x140] sm:$0xff] %v4330
  %4395 = vst [vmem:[%s5 + $0x148] sm:$0xff] %v4331
  %4396 = vst [vmem:[%s5 + $0x150] sm:$0xff] %v4332
  %4397 = vst [vmem:[%s5 + $0x158] sm:$0xff] %v4333
  %4398 = vst [vmem:[%s5 + $0x160] sm:$0xff] %v4334
  %4399 = vst [vmem:[%s5 + $0x168] sm:$0xff] %v4335
  %4400 = vst [vmem:[%s5 + $0x170] sm:$0xff] %v4336
  %4401 = vst [vmem:[%s5 + $0x178] sm:$0xff] %v4337
  %4402 = vst [vmem:[%s5 + $0x180] sm:$0xff] %v4338
  %4403 = vst [vmem:[%s5 + $0x188] sm:$0xff] %v4339
  %4404 = vst [vmem:[%s5 + $0x190] sm:$0xff] %v4340
  %4405 = vst [vmem:[%s5 + $0x198] sm:$0xff] %v4341
  %4406 = vst [vmem:[%s5 + $0x1a0] sm:$0xff] %v4342
  %4407 = vst [vmem:[%s5 + $0x1a8] sm:$0xff] %v4343
  %4408 = vst [vmem:[%s5 + $0x1b0] sm:$0xff] %v4344
  %4409 = vst [vmem:[%s5 + $0x1b8] sm:$0xff] %v4345
  %4410 = vst [vmem:[%s5 + $0x1c0] sm:$0xff] %v4346
  %4411 = vst [vmem:[%s5 + $0x1c8] sm:$0xff] %v4347
  %4412 = vst [vmem:[%s5 + $0x1d0] sm:$0xff] %v4348
  %4413 = vst [vmem:[%s5 + $0x1d8] sm:$0xff] %v4349
  %4414 = vst [vmem:[%s5 + $0x1e0] sm:$0xff] %v4350
  %4415 = vst [vmem:[%s5 + $0x1e8] sm:$0xff] %v4351
  %4416 = vst [vmem:[%s5 + $0x1f0] sm:$0xff] %v4352
  %4417 = vst [vmem:[%s5 + $0x1f8] sm:$0xff] %v4353
  %v4422 = vunpack.c.l.b16 %v3797
  %v4423 = vunpack.c.l.b16 %v3798
  %v4424 = vunpack.c.l.b16 %v3799
  %v4425 = vunpack.c.l.b16 %v3800
  %v4426 = vpack.c.b16 %v4423, %v4422
  %v4427 = vpack.c.b16 %v4425, %v4424
  %v4431 = vsel %vm47, %v3764, 0
  %v4434 = vsel %vm47, %v3765, 0
  %v4437 = vsel %vm47, %v3766, 0
  %v4440 = vsel %vm47, %v3767, 0
  %v4443 = vsel %vm47, %v3768, 0
  %v4446 = vsel %vm47, %v3769, 0
  %v4449 = vsel %vm47, %v3770, 0
  %v4452 = vsel %vm47, %v3771, 0
  %v4455 = vsel %vm47, %v3772, 0
  %v4458 = vsel %vm47, %v3773, 0
  %v4461 = vsel %vm47, %v3774, 0
  %v4464 = vsel %vm47, %v3775, 0
  %v4467 = vsel %vm47, %v3776, 0
  %v4470 = vsel %vm47, %v3777, 0
  %v4473 = vsel %vm47, %v3778, 0
  %v4476 = vsel %vm47, %v3779, 0
  %v4479 = vsel %vm47, %v3780, 0
  %v4482 = vsel %vm47, %v3781, 0
  %v4485 = vsel %vm47, %v3782, 0
  %v4488 = vsel %vm47, %v3783, 0
  %v4491 = vsel %vm47, %v3784, 0
  %v4494 = vsel %vm47, %v3785, 0
  %v4497 = vsel %vm47, %v3786, 0
  %v4500 = vsel %vm47, %v3787, 0
  %v4503 = vsel %vm47, %v3788, 0
  %v4506 = vsel %vm47, %v3789, 0
  %v4509 = vsel %vm47, %v3790, 0
  %v4512 = vsel %vm47, %v3791, 0
  %v4515 = vsel %vm47, %v3792, 0
  %v4518 = vsel %vm47, %v3793, 0
  %v4521 = vsel %vm47, %v3794, 0
  %v4524 = vsel %vm47, %v3795, 0
  %4526 = vmatprep.subr.bf16.mxu0 0
  %4527 = vmatpush1.bf16.msra.mxu0 %v4426
  %4528 = vmatprep.subr.bf16.mxu0 0
  %4529 = vmatpush1.bf16.msra.mxu0 %v4427
  %4530 = vmatprep.subr.bf16.mxu0 0
  %4531 = vmatpush1.bf16.msra.mxu0 0
  %4532 = vmatprep.subr.bf16.mxu0 0
  %4533 = vmatpush1.bf16.msra.mxu0 0
  %4534 = vmatprep.subr.bf16.mxu0 0
  %4535 = vmatpush1.bf16.msra.mxu0 0
  %4536 = vmatprep.subr.bf16.mxu0 0
  %4537 = vmatpush1.bf16.msra.mxu0 0
  %4538 = vmatprep.subr.bf16.mxu0 0
  %4539 = vmatpush1.bf16.msra.mxu0 0
  %4540 = vmatprep.subr.bf16.mxu0 0
  %4541 = vmatpush1.bf16.msra.mxu0 0
  %4542 = vmatprep.subr.bf16.mxu0 0
  %4543 = vmatpush1.bf16.msra.mxu0 0
  %4544 = vmatprep.subr.bf16.mxu0 0
  %4545 = vmatpush1.bf16.msra.mxu0 0
  %4546 = vmatprep.subr.bf16.mxu0 0
  %4547 = vmatpush1.bf16.msra.mxu0 0
  %4548 = vmatprep.subr.bf16.mxu0 0
  %4549 = vmatpush1.bf16.msra.mxu0 0
  %4550 = vmatprep.subr.bf16.mxu0 0
  %4551 = vmatpush1.bf16.msra.mxu0 0
  %4552 = vmatprep.subr.bf16.mxu0 0
  %4553 = vmatpush1.bf16.msra.mxu0 0
  %4554 = vmatprep.subr.bf16.mxu0 0
  %4555 = vmatpush1.bf16.msra.mxu0 0
  %4556 = vmatprep.subr.bf16.mxu0 0
  %4557 = vmatpush1.bf16.msra.mxu0 0
  %4558 = vmatprep.mubr.bf16.mxu0 0
  %4559 = vmatmul.mubr.bf16.gmra.mrb[0].mxu0 %v4431
  %v4560 = vpop.f32.mrb[0].mxu0
  %v4561 = vadd.f32 %v3891, %v4560
  %v4562 = vpop.f32.mrb[0].mxu0
  %v4563 = vpop.f32.mrb[0].mxu0
  %v4564 = vadd.f32 %v3891, %v4563
  %v4565 = vpop.f32.mrb[0].mxu0
  %4566 = vmatprep.mubr.bf16.mxu0 0
  %4567 = vmatmul.mubr.bf16.gmra.mrb[0].mxu0 %v4434
  %v4568 = vpop.f32.mrb[0].mxu0
  %v4569 = vadd.f32 %v3891, %v4568
  %v4570 = vpop.f32.mrb[0].mxu0
  %v4571 = vpop.f32.mrb[0].mxu0
  %v4572 = vadd.f32 %v3891, %v4571
  %v4573 = vpop.f32.mrb[0].mxu0
  %4574 = vmatprep.mubr.bf16.mxu0 0
  %4575 = vmatmul.mubr.bf16.gmra.mrb[0].mxu0 %v4437
  %v4576 = vpop.f32.mrb[0].mxu0
  %v4577 = vadd.f32 %v3891, %v4576
  %v4578 = vpop.f32.mrb[0].mxu0
  %v4579 = vpop.f32.mrb[0].mxu0
  %v4580 = vadd.f32 %v3891, %v4579
  %v4581 = vpop.f32.mrb[0].mxu0
  %4582 = vmatprep.mubr.bf16.mxu0 0
  %4583 = vmatmul.mubr.bf16.gmra.mrb[0].mxu0 %v4440
  %v4584 = vpop.f32.mrb[0].mxu0
  %v4585 = vadd.f32 %v3891, %v4584
  %v4586 = vpop.f32.mrb[0].mxu0
  %v4587 = vpop.f32.mrb[0].mxu0
  %v4588 = vadd.f32 %v3891, %v4587
  %v4589 = vpop.f32.mrb[0].mxu0
  %4590 = vmatprep.mubr.bf16.mxu0 0
  %4591 = vmatmul.mubr.bf16.gmra.mrb[0].mxu0 %v4443
  %v4592 = vpop.f32.mrb[0].mxu0
  %v4593 = vadd.f32 %v3891, %v4592
  %v4594 = vpop.f32.mrb[0].mxu0
  %v4595 = vpop.f32.mrb[0].mxu0
  %v4596 = vadd.f32 %v3891, %v4595
  %v4597 = vpop.f32.mrb[0].mxu0
  %4598 = vmatprep.mubr.bf16.mxu0 0
  %4599 = vmatmul.mubr.bf16.gmra.mrb[0].mxu0 %v4446
  %v4600 = vpop.f32.mrb[0].mxu0
  %v4601 = vadd.f32 %v3891, %v4600
  %v4602 = vpop.f32.mrb[0].mxu0
  %v4603 = vpop.f32.mrb[0].mxu0
  %v4604 = vadd.f32 %v3891, %v4603
  %v4605 = vpop.f32.mrb[0].mxu0
  %4606 = vmatprep.mubr.bf16.mxu0 0
  %4607 = vmatmul.mubr.bf16.gmra.mrb[0].mxu0 %v4449
  %v4608 = vpop.f32.mrb[0].mxu0
  %v4609 = vadd.f32 %v3891, %v4608
  %v4610 = vpop.f32.mrb[0].mxu0
  %v4611 = vpop.f32.mrb[0].mxu0
  %v4612 = vadd.f32 %v3891, %v4611
  %v4613 = vpop.f32.mrb[0].mxu0
  %4614 = vmatprep.mubr.bf16.mxu0 0
  %4615 = vmatmul.mubr.bf16.gmra.mrb[0].mxu0 %v4452
  %v4616 = vpop.f32.mrb[0].mxu0
  %v4617 = vadd.f32 %v3891, %v4616
  %v4618 = vpop.f32.mrb[0].mxu0
  %v4619 = vpop.f32.mrb[0].mxu0
  %v4620 = vadd.f32 %v3891, %v4619
  %v4621 = vpop.f32.mrb[0].mxu0
  %4622 = vmatprep.mubr.bf16.mxu0 0
  %4623 = vmatmul.mubr.bf16.gmra.mrb[0].mxu0 %v4455
  %v4624 = vpop.f32.mrb[0].mxu0
  %v4625 = vadd.f32 %v3891, %v4624
  %v4626 = vpop.f32.mrb[0].mxu0
  %v4627 = vpop.f32.mrb[0].mxu0
  %v4628 = vadd.f32 %v3891, %v4627
  %v4629 = vpop.f32.mrb[0].mxu0
  %4630 = vmatprep.mubr.bf16.mxu0 0
  %4631 = vmatmul.mubr.bf16.gmra.mrb[0].mxu0 %v4458
  %v4632 = vpop.f32.mrb[0].mxu0
  %v4633 = vadd.f32 %v3891, %v4632
  %v4634 = vpop.f32.mrb[0].mxu0
  %v4635 = vpop.f32.mrb[0].mxu0
  %v4636 = vadd.f32 %v3891, %v4635
  %v4637 = vpop.f32.mrb[0].mxu0
  %4638 = vmatprep.mubr.bf16.mxu0 0
  %4639 = vmatmul.mubr.bf16.gmra.mrb[0].mxu0 %v4461
  %v4640 = vpop.f32.mrb[0].mxu0
  %v4641 = vadd.f32 %v3891, %v4640
  %v4642 = vpop.f32.mrb[0].mxu0
  %v4643 = vpop.f32.mrb[0].mxu0
  %v4644 = vadd.f32 %v3891, %v4643
  %v4645 = vpop.f32.mrb[0].mxu0
  %4646 = vmatprep.mubr.bf16.mxu0 0
  %4647 = vmatmul.mubr.bf16.gmra.mrb[0].mxu0 %v4464
  %v4648 = vpop.f32.mrb[0].mxu0
  %v4649 = vadd.f32 %v3891, %v4648
  %v4650 = vpop.f32.mrb[0].mxu0
  %v4651 = vpop.f32.mrb[0].mxu0
  %v4652 = vadd.f32 %v3891, %v4651
  %v4653 = vpop.f32.mrb[0].mxu0
  %4654 = vmatprep.mubr.bf16.mxu0 0
  %4655 = vmatmul.mubr.bf16.gmra.mrb[0].mxu0 %v4467
  %v4656 = vpop.f32.mrb[0].mxu0
  %v4657 = vadd.f32 %v3891, %v4656
  %v4658 = vpop.f32.mrb[0].mxu0
  %v4659 = vpop.f32.mrb[0].mxu0
  %v4660 = vadd.f32 %v3891, %v4659
  %v4661 = vpop.f32.mrb[0].mxu0
  %4662 = vmatprep.mubr.bf16.mxu0 0
  %4663 = vmatmul.mubr.bf16.gmra.mrb[0].mxu0 %v4470
  %v4664 = vpop.f32.mrb[0].mxu0
  %v4665 = vadd.f32 %v3891, %v4664
  %v4666 = vpop.f32.mrb[0].mxu0
  %v4667 = vpop.f32.mrb[0].mxu0
  %v4668 = vadd.f32 %v3891, %v4667
  %v4669 = vpop.f32.mrb[0].mxu0
  %4670 = vmatprep.mubr.bf16.mxu0 0
  %4671 = vmatmul.mubr.bf16.gmra.mrb[0].mxu0 %v4473
  %v4672 = vpop.f32.mrb[0].mxu0
  %v4673 = vadd.f32 %v3891, %v4672
  %v4674 = vpop.f32.mrb[0].mxu0
  %v4675 = vpop.f32.mrb[0].mxu0
  %v4676 = vadd.f32 %v3891, %v4675
  %v4677 = vpop.f32.mrb[0].mxu0
  %4678 = vmatprep.mubr.bf16.mxu0 0
  %4679 = vmatmul.mubr.bf16.gmra.mrb[0].mxu0 %v4476
  %v4680 = vpop.f32.mrb[0].mxu0
  %v4681 = vadd.f32 %v3891, %v4680
  %v4682 = vpop.f32.mrb[0].mxu0
  %v4683 = vpop.f32.mrb[0].mxu0
  %v4684 = vadd.f32 %v3891, %v4683
  %v4685 = vpop.f32.mrb[0].mxu0
  %4686 = vmatprep.mubr.bf16.mxu0 0
  %4687 = vmatmul.mubr.bf16.gmra.mrb[0].mxu0 %v4479
  %v4688 = vpop.f32.mrb[0].mxu0
  %v4689 = vadd.f32 %v3891, %v4688
  %v4690 = vpop.f32.mrb[0].mxu0
  %v4691 = vpop.f32.mrb[0].mxu0
  %v4692 = vadd.f32 %v3891, %v4691
  %v4693 = vpop.f32.mrb[0].mxu0
  %4694 = vmatprep.mubr.bf16.mxu0 0
  %4695 = vmatmul.mubr.bf16.gmra.mrb[0].mxu0 %v4482
  %v4696 = vpop.f32.mrb[0].mxu0
  %v4697 = vadd.f32 %v3891, %v4696
  %v4698 = vpop.f32.mrb[0].mxu0
  %v4699 = vpop.f32.mrb[0].mxu0
  %v4700 = vadd.f32 %v3891, %v4699
  %v4701 = vpop.f32.mrb[0].mxu0
  %4702 = vmatprep.mubr.bf16.mxu0 0
  %4703 = vmatmul.mubr.bf16.gmra.mrb[0].mxu0 %v4485
  %v4704 = vpop.f32.mrb[0].mxu0
  %v4705 = vadd.f32 %v3891, %v4704
  %v4706 = vpop.f32.mrb[0].mxu0
  %v4707 = vpop.f32.mrb[0].mxu0
  %v4708 = vadd.f32 %v3891, %v4707
  %v4709 = vpop.f32.mrb[0].mxu0
  %4710 = vmatprep.mubr.bf16.mxu0 0
  %4711 = vmatmul.mubr.bf16.gmra.mrb[0].mxu0 %v4488
  %v4712 = vpop.f32.mrb[0].mxu0
  %v4713 = vadd.f32 %v3891, %v4712
  %v4714 = vpop.f32.mrb[0].mxu0
  %v4715 = vpop.f32.mrb[0].mxu0
  %v4716 = vadd.f32 %v3891, %v4715
  %v4717 = vpop.f32.mrb[0].mxu0
  %4718 = vmatprep.mubr.bf16.mxu0 0
  %4719 = vmatmul.mubr.bf16.gmra.mrb[0].mxu0 %v4491
  %v4720 = vpop.f32.mrb[0].mxu0
  %v4721 = vadd.f32 %v3891, %v4720
  %v4722 = vpop.f32.mrb[0].mxu0
  %v4723 = vpop.f32.mrb[0].mxu0
  %v4724 = vadd.f32 %v3891, %v4723
  %v4725 = vpop.f32.mrb[0].mxu0
  %4726 = vmatprep.mubr.bf16.mxu0 0
  %4727 = vmatmul.mubr.bf16.gmra.mrb[0].mxu0 %v4494
  %v4728 = vpop.f32.mrb[0].mxu0
  %v4729 = vadd.f32 %v3891, %v4728
  %v4730 = vpop.f32.mrb[0].mxu0
  %v4731 = vpop.f32.mrb[0].mxu0
  %v4732 = vadd.f32 %v3891, %v4731
  %v4733 = vpop.f32.mrb[0].mxu0
  %4734 = vmatprep.mubr.bf16.mxu0 0
  %4735 = vmatmul.mubr.bf16.gmra.mrb[0].mxu0 %v4497
  %v4736 = vpop.f32.mrb[0].mxu0
  %v4737 = vadd.f32 %v3891, %v4736
  %v4738 = vpop.f32.mrb[0].mxu0
  %v4739 = vpop.f32.mrb[0].mxu0
  %v4740 = vadd.f32 %v3891, %v4739
  %v4741 = vpop.f32.mrb[0].mxu0
  %4742 = vmatprep.mubr.bf16.mxu0 0
  %4743 = vmatmul.mubr.bf16.gmra.mrb[0].mxu0 %v4500
  %v4744 = vpop.f32.mrb[0].mxu0
  %v4745 = vadd.f32 %v3891, %v4744
  %v4746 = vpop.f32.mrb[0].mxu0
  %v4747 = vpop.f32.mrb[0].mxu0
  %v4748 = vadd.f32 %v3891, %v4747
  %v4749 = vpop.f32.mrb[0].mxu0
  %4750 = vmatprep.mubr.bf16.mxu0 0
  %4751 = vmatmul.mubr.bf16.gmra.mrb[0].mxu0 %v4503
  %v4752 = vpop.f32.mrb[0].mxu0
  %v4753 = vadd.f32 %v3891, %v4752
  %v4754 = vpop.f32.mrb[0].mxu0
  %v4755 = vpop.f32.mrb[0].mxu0
  %v4756 = vadd.f32 %v3891, %v4755
  %v4757 = vpop.f32.mrb[0].mxu0
  %4758 = vmatprep.mubr.bf16.mxu0 0
  %4759 = vmatmul.mubr.bf16.gmra.mrb[0].mxu0 %v4506
  %v4760 = vpop.f32.mrb[0].mxu0
  %v4761 = vadd.f32 %v3891, %v4760
  %v4762 = vpop.f32.mrb[0].mxu0
  %v4763 = vpop.f32.mrb[0].mxu0
  %v4764 = vadd.f32 %v3891, %v4763
  %v4765 = vpop.f32.mrb[0].mxu0
  %4766 = vmatprep.mubr.bf16.mxu0 0
  %4767 = vmatmul.mubr.bf16.gmra.mrb[0].mxu0 %v4509
  %v4768 = vpop.f32.mrb[0].mxu0
  %v4769 = vadd.f32 %v3891, %v4768
  %v4770 = vpop.f32.mrb[0].mxu0
  %v4771 = vpop.f32.mrb[0].mxu0
  %v4772 = vadd.f32 %v3891, %v4771
  %v4773 = vpop.f32.mrb[0].mxu0
  %4774 = vmatprep.mubr.bf16.mxu0 0
  %4775 = vmatmul.mubr.bf16.gmra.mrb[0].mxu0 %v4512
  %v4776 = vpop.f32.mrb[0].mxu0
  %v4777 = vadd.f32 %v3891, %v4776
  %v4778 = vpop.f32.mrb[0].mxu0
  %v4779 = vpop.f32.mrb[0].mxu0
  %v4780 = vadd.f32 %v3891, %v4779
  %v4781 = vpop.f32.mrb[0].mxu0
  %4782 = vmatprep.mubr.bf16.mxu0 0
  %4783 = vmatmul.mubr.bf16.gmra.mrb[0].mxu0 %v4515
  %v4784 = vpop.f32.mrb[0].mxu0
  %v4785 = vadd.f32 %v3891, %v4784
  %v4786 = vpop.f32.mrb[0].mxu0
  %v4787 = vpop.f32.mrb[0].mxu0
  %v4788 = vadd.f32 %v3891, %v4787
  %v4789 = vpop.f32.mrb[0].mxu0
  %4790 = vmatprep.mubr.bf16.mxu0 0
  %4791 = vmatmul.mubr.bf16.gmra.mrb[0].mxu0 %v4518
  %v4792 = vpop.f32.mrb[0].mxu0
  %v4793 = vadd.f32 %v3891, %v4792
  %v4794 = vpop.f32.mrb[0].mxu0
  %v4795 = vpop.f32.mrb[0].mxu0
  %v4796 = vadd.f32 %v3891, %v4795
  %v4797 = vpop.f32.mrb[0].mxu0
  %4798 = vmatprep.mubr.bf16.mxu0 0
  %4799 = vmatmul.mubr.bf16.gmra.mrb[0].mxu0 %v4521
  %v4800 = vpop.f32.mrb[0].mxu0
  %v4801 = vadd.f32 %v3891, %v4800
  %v4802 = vpop.f32.mrb[0].mxu0
  %v4803 = vpop.f32.mrb[0].mxu0
  %v4804 = vadd.f32 %v3891, %v4803
  %v4805 = vpop.f32.mrb[0].mxu0
  %4806 = vmatprep.mubr.bf16.mxu0 0
  %4807 = vmatmul.mubr.bf16.gmra.mrb[0].mxu0 %v4524
  %v4808 = vpop.f32.mrb[0].mxu0
  %v4809 = vadd.f32 %v3891, %v4808
  %v4810 = vpop.f32.mrb[0].mxu0
  %v4811 = vpop.f32.mrb[0].mxu0
  %v4812 = vadd.f32 %v3891, %v4811
  %v4813 = vpop.f32.mrb[0].mxu0
  %4814 = vdwg.mxu0
  %v4815 = vtanh.pop %v4561
  %v4816 = vtanh.pop %v4564
  %v4817 = vtanh.pop %v4569
  %v4818 = vtanh.pop %v4572
  %v4819 = vtanh.pop %v4577
  %v4820 = vtanh.pop %v4580
  %v4821 = vtanh.pop %v4585
  %v4822 = vtanh.pop %v4588
  %v4823 = vtanh.pop %v4593
  %v4824 = vtanh.pop %v4596
  %v4825 = vtanh.pop %v4601
  %v4826 = vtanh.pop %v4604
  %v4827 = vtanh.pop %v4609
  %v4828 = vtanh.pop %v4612
  %v4829 = vtanh.pop %v4617
  %v4830 = vtanh.pop %v4620
  %v4831 = vtanh.pop %v4625
  %v4832 = vtanh.pop %v4628
  %v4833 = vtanh.pop %v4633
  %v4834 = vtanh.pop %v4636
  %v4835 = vtanh.pop %v4641
  %v4836 = vtanh.pop %v4644
  %v4837 = vtanh.pop %v4649
  %v4838 = vtanh.pop %v4652
  %v4839 = vtanh.pop %v4657
  %v4840 = vtanh.pop %v4660
  %v4841 = vtanh.pop %v4665
  %v4842 = vtanh.pop %v4668
  %v4843 = vtanh.pop %v4673
  %v4844 = vtanh.pop %v4676
  %v4845 = vtanh.pop %v4681
  %v4846 = vtanh.pop %v4684
  %v4847 = vtanh.pop %v4689
  %v4848 = vtanh.pop %v4692
  %v4849 = vtanh.pop %v4697
  %v4850 = vtanh.pop %v4700
  %v4851 = vtanh.pop %v4705
  %v4852 = vtanh.pop %v4708
  %v4853 = vtanh.pop %v4713
  %v4854 = vtanh.pop %v4716
  %v4855 = vtanh.pop %v4721
  %v4856 = vtanh.pop %v4724
  %v4857 = vtanh.pop %v4729
  %v4858 = vtanh.pop %v4732
  %v4859 = vtanh.pop %v4737
  %v4860 = vtanh.pop %v4740
  %v4861 = vtanh.pop %v4745
  %v4862 = vtanh.pop %v4748
  %v4863 = vtanh.pop %v4753
  %v4864 = vtanh.pop %v4756
  %v4865 = vtanh.pop %v4761
  %v4866 = vtanh.pop %v4764
  %v4867 = vtanh.pop %v4769
  %v4868 = vtanh.pop %v4772
  %v4869 = vtanh.pop %v4777
  %v4870 = vtanh.pop %v4780
  %v4871 = vtanh.pop %v4785
  %v4872 = vtanh.pop %v4788
  %v4873 = vtanh.pop %v4793
  %v4874 = vtanh.pop %v4796
  %v4875 = vtanh.pop %v4801
  %v4876 = vtanh.pop %v4804
  %v4877 = vtanh.pop %v4809
  %v4878 = vtanh.pop %v4812
  %s4879 = scalar_lea.vmem %s5, 512
  %4880 = vst [vmem:[%s4879] sm:$0xff] %v4815
  %4881 = vst [vmem:[%s4879 + $0x8] sm:$0xff] %v4816
  %4882 = vst [vmem:[%s4879 + $0x10] sm:$0xff] %v4817
  %4883 = vst [vmem:[%s4879 + $0x18] sm:$0xff] %v4818
  %4884 = vst [vmem:[%s4879 + $0x20] sm:$0xff] %v4819
  %4885 = vst [vmem:[%s4879 + $0x28] sm:$0xff] %v4820
  %4886 = vst [vmem:[%s4879 + $0x30] sm:$0xff] %v4821
  %4887 = vst [vmem:[%s4879 + $0x38] sm:$0xff] %v4822
  %4888 = vst [vmem:[%s4879 + $0x40] sm:$0xff] %v4823
  %4889 = vst [vmem:[%s4879 + $0x48] sm:$0xff] %v4824
  %4890 = vst [vmem:[%s4879 + $0x50] sm:$0xff] %v4825
  %4891 = vst [vmem:[%s4879 + $0x58] sm:$0xff] %v4826
  %4892 = vst [vmem:[%s4879 + $0x60] sm:$0xff] %v4827
  %4893 = vst [vmem:[%s4879 + $0x68] sm:$0xff] %v4828
  %4894 = vst [vmem:[%s4879 + $0x70] sm:$0xff] %v4829
  %4895 = vst [vmem:[%s4879 + $0x78] sm:$0xff] %v4830
  %4896 = vst [vmem:[%s4879 + $0x80] sm:$0xff] %v4831
  %4897 = vst [vmem:[%s4879 + $0x88] sm:$0xff] %v4832
  %4898 = vst [vmem:[%s4879 + $0x90] sm:$0xff] %v4833
  %4899 = vst [vmem:[%s4879 + $0x98] sm:$0xff] %v4834
  %4900 = vst [vmem:[%s4879 + $0xa0] sm:$0xff] %v4835
  %4901 = vst [vmem:[%s4879 + $0xa8] sm:$0xff] %v4836
  %4902 = vst [vmem:[%s4879 + $0xb0] sm:$0xff] %v4837
  %4903 = vst [vmem:[%s4879 + $0xb8] sm:$0xff] %v4838
  %4904 = vst [vmem:[%s4879 + $0xc0] sm:$0xff] %v4839
  %4905 = vst [vmem:[%s4879 + $0xc8] sm:$0xff] %v4840
  %4906 = vst [vmem:[%s4879 + $0xd0] sm:$0xff] %v4841
  %4907 = vst [vmem:[%s4879 + $0xd8] sm:$0xff] %v4842
  %4908 = vst [vmem:[%s4879 + $0xe0] sm:$0xff] %v4843
  %4909 = vst [vmem:[%s4879 + $0xe8] sm:$0xff] %v4844
  %4910 = vst [vmem:[%s4879 + $0xf0] sm:$0xff] %v4845
  %4911 = vst [vmem:[%s4879 + $0xf8] sm:$0xff] %v4846
  %4912 = vst [vmem:[%s4879 + $0x100] sm:$0xff] %v4847
  %4913 = vst [vmem:[%s4879 + $0x108] sm:$0xff] %v4848
  %4914 = vst [vmem:[%s4879 + $0x110] sm:$0xff] %v4849
  %4915 = vst [vmem:[%s4879 + $0x118] sm:$0xff] %v4850
  %4916 = vst [vmem:[%s4879 + $0x120] sm:$0xff] %v4851
  %4917 = vst [vmem:[%s4879 + $0x128] sm:$0xff] %v4852
  %4918 = vst [vmem:[%s4879 + $0x130] sm:$0xff] %v4853
  %4919 = vst [vmem:[%s4879 + $0x138] sm:$0xff] %v4854
  %4920 = vst [vmem:[%s4879 + $0x140] sm:$0xff] %v4855
  %4921 = vst [vmem:[%s4879 + $0x148] sm:$0xff] %v4856
  %4922 = vst [vmem:[%s4879 + $0x150] sm:$0xff] %v4857
  %4923 = vst [vmem:[%s4879 + $0x158] sm:$0xff] %v4858
  %4924 = vst [vmem:[%s4879 + $0x160] sm:$0xff] %v4859
  %4925 = vst [vmem:[%s4879 + $0x168] sm:$0xff] %v4860
  %4926 = vst [vmem:[%s4879 + $0x170] sm:$0xff] %v4861
  %4927 = vst [vmem:[%s4879 + $0x178] sm:$0xff] %v4862
  %4928 = vst [vmem:[%s4879 + $0x180] sm:$0xff] %v4863
  %4929 = vst [vmem:[%s4879 + $0x188] sm:$0xff] %v4864
  %4930 = vst [vmem:[%s4879 + $0x190] sm:$0xff] %v4865
  %4931 = vst [vmem:[%s4879 + $0x198] sm:$0xff] %v4866
  %4932 = vst [vmem:[%s4879 + $0x1a0] sm:$0xff] %v4867
  %4933 = vst [vmem:[%s4879 + $0x1a8] sm:$0xff] %v4868
  %4934 = vst [vmem:[%s4879 + $0x1b0] sm:$0xff] %v4869
  %4935 = vst [vmem:[%s4879 + $0x1b8] sm:$0xff] %v4870
  %4936 = vst [vmem:[%s4879 + $0x1c0] sm:$0xff] %v4871
  %4937 = vst [vmem:[%s4879 + $0x1c8] sm:$0xff] %v4872
  %4938 = vst [vmem:[%s4879 + $0x1d0] sm:$0xff] %v4873
  %4939 = vst [vmem:[%s4879 + $0x1d8] sm:$0xff] %v4874
  %4940 = vst [vmem:[%s4879 + $0x1e0] sm:$0xff] %v4875
  %4941 = vst [vmem:[%s4879 + $0x1e8] sm:$0xff] %v4876
  %4942 = vst [vmem:[%s4879 + $0x1f0] sm:$0xff] %v4877
  %4943 = vst [vmem:[%s4879 + $0x1f8] sm:$0xff] %v4878
  %v4948 = vunpack.c.l.b16 %v3868
  %v4949 = vunpack.c.l.b16 %v3869
  %v4950 = vunpack.c.l.b16 %v3870
  %v4951 = vunpack.c.l.b16 %v3871
  %v4952 = vpack.c.b16 %v4949, %v4948
  %v4953 = vpack.c.b16 %v4951, %v4950
  %v4957 = vsel %vm47, %v3863, 0
  %v4960 = vsel %vm47, %v3864, 0
  %v4963 = vsel %vm47, %v3865, 0
  %v4966 = vsel %vm47, %v3866, 0
  %4968 = vmatprep.subr.bf16.mxu0 0
  %4969 = vmatpush1.bf16.msra.mxu0 %v4952
  %4970 = vmatprep.subr.bf16.mxu0 0
  %4971 = vmatpush1.bf16.msra.mxu0 %v4953
  %4972 = vmatprep.subr.bf16.mxu0 0
  %4973 = vmatpush1.bf16.msra.mxu0 0
  %4974 = vmatprep.subr.bf16.mxu0 0
  %4975 = vmatpush1.bf16.msra.mxu0 0
  %4976 = vmatprep.subr.bf16.mxu0 0
  %4977 = vmatpush1.bf16.msra.mxu0 0
  %4978 = vmatprep.subr.bf16.mxu0 0
  %4979 = vmatpush1.bf16.msra.mxu0 0
  %4980 = vmatprep.subr.bf16.mxu0 0
  %4981 = vmatpush1.bf16.msra.mxu0 0
  %4982 = vmatprep.subr.bf16.mxu0 0
  %4983 = vmatpush1.bf16.msra.mxu0 0
  %4984 = vmatprep.subr.bf16.mxu0 0
  %4985 = vmatpush1.bf16.msra.mxu0 0
  %4986 = vmatprep.subr.bf16.mxu0 0
  %4987 = vmatpush1.bf16.msra.mxu0 0
  %4988 = vmatprep.subr.bf16.mxu0 0
  %4989 = vmatpush1.bf16.msra.mxu0 0
  %4990 = vmatprep.subr.bf16.mxu0 0
  %4991 = vmatpush1.bf16.msra.mxu0 0
  %4992 = vmatprep.subr.bf16.mxu0 0
  %4993 = vmatpush1.bf16.msra.mxu0 0
  %4994 = vmatprep.subr.bf16.mxu0 0
  %4995 = vmatpush1.bf16.msra.mxu0 0
  %4996 = vmatprep.subr.bf16.mxu0 0
  %4997 = vmatpush1.bf16.msra.mxu0 0
  %4998 = vmatprep.subr.bf16.mxu0 0
  %4999 = vmatpush1.bf16.msra.mxu0 0
  %5000 = vmatprep.mubr.bf16.mxu0 0
  %5001 = vmatmul.mubr.bf16.gmra.mrb[0].mxu0 %v3918
  %v5002 = vpop.f32.mrb[0].mxu0
  %v5003 = vadd.f32 %v3891, %v5002
  %v5004 = vpop.f32.mrb[0].mxu0
  %v5005 = vpop.f32.mrb[0].mxu0
  %v5006 = vadd.f32 %v3891, %v5005
  %v5007 = vpop.f32.mrb[0].mxu0
  %5008 = vmatprep.mubr.bf16.mxu0 0
  %5009 = vmatmul.mubr.bf16.gmra.mrb[0].mxu0 %v3921
  %v5010 = vpop.f32.mrb[0].mxu0
  %v5011 = vadd.f32 %v3891, %v5010
  %v5012 = vpop.f32.mrb[0].mxu0
  %v5013 = vpop.f32.mrb[0].mxu0
  %v5014 = vadd.f32 %v3891, %v5013
  %v5015 = vpop.f32.mrb[0].mxu0
  %5016 = vmatprep.mubr.bf16.mxu0 0
  %5017 = vmatmul.mubr.bf16.gmra.mrb[0].mxu0 %v3924
  %v5018 = vpop.f32.mrb[0].mxu0
  %v5019 = vadd.f32 %v3891, %v5018
  %v5020 = vpop.f32.mrb[0].mxu0
  %v5021 = vpop.f32.mrb[0].mxu0
  %v5022 = vadd.f32 %v3891, %v5021
  %v5023 = vpop.f32.mrb[0].mxu0
  %5024 = vmatprep.mubr.bf16.mxu0 0
  %5025 = vmatmul.mubr.bf16.gmra.mrb[0].mxu0 %v3927
  %v5026 = vpop.f32.mrb[0].mxu0
  %v5027 = vadd.f32 %v3891, %v5026
  %v5028 = vpop.f32.mrb[0].mxu0
  %v5029 = vpop.f32.mrb[0].mxu0
  %v5030 = vadd.f32 %v3891, %v5029
  %v5031 = vpop.f32.mrb[0].mxu0
  %5032 = vmatprep.mubr.bf16.mxu0 0
  %5033 = vmatmul.mubr.bf16.gmra.mrb[0].mxu0 %v3930
  %v5034 = vpop.f32.mrb[0].mxu0
  %v5035 = vadd.f32 %v3891, %v5034
  %v5036 = vpop.f32.mrb[0].mxu0
  %v5037 = vpop.f32.mrb[0].mxu0
  %v5038 = vadd.f32 %v3891, %v5037
  %v5039 = vpop.f32.mrb[0].mxu0
  %5040 = vmatprep.mubr.bf16.mxu0 0
  %5041 = vmatmul.mubr.bf16.gmra.mrb[0].mxu0 %v3933
  %v5042 = vpop.f32.mrb[0].mxu0
  %v5043 = vadd.f32 %v3891, %v5042
  %v5044 = vpop.f32.mrb[0].mxu0
  %v5045 = vpop.f32.mrb[0].mxu0
  %v5046 = vadd.f32 %v3891, %v5045
  %v5047 = vpop.f32.mrb[0].mxu0
  %5048 = vmatprep.mubr.bf16.mxu0 0
  %5049 = vmatmul.mubr.bf16.gmra.mrb[0].mxu0 %v3936
  %v5050 = vpop.f32.mrb[0].mxu0
  %v5051 = vadd.f32 %v3891, %v5050
  %v5052 = vpop.f32.mrb[0].mxu0
  %v5053 = vpop.f32.mrb[0].mxu0
  %v5054 = vadd.f32 %v3891, %v5053
  %v5055 = vpop.f32.mrb[0].mxu0
  %5056 = vmatprep.mubr.bf16.mxu0 0
  %5057 = vmatmul.mubr.bf16.gmra.mrb[0].mxu0 %v3939
  %v5058 = vpop.f32.mrb[0].mxu0
  %v5059 = vadd.f32 %v3891, %v5058
  %v5060 = vpop.f32.mrb[0].mxu0
  %v5061 = vpop.f32.mrb[0].mxu0
  %v5062 = vadd.f32 %v3891, %v5061
  %v5063 = vpop.f32.mrb[0].mxu0
  %5064 = vmatprep.mubr.bf16.mxu0 0
  %5065 = vmatmul.mubr.bf16.gmra.mrb[0].mxu0 %v3942
  %v5066 = vpop.f32.mrb[0].mxu0
  %v5067 = vadd.f32 %v3891, %v5066
  %v5068 = vpop.f32.mrb[0].mxu0
  %v5069 = vpop.f32.mrb[0].mxu0
  %v5070 = vadd.f32 %v3891, %v5069
  %v5071 = vpop.f32.mrb[0].mxu0
  %5072 = vmatprep.mubr.bf16.mxu0 0
  %5073 = vmatmul.mubr.bf16.gmra.mrb[0].mxu0 %v3945
  %v5074 = vpop.f32.mrb[0].mxu0
  %v5075 = vadd.f32 %v3891, %v5074
  %v5076 = vpop.f32.mrb[0].mxu0
  %v5077 = vpop.f32.mrb[0].mxu0
  %v5078 = vadd.f32 %v3891, %v5077
  %v5079 = vpop.f32.mrb[0].mxu0
  %5080 = vmatprep.mubr.bf16.mxu0 0
  %5081 = vmatmul.mubr.bf16.gmra.mrb[0].mxu0 %v3948
  %v5082 = vpop.f32.mrb[0].mxu0
  %v5083 = vadd.f32 %v3891, %v5082
  %v5084 = vpop.f32.mrb[0].mxu0
  %v5085 = vpop.f32.mrb[0].mxu0
  %v5086 = vadd.f32 %v3891, %v5085
  %v5087 = vpop.f32.mrb[0].mxu0
  %5088 = vmatprep.mubr.bf16.mxu0 0
  %5089 = vmatmul.mubr.bf16.gmra.mrb[0].mxu0 %v3951
  %v5090 = vpop.f32.mrb[0].mxu0
  %v5091 = vadd.f32 %v3891, %v5090
  %v5092 = vpop.f32.mrb[0].mxu0
  %v5093 = vpop.f32.mrb[0].mxu0
  %v5094 = vadd.f32 %v3891, %v5093
  %v5095 = vpop.f32.mrb[0].mxu0
  %5096 = vmatprep.mubr.bf16.mxu0 0
  %5097 = vmatmul.mubr.bf16.gmra.mrb[0].mxu0 %v3954
  %v5098 = vpop.f32.mrb[0].mxu0
  %v5099 = vadd.f32 %v3891, %v5098
  %v5100 = vpop.f32.mrb[0].mxu0
  %v5101 = vpop.f32.mrb[0].mxu0
  %v5102 = vadd.f32 %v3891, %v5101
  %v5103 = vpop.f32.mrb[0].mxu0
  %5104 = vmatprep.mubr.bf16.mxu0 0
  %5105 = vmatmul.mubr.bf16.gmra.mrb[0].mxu0 %v3957
  %v5106 = vpop.f32.mrb[0].mxu0
  %v5107 = vadd.f32 %v3891, %v5106
  %v5108 = vpop.f32.mrb[0].mxu0
  %v5109 = vpop.f32.mrb[0].mxu0
  %v5110 = vadd.f32 %v3891, %v5109
  %v5111 = vpop.f32.mrb[0].mxu0
  %5112 = vmatprep.mubr.bf16.mxu0 0
  %5113 = vmatmul.mubr.bf16.gmra.mrb[0].mxu0 %v3960
  %v5114 = vpop.f32.mrb[0].mxu0
  %v5115 = vadd.f32 %v3891, %v5114
  %v5116 = vpop.f32.mrb[0].mxu0
  %v5117 = vpop.f32.mrb[0].mxu0
  %v5118 = vadd.f32 %v3891, %v5117
  %v5119 = vpop.f32.mrb[0].mxu0
  %5120 = vmatprep.mubr.bf16.mxu0 0
  %5121 = vmatmul.mubr.bf16.gmra.mrb[0].mxu0 %v3963
  %v5122 = vpop.f32.mrb[0].mxu0
  %v5123 = vadd.f32 %v3891, %v5122
  %v5124 = vpop.f32.mrb[0].mxu0
  %v5125 = vpop.f32.mrb[0].mxu0
  %v5126 = vadd.f32 %v3891, %v5125
  %v5127 = vpop.f32.mrb[0].mxu0
  %5128 = vmatprep.mubr.bf16.mxu0 0
  %5129 = vmatmul.mubr.bf16.gmra.mrb[0].mxu0 %v3966
  %v5130 = vpop.f32.mrb[0].mxu0
  %v5131 = vadd.f32 %v3891, %v5130
  %v5132 = vpop.f32.mrb[0].mxu0
  %v5133 = vpop.f32.mrb[0].mxu0
  %v5134 = vadd.f32 %v3891, %v5133
  %v5135 = vpop.f32.mrb[0].mxu0
  %5136 = vmatprep.mubr.bf16.mxu0 0
  %5137 = vmatmul.mubr.bf16.gmra.mrb[0].mxu0 %v3969
  %v5138 = vpop.f32.mrb[0].mxu0
  %v5139 = vadd.f32 %v3891, %v5138
  %v5140 = vpop.f32.mrb[0].mxu0
  %v5141 = vpop.f32.mrb[0].mxu0
  %v5142 = vadd.f32 %v3891, %v5141
  %v5143 = vpop.f32.mrb[0].mxu0
  %5144 = vmatprep.mubr.bf16.mxu0 0
  %5145 = vmatmul.mubr.bf16.gmra.mrb[0].mxu0 %v3972
  %v5146 = vpop.f32.mrb[0].mxu0
  %v5147 = vadd.f32 %v3891, %v5146
  %v5148 = vpop.f32.mrb[0].mxu0
  %v5149 = vpop.f32.mrb[0].mxu0
  %v5150 = vadd.f32 %v3891, %v5149
  %v5151 = vpop.f32.mrb[0].mxu0
  %5152 = vmatprep.mubr.bf16.mxu0 0
  %5153 = vmatmul.mubr.bf16.gmra.mrb[0].mxu0 %v3975
  %v5154 = vpop.f32.mrb[0].mxu0
  %v5155 = vadd.f32 %v3891, %v5154
  %v5156 = vpop.f32.mrb[0].mxu0
  %v5157 = vpop.f32.mrb[0].mxu0
  %v5158 = vadd.f32 %v3891, %v5157
  %v5159 = vpop.f32.mrb[0].mxu0
  %5160 = vmatprep.mubr.bf16.mxu0 0
  %5161 = vmatmul.mubr.bf16.gmra.mrb[0].mxu0 %v3978
  %v5162 = vpop.f32.mrb[0].mxu0
  %v5163 = vadd.f32 %v3891, %v5162
  %v5164 = vpop.f32.mrb[0].mxu0
  %v5165 = vpop.f32.mrb[0].mxu0
  %v5166 = vadd.f32 %v3891, %v5165
  %v5167 = vpop.f32.mrb[0].mxu0
  %5168 = vmatprep.mubr.bf16.mxu0 0
  %5169 = vmatmul.mubr.bf16.gmra.mrb[0].mxu0 %v3981
  %v5170 = vpop.f32.mrb[0].mxu0
  %v5171 = vadd.f32 %v3891, %v5170
  %v5172 = vpop.f32.mrb[0].mxu0
  %v5173 = vpop.f32.mrb[0].mxu0
  %v5174 = vadd.f32 %v3891, %v5173
  %v5175 = vpop.f32.mrb[0].mxu0
  %5176 = vmatprep.mubr.bf16.mxu0 0
  %5177 = vmatmul.mubr.bf16.gmra.mrb[0].mxu0 %v3984
  %v5178 = vpop.f32.mrb[0].mxu0
  %v5179 = vadd.f32 %v3891, %v5178
  %v5180 = vpop.f32.mrb[0].mxu0
  %v5181 = vpop.f32.mrb[0].mxu0
  %v5182 = vadd.f32 %v3891, %v5181
  %v5183 = vpop.f32.mrb[0].mxu0
  %5184 = vmatprep.mubr.bf16.mxu0 0
  %5185 = vmatmul.mubr.bf16.gmra.mrb[0].mxu0 %v3987
  %v5186 = vpop.f32.mrb[0].mxu0
  %v5187 = vadd.f32 %v3891, %v5186
  %v5188 = vpop.f32.mrb[0].mxu0
  %v5189 = vpop.f32.mrb[0].mxu0
  %v5190 = vadd.f32 %v3891, %v5189
  %v5191 = vpop.f32.mrb[0].mxu0
  %5192 = vmatprep.mubr.bf16.mxu0 0
  %5193 = vmatmul.mubr.bf16.gmra.mrb[0].mxu0 %v3990
  %v5194 = vpop.f32.mrb[0].mxu0
  %v5195 = vadd.f32 %v3891, %v5194
  %v5196 = vpop.f32.mrb[0].mxu0
  %v5197 = vpop.f32.mrb[0].mxu0
  %v5198 = vadd.f32 %v3891, %v5197
  %v5199 = vpop.f32.mrb[0].mxu0
  %5200 = vmatprep.mubr.bf16.mxu0 0
  %5201 = vmatmul.mubr.bf16.gmra.mrb[0].mxu0 %v3993
  %v5202 = vpop.f32.mrb[0].mxu0
  %v5203 = vadd.f32 %v3891, %v5202
  %v5204 = vpop.f32.mrb[0].mxu0
  %v5205 = vpop.f32.mrb[0].mxu0
  %v5206 = vadd.f32 %v3891, %v5205
  %v5207 = vpop.f32.mrb[0].mxu0
  %5208 = vmatprep.mubr.bf16.mxu0 0
  %5209 = vmatmul.mubr.bf16.gmra.mrb[0].mxu0 %v3996
  %v5210 = vpop.f32.mrb[0].mxu0
  %v5211 = vadd.f32 %v3891, %v5210
  %v5212 = vpop.f32.mrb[0].mxu0
  %v5213 = vpop.f32.mrb[0].mxu0
  %v5214 = vadd.f32 %v3891, %v5213
  %v5215 = vpop.f32.mrb[0].mxu0
  %5216 = vmatprep.mubr.bf16.mxu0 0
  %5217 = vmatmul.mubr.bf16.gmra.mrb[0].mxu0 %v3999
  %v5218 = vpop.f32.mrb[0].mxu0
  %v5219 = vadd.f32 %v3891, %v5218
  %v5220 = vpop.f32.mrb[0].mxu0
  %v5221 = vpop.f32.mrb[0].mxu0
  %v5222 = vadd.f32 %v3891, %v5221
  %v5223 = vpop.f32.mrb[0].mxu0
  %5224 = vmatprep.mubr.bf16.mxu0 0
  %5225 = vmatmul.mubr.bf16.gmra.mrb[0].mxu0 %v4957
  %v5226 = vpop.f32.mrb[0].mxu0
  %v5227 = vadd.f32 %v3891, %v5226
  %v5228 = vpop.f32.mrb[0].mxu0
  %v5229 = vpop.f32.mrb[0].mxu0
  %v5230 = vadd.f32 %v3891, %v5229
  %v5231 = vpop.f32.mrb[0].mxu0
  %5232 = vmatprep.mubr.bf16.mxu0 0
  %5233 = vmatmul.mubr.bf16.gmra.mrb[0].mxu0 %v4960
  %v5234 = vpop.f32.mrb[0].mxu0
  %v5235 = vadd.f32 %v3891, %v5234
  %v5236 = vpop.f32.mrb[0].mxu0
  %v5237 = vpop.f32.mrb[0].mxu0
  %v5238 = vadd.f32 %v3891, %v5237
  %v5239 = vpop.f32.mrb[0].mxu0
  %5240 = vmatprep.mubr.bf16.mxu0 0
  %5241 = vmatmul.mubr.bf16.gmra.mrb[0].mxu0 %v4963
  %v5242 = vpop.f32.mrb[0].mxu0
  %v5243 = vadd.f32 %v3891, %v5242
  %v5244 = vpop.f32.mrb[0].mxu0
  %v5245 = vpop.f32.mrb[0].mxu0
  %v5246 = vadd.f32 %v3891, %v5245
  %v5247 = vpop.f32.mrb[0].mxu0
  %5248 = vmatprep.mubr.bf16.mxu0 0
  %5249 = vmatmul.mubr.bf16.gmra.mrb[0].mxu0 %v4966
  %v5250 = vpop.f32.mrb[0].mxu0
  %v5251 = vadd.f32 %v3891, %v5250
  %v5252 = vpop.f32.mrb[0].mxu0
  %v5253 = vpop.f32.mrb[0].mxu0
  %v5254 = vadd.f32 %v3891, %v5253
  %v5255 = vpop.f32.mrb[0].mxu0
  %5256 = vdwg.mxu0
  %v5257 = vtanh.pop %v5003
  %v5258 = vtanh.pop %v5006
  %v5259 = vtanh.pop %v5011
  %v5260 = vtanh.pop %v5014
  %v5261 = vtanh.pop %v5019
  %v5262 = vtanh.pop %v5022
  %v5263 = vtanh.pop %v5027
  %v5264 = vtanh.pop %v5030
  %v5265 = vtanh.pop %v5035
  %v5266 = vtanh.pop %v5038
  %v5267 = vtanh.pop %v5043
  %v5268 = vtanh.pop %v5046
  %v5269 = vtanh.pop %v5051
  %v5270 = vtanh.pop %v5054
  %v5271 = vtanh.pop %v5059
  %v5272 = vtanh.pop %v5062
  %v5273 = vtanh.pop %v5067
  %v5274 = vtanh.pop %v5070
  %v5275 = vtanh.pop %v5075
  %v5276 = vtanh.pop %v5078
  %v5277 = vtanh.pop %v5083
  %v5278 = vtanh.pop %v5086
  %v5279 = vtanh.pop %v5091
  %v5280 = vtanh.pop %v5094
  %v5281 = vtanh.pop %v5099
  %v5282 = vtanh.pop %v5102
  %v5283 = vtanh.pop %v5107
  %v5284 = vtanh.pop %v5110
  %v5285 = vtanh.pop %v5115
  %v5286 = vtanh.pop %v5118
  %v5287 = vtanh.pop %v5123
  %v5288 = vtanh.pop %v5126
  %v5289 = vtanh.pop %v5131
  %v5290 = vtanh.pop %v5134
  %v5291 = vtanh.pop %v5139
  %v5292 = vtanh.pop %v5142
  %v5293 = vtanh.pop %v5147
  %v5294 = vtanh.pop %v5150
  %v5295 = vtanh.pop %v5155
  %v5296 = vtanh.pop %v5158
  %v5297 = vtanh.pop %v5163
  %v5298 = vtanh.pop %v5166
  %v5299 = vtanh.pop %v5171
  %v5300 = vtanh.pop %v5174
  %v5301 = vtanh.pop %v5179
  %v5302 = vtanh.pop %v5182
  %v5303 = vtanh.pop %v5187
  %v5304 = vtanh.pop %v5190
  %v5305 = vtanh.pop %v5195
  %v5306 = vtanh.pop %v5198
  %v5307 = vtanh.pop %v5203
  %v5308 = vtanh.pop %v5206
  %v5309 = vtanh.pop %v5211
  %v5310 = vtanh.pop %v5214
  %v5311 = vtanh.pop %v5219
  %v5312 = vtanh.pop %v5222
  %v5313 = vtanh.pop %v5227
  %v5314 = vtanh.pop %v5230
  %v5315 = vtanh.pop %v5235
  %v5316 = vtanh.pop %v5238
  %v5317 = vtanh.pop %v5243
  %v5318 = vtanh.pop %v5246
  %v5319 = vtanh.pop %v5251
  %v5320 = vtanh.pop %v5254
  %s5321 = scalar_lea.vmem %s5, 1024
  %5322 = vst [vmem:[%s5321] sm:$0xff] %v5257
  %5323 = vst [vmem:[%s5321 + $0x8] sm:$0xff] %v5258
  %5324 = vst [vmem:[%s5321 + $0x10] sm:$0xff] %v5259
  %5325 = vst [vmem:[%s5321 + $0x18] sm:$0xff] %v5260
  %5326 = vst [vmem:[%s5321 + $0x20] sm:$0xff] %v5261
  %5327 = vst [vmem:[%s5321 + $0x28] sm:$0xff] %v5262
  %5328 = vst [vmem:[%s5321 + $0x30] sm:$0xff] %v5263
  %5329 = vst [vmem:[%s5321 + $0x38] sm:$0xff] %v5264
  %5330 = vst [vmem:[%s5321 + $0x40] sm:$0xff] %v5265
  %5331 = vst [vmem:[%s5321 + $0x48] sm:$0xff] %v5266
  %5332 = vst [vmem:[%s5321 + $0x50] sm:$0xff] %v5267
  %5333 = vst [vmem:[%s5321 + $0x58] sm:$0xff] %v5268
  %5334 = vst [vmem:[%s5321 + $0x60] sm:$0xff] %v5269
  %5335 = vst [vmem:[%s5321 + $0x68] sm:$0xff] %v5270
  %5336 = vst [vmem:[%s5321 + $0x70] sm:$0xff] %v5271
  %5337 = vst [vmem:[%s5321 + $0x78] sm:$0xff] %v5272
  %5338 = vst [vmem:[%s5321 + $0x80] sm:$0xff] %v5273
  %5339 = vst [vmem:[%s5321 + $0x88] sm:$0xff] %v5274
  %5340 = vst [vmem:[%s5321 + $0x90] sm:$0xff] %v5275
  %5341 = vst [vmem:[%s5321 + $0x98] sm:$0xff] %v5276
  %5342 = vst [vmem:[%s5321 + $0xa0] sm:$0xff] %v5277
  %5343 = vst [vmem:[%s5321 + $0xa8] sm:$0xff] %v5278
  %5344 = vst [vmem:[%s5321 + $0xb0] sm:$0xff] %v5279
  %5345 = vst [vmem:[%s5321 + $0xb8] sm:$0xff] %v5280
  %5346 = vst [vmem:[%s5321 + $0xc0] sm:$0xff] %v5281
  %5347 = vst [vmem:[%s5321 + $0xc8] sm:$0xff] %v5282
  %5348 = vst [vmem:[%s5321 + $0xd0] sm:$0xff] %v5283
  %5349 = vst [vmem:[%s5321 + $0xd8] sm:$0xff] %v5284
  %5350 = vst [vmem:[%s5321 + $0xe0] sm:$0xff] %v5285
  %5351 = vst [vmem:[%s5321 + $0xe8] sm:$0xff] %v5286
  %5352 = vst [vmem:[%s5321 + $0xf0] sm:$0xff] %v5287
  %5353 = vst [vmem:[%s5321 + $0xf8] sm:$0xff] %v5288
  %5354 = vst [vmem:[%s5321 + $0x100] sm:$0xff] %v5289
  %5355 = vst [vmem:[%s5321 + $0x108] sm:$0xff] %v5290
  %5356 = vst [vmem:[%s5321 + $0x110] sm:$0xff] %v5291
  %5357 = vst [vmem:[%s5321 + $0x118] sm:$0xff] %v5292
  %5358 = vst [vmem:[%s5321 + $0x120] sm:$0xff] %v5293
  %5359 = vst [vmem:[%s5321 + $0x128] sm:$0xff] %v5294
  %5360 = vst [vmem:[%s5321 + $0x130] sm:$0xff] %v5295
  %5361 = vst [vmem:[%s5321 + $0x138] sm:$0xff] %v5296
  %5362 = vst [vmem:[%s5321 + $0x140] sm:$0xff] %v5297
  %5363 = vst [vmem:[%s5321 + $0x148] sm:$0xff] %v5298
  %5364 = vst [vmem:[%s5321 + $0x150] sm:$0xff] %v5299
  %5365 = vst [vmem:[%s5321 + $0x158] sm:$0xff] %v5300
  %5366 = vst [vmem:[%s5321 + $0x160] sm:$0xff] %v5301
  %5367 = vst [vmem:[%s5321 + $0x168] sm:$0xff] %v5302
  %5368 = vst [vmem:[%s5321 + $0x170] sm:$0xff] %v5303
  %5369 = vst [vmem:[%s5321 + $0x178] sm:$0xff] %v5304
  %5370 = vst [vmem:[%s5321 + $0x180] sm:$0xff] %v5305
  %5371 = vst [vmem:[%s5321 + $0x188] sm:$0xff] %v5306
  %5372 = vst [vmem:[%s5321 + $0x190] sm:$0xff] %v5307
  %5373 = vst [vmem:[%s5321 + $0x198] sm:$0xff] %v5308
  %5374 = vst [vmem:[%s5321 + $0x1a0] sm:$0xff] %v5309
  %5375 = vst [vmem:[%s5321 + $0x1a8] sm:$0xff] %v5310
  %5376 = vst [vmem:[%s5321 + $0x1b0] sm:$0xff] %v5311
  %5377 = vst [vmem:[%s5321 + $0x1b8] sm:$0xff] %v5312
  %5378 = vst [vmem:[%s5321 + $0x1c0] sm:$0xff] %v5313
  %5379 = vst [vmem:[%s5321 + $0x1c8] sm:$0xff] %v5314
  %5380 = vst [vmem:[%s5321 + $0x1d0] sm:$0xff] %v5315
  %5381 = vst [vmem:[%s5321 + $0x1d8] sm:$0xff] %v5316
  %5382 = vst [vmem:[%s5321 + $0x1e0] sm:$0xff] %v5317
  %5383 = vst [vmem:[%s5321 + $0x1e8] sm:$0xff] %v5318
  %5384 = vst [vmem:[%s5321 + $0x1f0] sm:$0xff] %v5319
  %5385 = vst [vmem:[%s5321 + $0x1f8] sm:$0xff] %v5320
  %v5390 = vunpack.c.l.b16 %v3882
  %v5391 = vunpack.c.l.b16 %v3883
  %v5392 = vunpack.c.l.b16 %v3884
  %v5393 = vunpack.c.l.b16 %v3885
  %v5394 = vpack.c.b16 %v5391, %v5390
  %v5395 = vpack.c.b16 %v5393, %v5392
  %v5399 = vsel %vm47, %v3877, 0
  %v5402 = vsel %vm47, %v3878, 0
  %v5405 = vsel %vm47, %v3879, 0
  %v5408 = vsel %vm47, %v3880, 0
  %5410 = vmatprep.subr.bf16.mxu0 0
  %5411 = vmatpush1.bf16.msra.mxu0 %v5394
  %5412 = vmatprep.subr.bf16.mxu0 0
  %5413 = vmatpush1.bf16.msra.mxu0 %v5395
  %5414 = vmatprep.subr.bf16.mxu0 0
  %5415 = vmatpush1.bf16.msra.mxu0 0
  %5416 = vmatprep.subr.bf16.mxu0 0
  %5417 = vmatpush1.bf16.msra.mxu0 0
  %5418 = vmatprep.subr.bf16.mxu0 0
  %5419 = vmatpush1.bf16.msra.mxu0 0
  %5420 = vmatprep.subr.bf16.mxu0 0
  %5421 = vmatpush1.bf16.msra.mxu0 0
  %5422 = vmatprep.subr.bf16.mxu0 0
  %5423 = vmatpush1.bf16.msra.mxu0 0
  %5424 = vmatprep.subr.bf16.mxu0 0
  %5425 = vmatpush1.bf16.msra.mxu0 0
  %5426 = vmatprep.subr.bf16.mxu0 0
  %5427 = vmatpush1.bf16.msra.mxu0 0
  %5428 = vmatprep.subr.bf16.mxu0 0
  %5429 = vmatpush1.bf16.msra.mxu0 0
  %5430 = vmatprep.subr.bf16.mxu0 0
  %5431 = vmatpush1.bf16.msra.mxu0 0
  %5432 = vmatprep.subr.bf16.mxu0 0
  %5433 = vmatpush1.bf16.msra.mxu0 0
  %5434 = vmatprep.subr.bf16.mxu0 0
  %5435 = vmatpush1.bf16.msra.mxu0 0
  %5436 = vmatprep.subr.bf16.mxu0 0
  %5437 = vmatpush1.bf16.msra.mxu0 0
  %5438 = vmatprep.subr.bf16.mxu0 0
  %5439 = vmatpush1.bf16.msra.mxu0 0
  %5440 = vmatprep.subr.bf16.mxu0 0
  %5441 = vmatpush1.bf16.msra.mxu0 0
  %5442 = vmatprep.mubr.bf16.mxu0 0
  %5443 = vmatmul.mubr.bf16.gmra.mrb[0].mxu0 %v4443
  %v5444 = vpop.f32.mrb[0].mxu0
  %v5445 = vadd.f32 %v3891, %v5444
  %v5446 = vpop.f32.mrb[0].mxu0
  %v5447 = vpop.f32.mrb[0].mxu0
  %v5448 = vadd.f32 %v3891, %v5447
  %v5449 = vpop.f32.mrb[0].mxu0
  %5450 = vmatprep.mubr.bf16.mxu0 0
  %5451 = vmatmul.mubr.bf16.gmra.mrb[0].mxu0 %v4446
  %v5452 = vpop.f32.mrb[0].mxu0
  %v5453 = vadd.f32 %v3891, %v5452
  %v5454 = vpop.f32.mrb[0].mxu0
  %v5455 = vpop.f32.mrb[0].mxu0
  %v5456 = vadd.f32 %v3891, %v5455
  %v5457 = vpop.f32.mrb[0].mxu0
  %5458 = vmatprep.mubr.bf16.mxu0 0
  %5459 = vmatmul.mubr.bf16.gmra.mrb[0].mxu0 %v4449
  %v5460 = vpop.f32.mrb[0].mxu0
  %v5461 = vadd.f32 %v3891, %v5460
  %v5462 = vpop.f32.mrb[0].mxu0
  %v5463 = vpop.f32.mrb[0].mxu0
  %v5464 = vadd.f32 %v3891, %v5463
  %v5465 = vpop.f32.mrb[0].mxu0
  %5466 = vmatprep.mubr.bf16.mxu0 0
  %5467 = vmatmul.mubr.bf16.gmra.mrb[0].mxu0 %v4452
  %v5468 = vpop.f32.mrb[0].mxu0
  %v5469 = vadd.f32 %v3891, %v5468
  %v5470 = vpop.f32.mrb[0].mxu0
  %v5471 = vpop.f32.mrb[0].mxu0
  %v5472 = vadd.f32 %v3891, %v5471
  %v5473 = vpop.f32.mrb[0].mxu0
  %5474 = vmatprep.mubr.bf16.mxu0 0
  %5475 = vmatmul.mubr.bf16.gmra.mrb[0].mxu0 %v4455
  %v5476 = vpop.f32.mrb[0].mxu0
  %v5477 = vadd.f32 %v3891, %v5476
  %v5478 = vpop.f32.mrb[0].mxu0
  %v5479 = vpop.f32.mrb[0].mxu0
  %v5480 = vadd.f32 %v3891, %v5479
  %v5481 = vpop.f32.mrb[0].mxu0
  %5482 = vmatprep.mubr.bf16.mxu0 0
  %5483 = vmatmul.mubr.bf16.gmra.mrb[0].mxu0 %v4458
  %v5484 = vpop.f32.mrb[0].mxu0
  %v5485 = vadd.f32 %v3891, %v5484
  %v5486 = vpop.f32.mrb[0].mxu0
  %v5487 = vpop.f32.mrb[0].mxu0
  %v5488 = vadd.f32 %v3891, %v5487
  %v5489 = vpop.f32.mrb[0].mxu0
  %5490 = vmatprep.mubr.bf16.mxu0 0
  %5491 = vmatmul.mubr.bf16.gmra.mrb[0].mxu0 %v4461
  %v5492 = vpop.f32.mrb[0].mxu0
  %v5493 = vadd.f32 %v3891, %v5492
  %v5494 = vpop.f32.mrb[0].mxu0
  %v5495 = vpop.f32.mrb[0].mxu0
  %v5496 = vadd.f32 %v3891, %v5495
  %v5497 = vpop.f32.mrb[0].mxu0
  %5498 = vmatprep.mubr.bf16.mxu0 0
  %5499 = vmatmul.mubr.bf16.gmra.mrb[0].mxu0 %v4464
  %v5500 = vpop.f32.mrb[0].mxu0
  %v5501 = vadd.f32 %v3891, %v5500
  %v5502 = vpop.f32.mrb[0].mxu0
  %v5503 = vpop.f32.mrb[0].mxu0
  %v5504 = vadd.f32 %v3891, %v5503
  %v5505 = vpop.f32.mrb[0].mxu0
  %5506 = vmatprep.mubr.bf16.mxu0 0
  %5507 = vmatmul.mubr.bf16.gmra.mrb[0].mxu0 %v4467
  %v5508 = vpop.f32.mrb[0].mxu0
  %v5509 = vadd.f32 %v3891, %v5508
  %v5510 = vpop.f32.mrb[0].mxu0
  %v5511 = vpop.f32.mrb[0].mxu0
  %v5512 = vadd.f32 %v3891, %v5511
  %v5513 = vpop.f32.mrb[0].mxu0
  %5514 = vmatprep.mubr.bf16.mxu0 0
  %5515 = vmatmul.mubr.bf16.gmra.mrb[0].mxu0 %v4470
  %v5516 = vpop.f32.mrb[0].mxu0
  %v5517 = vadd.f32 %v3891, %v5516
  %v5518 = vpop.f32.mrb[0].mxu0
  %v5519 = vpop.f32.mrb[0].mxu0
  %v5520 = vadd.f32 %v3891, %v5519
  %v5521 = vpop.f32.mrb[0].mxu0
  %5522 = vmatprep.mubr.bf16.mxu0 0
  %5523 = vmatmul.mubr.bf16.gmra.mrb[0].mxu0 %v4473
  %v5524 = vpop.f32.mrb[0].mxu0
  %v5525 = vadd.f32 %v3891, %v5524
  %v5526 = vpop.f32.mrb[0].mxu0
  %v5527 = vpop.f32.mrb[0].mxu0
  %v5528 = vadd.f32 %v3891, %v5527
  %v5529 = vpop.f32.mrb[0].mxu0
  %5530 = vmatprep.mubr.bf16.mxu0 0
  %5531 = vmatmul.mubr.bf16.gmra.mrb[0].mxu0 %v4476
  %v5532 = vpop.f32.mrb[0].mxu0
  %v5533 = vadd.f32 %v3891, %v5532
  %v5534 = vpop.f32.mrb[0].mxu0
  %v5535 = vpop.f32.mrb[0].mxu0
  %v5536 = vadd.f32 %v3891, %v5535
  %v5537 = vpop.f32.mrb[0].mxu0
  %5538 = vmatprep.mubr.bf16.mxu0 0
  %5539 = vmatmul.mubr.bf16.gmra.mrb[0].mxu0 %v4479
  %v5540 = vpop.f32.mrb[0].mxu0
  %v5541 = vadd.f32 %v3891, %v5540
  %v5542 = vpop.f32.mrb[0].mxu0
  %v5543 = vpop.f32.mrb[0].mxu0
  %v5544 = vadd.f32 %v3891, %v5543
  %v5545 = vpop.f32.mrb[0].mxu0
  %5546 = vmatprep.mubr.bf16.mxu0 0
  %5547 = vmatmul.mubr.bf16.gmra.mrb[0].mxu0 %v4482
  %v5548 = vpop.f32.mrb[0].mxu0
  %v5549 = vadd.f32 %v3891, %v5548
  %v5550 = vpop.f32.mrb[0].mxu0
  %v5551 = vpop.f32.mrb[0].mxu0
  %v5552 = vadd.f32 %v3891, %v5551
  %v5553 = vpop.f32.mrb[0].mxu0
  %5554 = vmatprep.mubr.bf16.mxu0 0
  %5555 = vmatmul.mubr.bf16.gmra.mrb[0].mxu0 %v4485
  %v5556 = vpop.f32.mrb[0].mxu0
  %v5557 = vadd.f32 %v3891, %v5556
  %v5558 = vpop.f32.mrb[0].mxu0
  %v5559 = vpop.f32.mrb[0].mxu0
  %v5560 = vadd.f32 %v3891, %v5559
  %v5561 = vpop.f32.mrb[0].mxu0
  %5562 = vmatprep.mubr.bf16.mxu0 0
  %5563 = vmatmul.mubr.bf16.gmra.mrb[0].mxu0 %v4488
  %v5564 = vpop.f32.mrb[0].mxu0
  %v5565 = vadd.f32 %v3891, %v5564
  %v5566 = vpop.f32.mrb[0].mxu0
  %v5567 = vpop.f32.mrb[0].mxu0
  %v5568 = vadd.f32 %v3891, %v5567
  %v5569 = vpop.f32.mrb[0].mxu0
  %5570 = vmatprep.mubr.bf16.mxu0 0
  %5571 = vmatmul.mubr.bf16.gmra.mrb[0].mxu0 %v4491
  %v5572 = vpop.f32.mrb[0].mxu0
  %v5573 = vadd.f32 %v3891, %v5572
  %v5574 = vpop.f32.mrb[0].mxu0
  %v5575 = vpop.f32.mrb[0].mxu0
  %v5576 = vadd.f32 %v3891, %v5575
  %v5577 = vpop.f32.mrb[0].mxu0
  %5578 = vmatprep.mubr.bf16.mxu0 0
  %5579 = vmatmul.mubr.bf16.gmra.mrb[0].mxu0 %v4494
  %v5580 = vpop.f32.mrb[0].mxu0
  %v5581 = vadd.f32 %v3891, %v5580
  %v5582 = vpop.f32.mrb[0].mxu0
  %v5583 = vpop.f32.mrb[0].mxu0
  %v5584 = vadd.f32 %v3891, %v5583
  %v5585 = vpop.f32.mrb[0].mxu0
  %5586 = vmatprep.mubr.bf16.mxu0 0
  %5587 = vmatmul.mubr.bf16.gmra.mrb[0].mxu0 %v4497
  %v5588 = vpop.f32.mrb[0].mxu0
  %v5589 = vadd.f32 %v3891, %v5588
  %v5590 = vpop.f32.mrb[0].mxu0
  %v5591 = vpop.f32.mrb[0].mxu0
  %v5592 = vadd.f32 %v3891, %v5591
  %v5593 = vpop.f32.mrb[0].mxu0
  %5594 = vmatprep.mubr.bf16.mxu0 0
  %5595 = vmatmul.mubr.bf16.gmra.mrb[0].mxu0 %v4500
  %v5596 = vpop.f32.mrb[0].mxu0
  %v5597 = vadd.f32 %v3891, %v5596
  %v5598 = vpop.f32.mrb[0].mxu0
  %v5599 = vpop.f32.mrb[0].mxu0
  %v5600 = vadd.f32 %v3891, %v5599
  %v5601 = vpop.f32.mrb[0].mxu0
  %5602 = vmatprep.mubr.bf16.mxu0 0
  %5603 = vmatmul.mubr.bf16.gmra.mrb[0].mxu0 %v4503
  %v5604 = vpop.f32.mrb[0].mxu0
  %v5605 = vadd.f32 %v3891, %v5604
  %v5606 = vpop.f32.mrb[0].mxu0
  %v5607 = vpop.f32.mrb[0].mxu0
  %v5608 = vadd.f32 %v3891, %v5607
  %v5609 = vpop.f32.mrb[0].mxu0
  %5610 = vmatprep.mubr.bf16.mxu0 0
  %5611 = vmatmul.mubr.bf16.gmra.mrb[0].mxu0 %v4506
  %v5612 = vpop.f32.mrb[0].mxu0
  %v5613 = vadd.f32 %v3891, %v5612
  %v5614 = vpop.f32.mrb[0].mxu0
  %v5615 = vpop.f32.mrb[0].mxu0
  %v5616 = vadd.f32 %v3891, %v5615
  %v5617 = vpop.f32.mrb[0].mxu0
  %5618 = vmatprep.mubr.bf16.mxu0 0
  %5619 = vmatmul.mubr.bf16.gmra.mrb[0].mxu0 %v4509
  %v5620 = vpop.f32.mrb[0].mxu0
  %v5621 = vadd.f32 %v3891, %v5620
  %v5622 = vpop.f32.mrb[0].mxu0
  %v5623 = vpop.f32.mrb[0].mxu0
  %v5624 = vadd.f32 %v3891, %v5623
  %v5625 = vpop.f32.mrb[0].mxu0
  %5626 = vmatprep.mubr.bf16.mxu0 0
  %5627 = vmatmul.mubr.bf16.gmra.mrb[0].mxu0 %v4512
  %v5628 = vpop.f32.mrb[0].mxu0
  %v5629 = vadd.f32 %v3891, %v5628
  %v5630 = vpop.f32.mrb[0].mxu0
  %v5631 = vpop.f32.mrb[0].mxu0
  %v5632 = vadd.f32 %v3891, %v5631
  %v5633 = vpop.f32.mrb[0].mxu0
  %5634 = vmatprep.mubr.bf16.mxu0 0
  %5635 = vmatmul.mubr.bf16.gmra.mrb[0].mxu0 %v4515
  %v5636 = vpop.f32.mrb[0].mxu0
  %v5637 = vadd.f32 %v3891, %v5636
  %v5638 = vpop.f32.mrb[0].mxu0
  %v5639 = vpop.f32.mrb[0].mxu0
  %v5640 = vadd.f32 %v3891, %v5639
  %v5641 = vpop.f32.mrb[0].mxu0
  %5642 = vmatprep.mubr.bf16.mxu0 0
  %5643 = vmatmul.mubr.bf16.gmra.mrb[0].mxu0 %v4518
  %v5644 = vpop.f32.mrb[0].mxu0
  %v5645 = vadd.f32 %v3891, %v5644
  %v5646 = vpop.f32.mrb[0].mxu0
  %v5647 = vpop.f32.mrb[0].mxu0
  %v5648 = vadd.f32 %v3891, %v5647
  %v5649 = vpop.f32.mrb[0].mxu0
  %5650 = vmatprep.mubr.bf16.mxu0 0
  %5651 = vmatmul.mubr.bf16.gmra.mrb[0].mxu0 %v4521
  %v5652 = vpop.f32.mrb[0].mxu0
  %v5653 = vadd.f32 %v3891, %v5652
  %v5654 = vpop.f32.mrb[0].mxu0
  %v5655 = vpop.f32.mrb[0].mxu0
  %v5656 = vadd.f32 %v3891, %v5655
  %v5657 = vpop.f32.mrb[0].mxu0
  %5658 = vmatprep.mubr.bf16.mxu0 0
  %5659 = vmatmul.mubr.bf16.gmra.mrb[0].mxu0 %v4524
  %v5660 = vpop.f32.mrb[0].mxu0
  %v5661 = vadd.f32 %v3891, %v5660
  %v5662 = vpop.f32.mrb[0].mxu0
  %v5663 = vpop.f32.mrb[0].mxu0
  %v5664 = vadd.f32 %v3891, %v5663
  %v5665 = vpop.f32.mrb[0].mxu0
  %5666 = vmatprep.mubr.bf16.mxu0 0
  %5667 = vmatmul.mubr.bf16.gmra.mrb[0].mxu0 %v5399
  %v5668 = vpop.f32.mrb[0].mxu0
  %v5669 = vadd.f32 %v3891, %v5668
  %v5670 = vpop.f32.mrb[0].mxu0
  %v5671 = vpop.f32.mrb[0].mxu0
  %v5672 = vadd.f32 %v3891, %v5671
  %v5673 = vpop.f32.mrb[0].mxu0
  %5674 = vmatprep.mubr.bf16.mxu0 0
  %5675 = vmatmul.mubr.bf16.gmra.mrb[0].mxu0 %v5402
  %v5676 = vpop.f32.mrb[0].mxu0
  %v5677 = vadd.f32 %v3891, %v5676
  %v5678 = vpop.f32.mrb[0].mxu0
  %v5679 = vpop.f32.mrb[0].mxu0
  %v5680 = vadd.f32 %v3891, %v5679
  %v5681 = vpop.f32.mrb[0].mxu0
  %5682 = vmatprep.mubr.bf16.mxu0 0
  %5683 = vmatmul.mubr.bf16.gmra.mrb[0].mxu0 %v5405
  %v5684 = vpop.f32.mrb[0].mxu0
  %v5685 = vadd.f32 %v3891, %v5684
  %v5686 = vpop.f32.mrb[0].mxu0
  %v5687 = vpop.f32.mrb[0].mxu0
  %v5688 = vadd.f32 %v3891, %v5687
  %v5689 = vpop.f32.mrb[0].mxu0
  %5690 = vmatprep.mubr.bf16.mxu0 0
  %5691 = vmatmul.mubr.bf16.gmra.mrb[0].mxu0 %v5408
  %v5692 = vpop.f32.mrb[0].mxu0
  %v5693 = vadd.f32 %v3891, %v5692
  %v5694 = vpop.f32.mrb[0].mxu0
  %v5695 = vpop.f32.mrb[0].mxu0
  %v5696 = vadd.f32 %v3891, %v5695
  %v5697 = vpop.f32.mrb[0].mxu0
  %5698 = vdwg.mxu0
  %v5699 = vtanh.pop %v5445
  %v5700 = vtanh.pop %v5448
  %v5701 = vtanh.pop %v5453
  %v5702 = vtanh.pop %v5456
  %v5703 = vtanh.pop %v5461
  %v5704 = vtanh.pop %v5464
  %v5705 = vtanh.pop %v5469
  %v5706 = vtanh.pop %v5472
  %v5707 = vtanh.pop %v5477
  %v5708 = vtanh.pop %v5480
  %v5709 = vtanh.pop %v5485
  %v5710 = vtanh.pop %v5488
  %v5711 = vtanh.pop %v5493
  %v5712 = vtanh.pop %v5496
  %v5713 = vtanh.pop %v5501
  %v5714 = vtanh.pop %v5504
  %v5715 = vtanh.pop %v5509
  %v5716 = vtanh.pop %v5512
  %v5717 = vtanh.pop %v5517
  %v5718 = vtanh.pop %v5520
  %v5719 = vtanh.pop %v5525
  %v5720 = vtanh.pop %v5528
  %v5721 = vtanh.pop %v5533
  %v5722 = vtanh.pop %v5536
  %v5723 = vtanh.pop %v5541
  %v5724 = vtanh.pop %v5544
  %v5725 = vtanh.pop %v5549
  %v5726 = vtanh.pop %v5552
  %v5727 = vtanh.pop %v5557
  %v5728 = vtanh.pop %v5560
  %v5729 = vtanh.pop %v5565
  %v5730 = vtanh.pop %v5568
  %v5731 = vtanh.pop %v5573
  %v5732 = vtanh.pop %v5576
  %v5733 = vtanh.pop %v5581
  %v5734 = vtanh.pop %v5584
  %v5735 = vtanh.pop %v5589
  %v5736 = vtanh.pop %v5592
  %v5737 = vtanh.pop %v5597
  %v5738 = vtanh.pop %v5600
  %v5739 = vtanh.pop %v5605
  %v5740 = vtanh.pop %v5608
  %v5741 = vtanh.pop %v5613
  %v5742 = vtanh.pop %v5616
  %v5743 = vtanh.pop %v5621
  %v5744 = vtanh.pop %v5624
  %v5745 = vtanh.pop %v5629
  %v5746 = vtanh.pop %v5632
  %v5747 = vtanh.pop %v5637
  %v5748 = vtanh.pop %v5640
  %v5749 = vtanh.pop %v5645
  %v5750 = vtanh.pop %v5648
  %v5751 = vtanh.pop %v5653
  %v5752 = vtanh.pop %v5656
  %v5753 = vtanh.pop %v5661
  %v5754 = vtanh.pop %v5664
  %v5755 = vtanh.pop %v5669
  %v5756 = vtanh.pop %v5672
  %v5757 = vtanh.pop %v5677
  %v5758 = vtanh.pop %v5680
  %v5759 = vtanh.pop %v5685
  %v5760 = vtanh.pop %v5688
  %v5761 = vtanh.pop %v5693
  %v5762 = vtanh.pop %v5696
  %s5763 = scalar_lea.vmem %s5, 1536
  %5764 = vst [vmem:[%s5763] sm:$0xff] %v5699
  %5765 = vst [vmem:[%s5763 + $0x8] sm:$0xff] %v5700
  %5766 = vst [vmem:[%s5763 + $0x10] sm:$0xff] %v5701
  %5767 = vst [vmem:[%s5763 + $0x18] sm:$0xff] %v5702
  %5768 = vst [vmem:[%s5763 + $0x20] sm:$0xff] %v5703
  %5769 = vst [vmem:[%s5763 + $0x28] sm:$0xff] %v5704
  %5770 = vst [vmem:[%s5763 + $0x30] sm:$0xff] %v5705
  %5771 = vst [vmem:[%s5763 + $0x38] sm:$0xff] %v5706
  %5772 = vst [vmem:[%s5763 + $0x40] sm:$0xff] %v5707
  %5773 = vst [vmem:[%s5763 + $0x48] sm:$0xff] %v5708
  %5774 = vst [vmem:[%s5763 + $0x50] sm:$0xff] %v5709
  %5775 = vst [vmem:[%s5763 + $0x58] sm:$0xff] %v5710
  %5776 = vst [vmem:[%s5763 + $0x60] sm:$0xff] %v5711
  %5777 = vst [vmem:[%s5763 + $0x68] sm:$0xff] %v5712
  %5778 = vst [vmem:[%s5763 + $0x70] sm:$0xff] %v5713
  %5779 = vst [vmem:[%s5763 + $0x78] sm:$0xff] %v5714
  %5780 = vst [vmem:[%s5763 + $0x80] sm:$0xff] %v5715
  %5781 = vst [vmem:[%s5763 + $0x88] sm:$0xff] %v5716
  %5782 = vst [vmem:[%s5763 + $0x90] sm:$0xff] %v5717
  %5783 = vst [vmem:[%s5763 + $0x98] sm:$0xff] %v5718
  %5784 = vst [vmem:[%s5763 + $0xa0] sm:$0xff] %v5719
  %5785 = vst [vmem:[%s5763 + $0xa8] sm:$0xff] %v5720
  %5786 = vst [vmem:[%s5763 + $0xb0] sm:$0xff] %v5721
  %5787 = vst [vmem:[%s5763 + $0xb8] sm:$0xff] %v5722
  %5788 = vst [vmem:[%s5763 + $0xc0] sm:$0xff] %v5723
  %5789 = vst [vmem:[%s5763 + $0xc8] sm:$0xff] %v5724
  %5790 = vst [vmem:[%s5763 + $0xd0] sm:$0xff] %v5725
  %5791 = vst [vmem:[%s5763 + $0xd8] sm:$0xff] %v5726
  %5792 = vst [vmem:[%s5763 + $0xe0] sm:$0xff] %v5727
  %5793 = vst [vmem:[%s5763 + $0xe8] sm:$0xff] %v5728
  %5794 = vst [vmem:[%s5763 + $0xf0] sm:$0xff] %v5729
  %5795 = vst [vmem:[%s5763 + $0xf8] sm:$0xff] %v5730
  %5796 = vst [vmem:[%s5763 + $0x100] sm:$0xff] %v5731
  %5797 = vst [vmem:[%s5763 + $0x108] sm:$0xff] %v5732
  %5798 = vst [vmem:[%s5763 + $0x110] sm:$0xff] %v5733
  %5799 = vst [vmem:[%s5763 + $0x118] sm:$0xff] %v5734
  %5800 = vst [vmem:[%s5763 + $0x120] sm:$0xff] %v5735
  %5801 = vst [vmem:[%s5763 + $0x128] sm:$0xff] %v5736
  %5802 = vst [vmem:[%s5763 + $0x130] sm:$0xff] %v5737
  %5803 = vst [vmem:[%s5763 + $0x138] sm:$0xff] %v5738
  %5804 = vst [vmem:[%s5763 + $0x140] sm:$0xff] %v5739
  %5805 = vst [vmem:[%s5763 + $0x148] sm:$0xff] %v5740
  %5806 = vst [vmem:[%s5763 + $0x150] sm:$0xff] %v5741
  %5807 = vst [vmem:[%s5763 + $0x158] sm:$0xff] %v5742
  %5808 = vst [vmem:[%s5763 + $0x160] sm:$0xff] %v5743
  %5809 = vst [vmem:[%s5763 + $0x168] sm:$0xff] %v5744
  %5810 = vst [vmem:[%s5763 + $0x170] sm:$0xff] %v5745
  %5811 = vst [vmem:[%s5763 + $0x178] sm:$0xff] %v5746
  %5812 = vst [vmem:[%s5763 + $0x180] sm:$0xff] %v5747
  %5813 = vst [vmem:[%s5763 + $0x188] sm:$0xff] %v5748
  %5814 = vst [vmem:[%s5763 + $0x190] sm:$0xff] %v5749
  %5815 = vst [vmem:[%s5763 + $0x198] sm:$0xff] %v5750
  %5816 = vst [vmem:[%s5763 + $0x1a0] sm:$0xff] %v5751
  %5817 = vst [vmem:[%s5763 + $0x1a8] sm:$0xff] %v5752
  %5818 = vst [vmem:[%s5763 + $0x1b0] sm:$0xff] %v5753
  %5819 = vst [vmem:[%s5763 + $0x1b8] sm:$0xff] %v5754
  %5820 = vst [vmem:[%s5763 + $0x1c0] sm:$0xff] %v5755
  %5821 = vst [vmem:[%s5763 + $0x1c8] sm:$0xff] %v5756
  %5822 = vst [vmem:[%s5763 + $0x1d0] sm:$0xff] %v5757
  %5823 = vst [vmem:[%s5763 + $0x1d8] sm:$0xff] %v5758
  %5824 = vst [vmem:[%s5763 + $0x1e0] sm:$0xff] %v5759
  %5825 = vst [vmem:[%s5763 + $0x1e8] sm:$0xff] %v5760
  %5826 = vst [vmem:[%s5763 + $0x1f0] sm:$0xff] %v5761
  %5827 = vst [vmem:[%s5763 + $0x1f8] sm:$0xff] %v5762
  // Predicated region
  $region22: #{dcgan_generator_forward.1} parent=0 // pred_check
    _
  $region23: #{dcgan_generator_forward.1} parent=0 // pred_check_branch
    %5829 = sbr.rel (0) target = $region25
  $region24: #{dcgan_generator_forward.1} parent=0 // pred_region
    _
  $region25: #{dcgan_generator_forward.1} parent=0 // pred_fallthru
    _
  // Predicated region
  $region26: #{dcgan_generator_forward.1} parent=0 // pred_check
    _
  $region27: #{dcgan_generator_forward.1} parent=0 // pred_check_branch
    %5831 = sbr.rel (0) target = $region29
  $region28: #{dcgan_generator_forward.1} parent=0 // pred_region
    _
  $region29: #{dcgan_generator_forward.1} parent=0 // pred_fallthru
    _

</llo_original>
